<compile_context>
chip_gen: v6e
topology: v6e:2x2x1
jax: 0.10.0
libtpu: 0.0.40
codegen_flags: <defaults>
</compile_context>

<pallas_src>
import functools

import jax
import jax.numpy as jnp
import numpy as np
from jax.experimental import pallas as pl
from jax.experimental.pallas import tpu as pltpu

_LANE = 128
_SUBLANE = 8


def _pair(v):
    return (v, v) if isinstance(v, int) else tuple(v)


def _round_up(n, m):
    return ((n + m - 1) // m) * m


def _fold_matmul_kernel(x_ref, s_ref, o_ref):
    # x_ref: (M_pad, K*L)     f32  -- same block every grid step (stays resident)
    # s_ref: (K*L, TILE_HW)   bf16 -- 0/1 scatter block, streamed per step
    # o_ref: (M_pad, TILE_HW) f32
    s = s_ref[...].astype(jnp.float32)  # single hoisted upcast per block (exact: 0/1)
    o_ref[...] = jnp.dot(x_ref[...], s, preferred_element_type=jnp.float32)


@functools.lru_cache(maxsize=None)
def _scatter_matrix(H, W, KH, KW, SH, SW, PH, PW, DH, DW, L, LW, HW_pad):
    """0/1 matrix S of shape (K*L, HW_pad) in bf16; row (k*L + l) is one-hot at
    the output pixel written by block l / kernel offset k (all-zero row if it
    falls in the padding region or in the lane-padding columns)."""
    K = KH * KW
    k_idx = np.arange(K)
    l_idx = np.arange(L)
    kh = k_idx // KW
    kw = k_idx % KW
    lh = l_idx // LW
    lw = l_idx % LW
    h = lh[None, :] * SH + kh[:, None] * DH - PH     # (K, L)
    w = lw[None, :] * SW + kw[:, None] * DW - PW     # (K, L)
    valid = (h >= 0) & (h < H) & (w >= 0) & (w < W)
    col = np.where(valid, h * W + w, -1).reshape(K * L)
    S = (col[:, None] == np.arange(HW_pad)[None, :]).astype(np.float32)
    return jnp.asarray(S, dtype=jnp.bfloat16)        # 0/1 exact in bf16


def fold_pallas(x, output_size, kernel_size, stride=1, padding=0, dilation=1):
    H, W = _pair(output_size)
    KH, KW = _pair(kernel_size)
    SH, SW = _pair(stride)
    PH, PW = _pair(padding)
    DH, DW = _pair(dilation)
    K = KH * KW

    N, CK, L = x.shape
    assert CK % K == 0, "channel dim must be divisible by prod(kernel_size)"
    C = CK // K
    LH = (H + 2 * PH - DH * (KH - 1) - 1) // SH + 1
    LW = (W + 2 * PW - DW * (KW - 1) - 1) // SW + 1
    assert LH * LW == L, f"expected L={LH*LW}, got {L}"

    KL = K * L
    HW = H * W
    HW_pad = _round_up(HW, _LANE)                    # lane-dense output
    tile_hw = 256 if HW_pad % 256 == 0 else _LANE    # 2-4 pipeline steps typically
    n_blocks = HW_pad // tile_hw

    M = N * C
    M_pad = _round_up(M, _SUBLANE)                   # sublane-dense rows

    S = _scatter_matrix(H, W, KH, KW, SH, SW, PH, PW, DH, DW, L, LW, HW_pad)

    x2d = x.astype(jnp.float32).reshape(M, KL)
    if M_pad != M:
        x2d = jnp.pad(x2d, ((0, M_pad - M), (0, 0)))

    cost = pl.CostEstimate(
        flops=2 * M_pad * KL * HW_pad,
        transcendentals=0,
        bytes_accessed=int(x2d.size * 4 + S.size * 2 + M_pad * HW_pad * 4),
    )

    out2d = pl.pallas_call(
        _fold_matmul_kernel,
        out_shape=jax.ShapeDtypeStruct((M_pad, HW_pad), jnp.float32),
        grid=(n_blocks,),
        in_specs=[
            pl.BlockSpec((M_pad, KL), lambda j: (0, 0)),    # x: resident in VMEM
            pl.BlockSpec((KL, tile_hw), lambda j: (0, j)),  # S: streamed / pipelined
        ],
        out_specs=pl.BlockSpec((M_pad, tile_hw), lambda j: (0, j)),
        compiler_params=pltpu.CompilerParams(
            dimension_semantics=("parallel",),
        ),
        cost_estimate=cost,
    )(x2d, S)

    return out2d[:M, :HW].reshape(N, C, H, W)


@jax.jit
def model_forward(x, y, z):
    x = fold_pallas(x, output_size=22, kernel_size=3)
    y = fold_pallas(y, output_size=(17, 18), kernel_size=(2, 4),
                    stride=(2, 1), padding=2, dilation=1)
    z = fold_pallas(z, output_size=(5, 11), kernel_size=(2, 3),
                    stride=1, padding=(2, 4), dilation=(1, 2))
    return (x, y, z)


def fold_ref_np(x, output_size, kernel_size, stride=1, padding=0, dilation=1):
    """Pure numpy reference for F.fold (small sizes only)."""
    H, W = _pair(output_size)
    KH, KW = _pair(kernel_size)
    SH, SW = _pair(stride)
    PH, PW = _pair(padding)
    DH, DW = _pair(dilation)
    K = KH * KW
    N, CK, L = x.shape
    C = CK // K
    LW = (W + 2 * PW - DW * (KW - 1) - 1) // SW + 1
    xr = np.asarray(x, dtype=np.float64).reshape(N, C, K, L)
    out = np.zeros((N, C, H, W), dtype=np.float64)
    for k in range(K):
        kh, kw = k // KW, k % KW
        for l in range(L):
            lh, lw = l // LW, l % LW
            h = lh * SH + kh * DH - PH
            w = lw * SW + kw * DW - PW
            if 0 <= h < H and 0 <= w < W:
                out[:, :, h, w] += xr[:, :, k, l]
    return out


if __name__ == "__main__":
    key = jax.random.PRNGKey(0)
    kx, ky, kz = jax.random.split(key, 3)

    # Shapes consistent with each fold's (N, C*prod(kernel), L) requirement.
    # C=2 per branch; L derived from output_size/kernel/stride/padding/dilation.
    x = jax.random.normal(kx, (2, 2 * 3 * 3, 400), dtype=jnp.float32)   # -> (2,2,22,22)
    y = jax.random.normal(ky, (2, 2 * 2 * 4, 190), dtype=jnp.float32)   # -> (2,2,17,18)
    z = jax.random.normal(kz, (2, 2 * 2 * 3, 120), dtype=jnp.float32)   # -> (2,2,5,11)

    ox, oy, oz = model_forward(x, y, z)
    jax.block_until_ready((ox, oy, oz))

    # Correctness check against numpy references.
    rx = fold_ref_np(np.asarray(x), 22, 3)
    ry = fold_ref_np(np.asarray(y), (17, 18), (2, 4), stride=(2, 1), padding=2, dilation=1)
    rz = fold_ref_np(np.asarray(z), (5, 11), (2, 3), stride=1, padding=(2, 4), dilation=(1, 2))

    np.testing.assert_allclose(np.asarray(ox), rx, rtol=1e-5, atol=1e-5)
    np.testing.assert_allclose(np.asarray(oy), ry, rtol=1e-5, atol=1e-5)
    np.testing.assert_allclose(np.asarray(oz), rz, rtol=1e-5, atol=1e-5)

    assert ox.shape == (2, 2, 22, 22)
    assert oy.shape == (2, 2, 17, 18)
    assert oz.shape == (2, 2, 5, 11)

    print("KERNEL_OK")
</pallas_src>

<mosaic_0001>
module attributes {stable_mosaic.version = 11 : i64} {
  func.func @_fold_matmul_kernel(%arg0: i32, %arg1: memref<8x3600xf32, #tpu.memory_space<vmem>>, %arg2: memref<3600x256xbf16, #tpu.memory_space<vmem>>, %arg3: memref<8x256xf32, #tpu.memory_space<vmem>>) attributes {dimension_semantics = [#tpu.dimension_semantics<parallel>], iteration_bounds = array<i64: 2>, scalar_prefetch = 0 : i64, scratch_operands = 0 : i64, tpu.core_type = #tpu.core_type<tc>, window_params = [{pipeline_mode = #tpu.pipeline_mode<synchronous>, transform_indices = @transform_0, window_bounds = array<i64: 8, 3600>}, {transform_indices = @transform_1, window_bounds = array<i64: 3600, 256>}, {transform_indices = @transform_2, window_bounds = array<i64: 8, 256>}]} {
    %c0 = arith.constant 0 : index
    %c0_0 = arith.constant 0 : index
    %0 = vector.load %arg2[%c0, %c0_0] : memref<3600x256xbf16, #tpu.memory_space<vmem>>, vector<3600x256xbf16>
    %1 = arith.extf %0 : vector<3600x256xbf16> to vector<3600x256xf32>
    %c0_1 = arith.constant 0 : index
    %c0_2 = arith.constant 0 : index
    %2 = vector.load %arg1[%c0_1, %c0_2] : memref<8x3600xf32, #tpu.memory_space<vmem>>, vector<8x3600xf32>
    %cst = arith.constant dense<0.000000e+00> : vector<8x256xf32>
    %3 = tpu.matmul %2, %1, %cst {dimension_numbers = #tpu.dot_dimension_numbers<[1], [0], [0], [1], [0, 0, 1, 1], [], []>} : vector<8x3600xf32>, vector<3600x256xf32>, vector<8x256xf32> -> vector<8x256xf32>
    %c0_3 = arith.constant 0 : index
    %c0_4 = arith.constant 0 : index
    %4 = vector.load %arg3[%c0_3, %c0_4] : memref<8x256xf32, #tpu.memory_space<vmem>>, vector<8x256xf32>
    tpu.vector_store %arg3[%c0_3, %c0_4], %3 {strides = array<i32>} : memref<8x256xf32, #tpu.memory_space<vmem>>, vector<8x256xf32>,
    return
  }
  func.func @transform_0(%arg0: i32) -> (i32, i32) {
    %c0_i32 = arith.constant 0 : i32
    %c0_i32_0 = arith.constant 0 : i32
    %c0_i32_1 = arith.constant 0 : i32
    return %c0_i32, %c0_i32_0 : i32, i32
  }
  func.func @transform_1(%arg0: i32) -> (i32, i32) {
    %c0_i32 = arith.constant 0 : i32
    %c0_i32_0 = arith.constant 0 : i32
    return %c0_i32, %arg0 : i32, i32
  }
  func.func @transform_2(%arg0: i32) -> (i32, i32) {
    %c0_i32 = arith.constant 0 : i32
    %c0_i32_0 = arith.constant 0 : i32
    return %c0_i32, %arg0 : i32, i32
  }
}

module attributes {stable_mosaic.version = 11 : i64} {
  func.func @_fold_matmul_kernel(%arg0: i32, %arg1: memref<8x1520xf32, #tpu.memory_space<vmem>>, %arg2: memref<1520x128xbf16, #tpu.memory_space<vmem>>, %arg3: memref<8x128xf32, #tpu.memory_space<vmem>>) attributes {dimension_semantics = [#tpu.dimension_semantics<parallel>], iteration_bounds = array<i64: 3>, scalar_prefetch = 0 : i64, scratch_operands = 0 : i64, tpu.core_type = #tpu.core_type<tc>, window_params = [{pipeline_mode = #tpu.pipeline_mode<synchronous>, transform_indices = @transform_0, window_bounds = array<i64: 8, 1520>}, {transform_indices = @transform_1, window_bounds = array<i64: 1520, 128>}, {transform_indices = @transform_2, window_bounds = array<i64: 8, 128>}]} {
    %c0 = arith.constant 0 : index
    %c0_0 = arith.constant 0 : index
    %0 = vector.load %arg2[%c0, %c0_0] : memref<1520x128xbf16, #tpu.memory_space<vmem>>, vector<1520x128xbf16>
    %1 = arith.extf %0 : vector<1520x128xbf16> to vector<1520x128xf32>
    %c0_1 = arith.constant 0 : index
    %c0_2 = arith.constant 0 : index
    %2 = vector.load %arg1[%c0_1, %c0_2] : memref<8x1520xf32, #tpu.memory_space<vmem>>, vector<8x1520xf32>
    %cst = arith.constant dense<0.000000e+00> : vector<8x128xf32>
    %3 = tpu.matmul %2, %1, %cst {dimension_numbers = #tpu.dot_dimension_numbers<[1], [0], [0], [1], [0, 0, 1, 1], [], []>} : vector<8x1520xf32>, vector<1520x128xf32>, vector<8x128xf32> -> vector<8x128xf32>
    %c0_3 = arith.constant 0 : index
    %c0_4 = arith.constant 0 : index
    %4 = vector.load %arg3[%c0_3, %c0_4] : memref<8x128xf32, #tpu.memory_space<vmem>>, vector<8x128xf32>
    tpu.vector_store %arg3[%c0_3, %c0_4], %3 {strides = array<i32>} : memref<8x128xf32, #tpu.memory_space<vmem>>, vector<8x128xf32>,
    return
  }
  func.func @transform_0(%arg0: i32) -> (i32, i32) {
    %c0_i32 = arith.constant 0 : i32
    %c0_i32_0 = arith.constant 0 : i32
    %c0_i32_1 = arith.constant 0 : i32
    return %c0_i32, %c0_i32_0 : i32, i32
  }
  func.func @transform_1(%arg0: i32) -> (i32, i32) {
    %c0_i32 = arith.constant 0 : i32
    %c0_i32_0 = arith.constant 0 : i32
    return %c0_i32, %arg0 : i32, i32
  }
  func.func @transform_2(%arg0: i32) -> (i32, i32) {
    %c0_i32 = arith.constant 0 : i32
    %c0_i32_0 = arith.constant 0 : i32
    return %c0_i32, %arg0 : i32, i32
  }
}

module attributes {stable_mosaic.version = 11 : i64} {
  func.func @_fold_matmul_kernel(%arg0: i32, %arg1: memref<8x720xf32, #tpu.memory_space<vmem>>, %arg2: memref<720x128xbf16, #tpu.memory_space<vmem>>, %arg3: memref<8x128xf32, #tpu.memory_space<vmem>>) attributes {dimension_semantics = [#tpu.dimension_semantics<parallel>], iteration_bounds = array<i64: 1>, scalar_prefetch = 0 : i64, scratch_operands = 0 : i64, tpu.core_type = #tpu.core_type<tc>, window_params = [{pipeline_mode = #tpu.pipeline_mode<synchronous>, transform_indices = @transform_0, window_bounds = array<i64: 8, 720>}, {transform_indices = @transform_1, window_bounds = array<i64: 720, 128>}, {transform_indices = @transform_2, window_bounds = array<i64: 8, 128>}]} {
    %c0 = arith.constant 0 : index
    %c0_0 = arith.constant 0 : index
    %0 = vector.load %arg2[%c0, %c0_0] : memref<720x128xbf16, #tpu.memory_space<vmem>>, vector<720x128xbf16>
    %1 = arith.extf %0 : vector<720x128xbf16> to vector<720x128xf32>
    %c0_1 = arith.constant 0 : index
    %c0_2 = arith.constant 0 : index
    %2 = vector.load %arg1[%c0_1, %c0_2] : memref<8x720xf32, #tpu.memory_space<vmem>>, vector<8x720xf32>
    %cst = arith.constant dense<0.000000e+00> : vector<8x128xf32>
    %3 = tpu.matmul %2, %1, %cst {dimension_numbers = #tpu.dot_dimension_numbers<[1], [0], [0], [1], [0, 0, 1, 1], [], []>} : vector<8x720xf32>, vector<720x128xf32>, vector<8x128xf32> -> vector<8x128xf32>
    %c0_3 = arith.constant 0 : index
    %c0_4 = arith.constant 0 : index
    %4 = vector.load %arg3[%c0_3, %c0_4] : memref<8x128xf32, #tpu.memory_space<vmem>>, vector<8x128xf32>
    tpu.vector_store %arg3[%c0_3, %c0_4], %3 {strides = array<i32>} : memref<8x128xf32, #tpu.memory_space<vmem>>, vector<8x128xf32>,
    return
  }
  func.func @transform_0(%arg0: i32) -> (i32, i32) {
    %c0_i32 = arith.constant 0 : i32
    %c0_i32_0 = arith.constant 0 : i32
    %c0_i32_1 = arith.constant 0 : i32
    return %c0_i32, %c0_i32_0 : i32, i32
  }
  func.func @transform_1(%arg0: i32) -> (i32, i32) {
    %c0_i32 = arith.constant 0 : i32
    %c0_i32_0 = arith.constant 0 : i32
    return %c0_i32, %arg0 : i32, i32
  }
  func.func @transform_2(%arg0: i32) -> (i32, i32) {
    %c0_i32 = arith.constant 0 : i32
    %c0_i32_0 = arith.constant 0 : i32
    return %c0_i32, %arg0 : i32, i32
  }
}

</mosaic_0001>

<llo_original>
// kernel: model_forward.5
$region0: #{model_forward.5}
  #allocation0 [shape = 'u32[]', space=smem, size = 0x4, offset = 0x4, fixed_abs, tag = 'smem constant byte address 0x4 - core index']
  #allocation1 [shape = 'u32[144,128]{1,0:T(1,128)}', space=vmem, size = 0x12000, scoped, tag = 'internal scratch']
  %s0 = inlined_call_operand.vmem [shape: f32[8,720], index: 0, kind: input, shape index: {}]
  %s1 = inlined_call_operand.vmem [shape: bf16[720,128], index: 1, kind: input, shape index: {}]
  %s2 = inlined_call_operand.vmem [shape: f32[8,128], index: 2, kind: output, shape index: {}]
  %s3 = sld [smem:[#allocation0]]
  $region18: #{model_forward.5} parent=0
    _
  %s5 = ssub.s32 1, %s3
  %s6 = scalar_select 0, %s5, %s3
  // Predicated region
  $region2: #{model_forward.5} parent=0 // pred_check
    _
  $region3: #{model_forward.5} parent=0 // pred_check_branch
    %8 = sbr.rel (0) target = $region5
  $region4: #{model_forward.5} parent=0 // pred_region
    _
  $region5: #{model_forward.5} parent=0 // pred_fallthru
    _
  // Predicated region
  $region6: #{model_forward.5} parent=0 // pred_check
    _
  $region7: #{model_forward.5} parent=0 // pred_check_branch
    %10 = sbr.rel (0) target = $region9
  $region8: #{model_forward.5} parent=0 // pred_region
    _
  $region9: #{model_forward.5} parent=0 // pred_fallthru
    _
  %v11 = vld [vmem:[%s1] sm:$0xf]
  %v12 = vld [vmem:[%s1 + $0x4] sm:$0xf]
  %v13 = vld [vmem:[%s1 + $0x8] sm:$0xf]
  %v14 = vld [vmem:[%s1 + $0xc] sm:$0xf]
  %v15 = vld [vmem:[%s1 + $0x10] sm:$0xf]
  %v16 = vld [vmem:[%s1 + $0x14] sm:$0xf]
  %v17 = vld [vmem:[%s1 + $0x18] sm:$0xf]
  %v18 = vld [vmem:[%s1 + $0x1c] sm:$0xf]
  %v19 = vld [vmem:[%s1 + $0x20] sm:$0xf]
  %v20 = vld [vmem:[%s1 + $0x24] sm:$0xf]
  %v21 = vld [vmem:[%s1 + $0x28] sm:$0xf]
  %v22 = vld [vmem:[%s1 + $0x2c] sm:$0xf]
  %v23 = vld [vmem:[%s1 + $0x30] sm:$0xf]
  %v24 = vld [vmem:[%s1 + $0x34] sm:$0xf]
  %v25 = vld [vmem:[%s1 + $0x38] sm:$0xf]
  %v26 = vld [vmem:[%s1 + $0x3c] sm:$0xf]
  %v27 = vld [vmem:[%s1 + $0x40] sm:$0xf]
  %v28 = vld [vmem:[%s1 + $0x44] sm:$0xf]
  %v29 = vld [vmem:[%s1 + $0x48] sm:$0xf]
  %v30 = vld [vmem:[%s1 + $0x4c] sm:$0xf]
  %v31 = vld [vmem:[%s1 + $0x50] sm:$0xf]
  %v32 = vld [vmem:[%s1 + $0x54] sm:$0xf]
  %v33 = vld [vmem:[%s1 + $0x58] sm:$0xf]
  %v34 = vld [vmem:[%s1 + $0x5c] sm:$0xf]
  %v35 = vld [vmem:[%s1 + $0x60] sm:$0xf]
  %v36 = vld [vmem:[%s1 + $0x64] sm:$0xf]
  %v37 = vld [vmem:[%s1 + $0x68] sm:$0xf]
  %v38 = vld [vmem:[%s1 + $0x6c] sm:$0xf]
  %v39 = vld [vmem:[%s1 + $0x70] sm:$0xf]
  %v40 = vld [vmem:[%s1 + $0x74] sm:$0xf]
  %v41 = vld [vmem:[%s1 + $0x78] sm:$0xf]
  %v42 = vld [vmem:[%s1 + $0x7c] sm:$0xf]
  %v43 = vld [vmem:[%s1 + $0x80] sm:$0xf]
  %v44 = vld [vmem:[%s1 + $0x84] sm:$0xf]
  %v45 = vld [vmem:[%s1 + $0x88] sm:$0xf]
  %v46 = vld [vmem:[%s1 + $0x8c] sm:$0xf]
  %v47 = vld [vmem:[%s1 + $0x90] sm:$0xf]
  %v48 = vld [vmem:[%s1 + $0x94] sm:$0xf]
  %v49 = vld [vmem:[%s1 + $0x98] sm:$0xf]
  %v50 = vld [vmem:[%s1 + $0x9c] sm:$0xf]
  %v51 = vld [vmem:[%s1 + $0xa0] sm:$0xf]
  %v52 = vld [vmem:[%s1 + $0xa4] sm:$0xf]
  %v53 = vld [vmem:[%s1 + $0xa8] sm:$0xf]
  %v54 = vld [vmem:[%s1 + $0xac] sm:$0xf]
  %v55 = vld [vmem:[%s1 + $0xb0] sm:$0xf]
  %v56 = vld [vmem:[%s1 + $0xb4] sm:$0xf]
  %v57 = vld [vmem:[%s1 + $0xb8] sm:$0xf]
  %v58 = vld [vmem:[%s1 + $0xbc] sm:$0xf]
  %v59 = vld [vmem:[%s1 + $0xc0] sm:$0xf]
  %v60 = vld [vmem:[%s1 + $0xc4] sm:$0xf]
  %v61 = vld [vmem:[%s1 + $0xc8] sm:$0xf]
  %v62 = vld [vmem:[%s1 + $0xcc] sm:$0xf]
  %v63 = vld [vmem:[%s1 + $0xd0] sm:$0xf]
  %v64 = vld [vmem:[%s1 + $0xd4] sm:$0xf]
  %v65 = vld [vmem:[%s1 + $0xd8] sm:$0xf]
  %v66 = vld [vmem:[%s1 + $0xdc] sm:$0xf]
  %v67 = vld [vmem:[%s1 + $0xe0] sm:$0xf]
  %v68 = vld [vmem:[%s1 + $0xe4] sm:$0xf]
  %v69 = vld [vmem:[%s1 + $0xe8] sm:$0xf]
  %v70 = vld [vmem:[%s1 + $0xec] sm:$0xf]
  %v71 = vld [vmem:[%s1 + $0xf0] sm:$0xf]
  %v72 = vld [vmem:[%s1 + $0xf4] sm:$0xf]
  %v73 = vld [vmem:[%s1 + $0xf8] sm:$0xf]
  %v74 = vld [vmem:[%s1 + $0xfc] sm:$0xf]
  %v75 = vld [vmem:[%s1 + $0x100] sm:$0xf]
  %v76 = vld [vmem:[%s1 + $0x104] sm:$0xf]
  %v77 = vld [vmem:[%s1 + $0x108] sm:$0xf]
  %v78 = vld [vmem:[%s1 + $0x10c] sm:$0xf]
  %v79 = vld [vmem:[%s1 + $0x110] sm:$0xf]
  %v80 = vld [vmem:[%s1 + $0x114] sm:$0xf]
  %v81 = vld [vmem:[%s1 + $0x118] sm:$0xf]
  %v82 = vld [vmem:[%s1 + $0x11c] sm:$0xf]
  %v83 = vld [vmem:[%s1 + $0x120] sm:$0xf]
  %v84 = vld [vmem:[%s1 + $0x124] sm:$0xf]
  %v85 = vld [vmem:[%s1 + $0x128] sm:$0xf]
  %v86 = vld [vmem:[%s1 + $0x12c] sm:$0xf]
  %v87 = vld [vmem:[%s1 + $0x130] sm:$0xf]
  %v88 = vld [vmem:[%s1 + $0x134] sm:$0xf]
  %v89 = vld [vmem:[%s1 + $0x138] sm:$0xf]
  %v90 = vld [vmem:[%s1 + $0x13c] sm:$0xf]
  %v91 = vld [vmem:[%s1 + $0x140] sm:$0xf]
  %v92 = vld [vmem:[%s1 + $0x144] sm:$0xf]
  %v93 = vld [vmem:[%s1 + $0x148] sm:$0xf]
  %v94 = vld [vmem:[%s1 + $0x14c] sm:$0xf]
  %v95 = vld [vmem:[%s1 + $0x150] sm:$0xf]
  %v96 = vld [vmem:[%s1 + $0x154] sm:$0xf]
  %v97 = vld [vmem:[%s1 + $0x158] sm:$0xf]
  %v98 = vld [vmem:[%s1 + $0x15c] sm:$0xf]
  %v99 = vld [vmem:[%s1 + $0x160] sm:$0xf]
  %v100 = vld [vmem:[%s1 + $0x164] sm:$0xf]
  %v101 = vunpack.c.l.bf16 %v11
  %v102 = vunpack.c.l.bf16 %v12
  %v103 = vunpack.c.l.bf16 %v13
  %v104 = vunpack.c.l.bf16 %v14
  %v105 = vunpack.c.l.bf16 %v15
  %v106 = vunpack.c.l.bf16 %v16
  %v107 = vunpack.c.l.bf16 %v17
  %v108 = vunpack.c.l.bf16 %v18
  %v109 = vunpack.c.l.bf16 %v19
  %v110 = vunpack.c.l.bf16 %v20
  %v111 = vunpack.c.l.bf16 %v21
  %v112 = vunpack.c.l.bf16 %v22
  %v113 = vunpack.c.l.bf16 %v23
  %v114 = vunpack.c.l.bf16 %v24
  %v115 = vunpack.c.l.bf16 %v25
  %v116 = vunpack.c.l.bf16 %v26
  %v117 = vunpack.c.l.bf16 %v27
  %v118 = vunpack.c.l.bf16 %v28
  %v119 = vunpack.c.l.bf16 %v29
  %v120 = vunpack.c.l.bf16 %v30
  %v121 = vunpack.c.l.bf16 %v31
  %v122 = vunpack.c.l.bf16 %v32
  %v123 = vunpack.c.l.bf16 %v33
  %v124 = vunpack.c.l.bf16 %v34
  %v125 = vunpack.c.l.bf16 %v35
  %v126 = vunpack.c.l.bf16 %v36
  %v127 = vunpack.c.l.bf16 %v37
  %v128 = vunpack.c.l.bf16 %v38
  %v129 = vunpack.c.l.bf16 %v39
  %v130 = vunpack.c.l.bf16 %v40
  %v131 = vunpack.c.l.bf16 %v41
  %v132 = vunpack.c.l.bf16 %v42
  %v133 = vunpack.c.l.bf16 %v43
  %v134 = vunpack.c.l.bf16 %v44
  %v135 = vunpack.c.l.bf16 %v45
  %v136 = vunpack.c.l.bf16 %v46
  %v137 = vunpack.c.l.bf16 %v47
  %v138 = vunpack.c.l.bf16 %v48
  %v139 = vunpack.c.l.bf16 %v49
  %v140 = vunpack.c.l.bf16 %v50
  %v141 = vunpack.c.l.bf16 %v51
  %v142 = vunpack.c.l.bf16 %v52
  %v143 = vunpack.c.l.bf16 %v53
  %v144 = vunpack.c.l.bf16 %v54
  %v145 = vunpack.c.l.bf16 %v55
  %v146 = vunpack.c.l.bf16 %v56
  %v147 = vunpack.c.l.bf16 %v57
  %v148 = vunpack.c.l.bf16 %v58
  %v149 = vunpack.c.l.bf16 %v59
  %v150 = vunpack.c.l.bf16 %v60
  %v151 = vunpack.c.l.bf16 %v61
  %v152 = vunpack.c.l.bf16 %v62
  %v153 = vunpack.c.l.bf16 %v63
  %v154 = vunpack.c.l.bf16 %v64
  %v155 = vunpack.c.l.bf16 %v65
  %v156 = vunpack.c.l.bf16 %v66
  %v157 = vunpack.c.l.bf16 %v67
  %v158 = vunpack.c.l.bf16 %v68
  %v159 = vunpack.c.l.bf16 %v69
  %v160 = vunpack.c.l.bf16 %v70
  %v161 = vunpack.c.l.bf16 %v71
  %v162 = vunpack.c.l.bf16 %v72
  %v163 = vunpack.c.l.bf16 %v73
  %v164 = vunpack.c.l.bf16 %v74
  %v165 = vunpack.c.l.bf16 %v75
  %v166 = vunpack.c.l.bf16 %v76
  %v167 = vunpack.c.l.bf16 %v77
  %v168 = vunpack.c.l.bf16 %v78
  %v169 = vunpack.c.l.bf16 %v79
  %v170 = vunpack.c.l.bf16 %v80
  %v171 = vunpack.c.l.bf16 %v81
  %v172 = vunpack.c.l.bf16 %v82
  %v173 = vunpack.c.l.bf16 %v83
  %v174 = vunpack.c.l.bf16 %v84
  %v175 = vunpack.c.l.bf16 %v85
  %v176 = vunpack.c.l.bf16 %v86
  %v177 = vunpack.c.l.bf16 %v87
  %v178 = vunpack.c.l.bf16 %v88
  %v179 = vunpack.c.l.bf16 %v89
  %v180 = vunpack.c.l.bf16 %v90
  %v181 = vunpack.c.l.bf16 %v91
  %v182 = vunpack.c.l.bf16 %v92
  %v183 = vunpack.c.l.bf16 %v93
  %v184 = vunpack.c.l.bf16 %v94
  %v185 = vunpack.c.l.bf16 %v95
  %v186 = vunpack.c.l.bf16 %v96
  %v187 = vunpack.c.l.bf16 %v97
  %v188 = vunpack.c.l.bf16 %v98
  %v189 = vunpack.c.l.bf16 %v99
  %v190 = vunpack.c.l.bf16 %v100
  %v191 = vld [vmem:[%s0] sm:$0xff]
  %v192 = vld [vmem:[%s0 + $0x8] sm:$0xff]
  %v193 = vld [vmem:[%s0 + $0x10] sm:$0xff]
  %v194 = vld [vmem:[%s0 + $0x18] sm:$0xff]
  %v195 = vld [vmem:[%s0 + $0x20] sm:$0xff]
  %v196 = vld [vmem:[%s0 + $0x28] sm:$0xff]
  %vm197 = vcmask 654336
  %v199 = vsel %vm197, %v196, 0
  %201 = vmatprep.subr.mxu0 0.0
  %202 = vmatpush1.msra.mxu0 %v116
  %203 = vmatprep.subr.mxu0 0.0
  %204 = vmatpush1.msra.mxu0 %v115
  %205 = vmatprep.subr.mxu0 0.0
  %206 = vmatpush1.msra.mxu0 %v114
  %207 = vmatprep.subr.mxu0 0.0
  %208 = vmatpush1.msra.mxu0 %v113
  %209 = vmatprep.subr.mxu0 0.0
  %210 = vmatpush1.msra.mxu0 %v112
  %211 = vmatprep.subr.mxu0 0.0
  %212 = vmatpush1.msra.mxu0 %v111
  %213 = vmatprep.subr.mxu0 0.0
  %214 = vmatpush1.msra.mxu0 %v110
  %215 = vmatprep.subr.mxu0 0.0
  %216 = vmatpush1.msra.mxu0 %v109
  %217 = vmatprep.subr.mxu0 0.0
  %218 = vmatpush1.msra.mxu0 %v108
  %219 = vmatprep.subr.mxu0 0.0
  %220 = vmatpush1.msra.mxu0 %v107
  %221 = vmatprep.subr.mxu0 0.0
  %222 = vmatpush1.msra.mxu0 %v106
  %223 = vmatprep.subr.mxu0 0.0
  %224 = vmatpush1.msra.mxu0 %v105
  %225 = vmatprep.subr.mxu0 0.0
  %226 = vmatpush1.msra.mxu0 %v104
  %227 = vmatprep.subr.mxu0 0.0
  %228 = vmatpush1.msra.mxu0 %v103
  %229 = vmatprep.subr.mxu0 0.0
  %230 = vmatpush1.msra.mxu0 %v102
  %231 = vmatprep.subr.mxu0 0.0
  %232 = vmatpush1.msra.mxu0 %v101
  %233 = vmatprep.subr.mxu0 0.0
  %234 = vmatpush2.msra.mxu0 %v132
  %235 = vmatprep.subr.mxu0 0.0
  %236 = vmatpush2.msra.mxu0 %v131
  %237 = vmatprep.subr.mxu0 0.0
  %238 = vmatpush2.msra.mxu0 %v130
  %239 = vmatprep.subr.mxu0 0.0
  %240 = vmatpush2.msra.mxu0 %v129
  %241 = vmatprep.subr.mxu0 0.0
  %242 = vmatpush2.msra.mxu0 %v128
  %243 = vmatprep.subr.mxu0 0.0
  %244 = vmatpush2.msra.mxu0 %v127
  %245 = vmatprep.subr.mxu0 0.0
  %246 = vmatpush2.msra.mxu0 %v126
  %247 = vmatprep.subr.mxu0 0.0
  %248 = vmatpush2.msra.mxu0 %v125
  %249 = vmatprep.subr.mxu0 0.0
  %250 = vmatpush2.msra.mxu0 %v124
  %251 = vmatprep.subr.mxu0 0.0
  %252 = vmatpush2.msra.mxu0 %v123
  %253 = vmatprep.subr.mxu0 0.0
  %254 = vmatpush2.msra.mxu0 %v122
  %255 = vmatprep.subr.mxu0 0.0
  %256 = vmatpush2.msra.mxu0 %v121
  %257 = vmatprep.subr.mxu0 0.0
  %258 = vmatpush2.msra.mxu0 %v120
  %259 = vmatprep.subr.mxu0 0.0
  %260 = vmatpush2.msra.mxu0 %v119
  %261 = vmatprep.subr.mxu0 0.0
  %262 = vmatpush2.msra.mxu0 %v118
  %263 = vmatprep.subr.mxu0 0.0
  %264 = vmatpush2.msra.mxu0 %v117
  %265 = vmatprep.mubr.f32.mxu0 %v192
  %266 = vmatmul.mubr.f32.gmra.mxu0 %v191
  %v267 = vpop.f32.mrf.mxu0
  %v268 = vadd.f32 0.0, %v267
  %v269 = vpop.f32.mrf.mxu0
  %270 = vdwg.mxu0
  %271 = vmatprep.subr.mxu0 0.0
  %272 = vmatpush1.msra.mxu0 %v148
  %273 = vmatprep.subr.mxu0 0.0
  %274 = vmatpush1.msra.mxu0 %v147
  %275 = vmatprep.subr.mxu0 0.0
  %276 = vmatpush1.msra.mxu0 %v146
  %277 = vmatprep.subr.mxu0 0.0
  %278 = vmatpush1.msra.mxu0 %v145
  %279 = vmatprep.subr.mxu0 0.0
  %280 = vmatpush1.msra.mxu0 %v144
  %281 = vmatprep.subr.mxu0 0.0
  %282 = vmatpush1.msra.mxu0 %v143
  %283 = vmatprep.subr.mxu0 0.0
  %284 = vmatpush1.msra.mxu0 %v142
  %285 = vmatprep.subr.mxu0 0.0
  %286 = vmatpush1.msra.mxu0 %v141
  %287 = vmatprep.subr.mxu0 0.0
  %288 = vmatpush1.msra.mxu0 %v140
  %289 = vmatprep.subr.mxu0 0.0
  %290 = vmatpush1.msra.mxu0 %v139
  %291 = vmatprep.subr.mxu0 0.0
  %292 = vmatpush1.msra.mxu0 %v138
  %293 = vmatprep.subr.mxu0 0.0
  %294 = vmatpush1.msra.mxu0 %v137
  %295 = vmatprep.subr.mxu0 0.0
  %296 = vmatpush1.msra.mxu0 %v136
  %297 = vmatprep.subr.mxu0 0.0
  %298 = vmatpush1.msra.mxu0 %v135
  %299 = vmatprep.subr.mxu0 0.0
  %300 = vmatpush1.msra.mxu0 %v134
  %301 = vmatprep.subr.mxu0 0.0
  %302 = vmatpush1.msra.mxu0 %v133
  %303 = vmatprep.subr.mxu0 0.0
  %304 = vmatpush2.msra.mxu0 %v164
  %305 = vmatprep.subr.mxu0 0.0
  %306 = vmatpush2.msra.mxu0 %v163
  %307 = vmatprep.subr.mxu0 0.0
  %308 = vmatpush2.msra.mxu0 %v162
  %309 = vmatprep.subr.mxu0 0.0
  %310 = vmatpush2.msra.mxu0 %v161
  %311 = vmatprep.subr.mxu0 0.0
  %312 = vmatpush2.msra.mxu0 %v160
  %313 = vmatprep.subr.mxu0 0.0
  %314 = vmatpush2.msra.mxu0 %v159
  %315 = vmatprep.subr.mxu0 0.0
  %316 = vmatpush2.msra.mxu0 %v158
  %317 = vmatprep.subr.mxu0 0.0
  %318 = vmatpush2.msra.mxu0 %v157
  %319 = vmatprep.subr.mxu0 0.0
  %320 = vmatpush2.msra.mxu0 %v156
  %321 = vmatprep.subr.mxu0 0.0
  %322 = vmatpush2.msra.mxu0 %v155
  %323 = vmatprep.subr.mxu0 0.0
  %324 = vmatpush2.msra.mxu0 %v154
  %325 = vmatprep.subr.mxu0 0.0
  %326 = vmatpush2.msra.mxu0 %v153
  %327 = vmatprep.subr.mxu0 0.0
  %328 = vmatpush2.msra.mxu0 %v152
  %329 = vmatprep.subr.mxu0 0.0
  %330 = vmatpush2.msra.mxu0 %v151
  %331 = vmatprep.subr.mxu0 0.0
  %332 = vmatpush2.msra.mxu0 %v150
  %333 = vmatprep.subr.mxu0 0.0
  %334 = vmatpush2.msra.mxu0 %v149
  %335 = vmatprep.mubr.f32.mxu0 %v194
  %336 = vmatmul.mubr.f32.gmra.mxu0 %v193
  %v337 = vpop.f32.mrf.mxu0
  %v338 = vadd.f32 %v268, %v337
  %v339 = vpop.f32.mrf.mxu0
  %340 = vdwg.mxu0
  %341 = vmatprep.subr.mxu0 0.0
  %342 = vmatpush1.msra.mxu0 %v180
  %343 = vmatprep.subr.mxu0 0.0
  %344 = vmatpush1.msra.mxu0 %v179
  %345 = vmatprep.subr.mxu0 0.0
  %346 = vmatpush1.msra.mxu0 %v178
  %347 = vmatprep.subr.mxu0 0.0
  %348 = vmatpush1.msra.mxu0 %v177
  %349 = vmatprep.subr.mxu0 0.0
  %350 = vmatpush1.msra.mxu0 %v176
  %351 = vmatprep.subr.mxu0 0.0
  %352 = vmatpush1.msra.mxu0 %v175
  %353 = vmatprep.subr.mxu0 0.0
  %354 = vmatpush1.msra.mxu0 %v174
  %355 = vmatprep.subr.mxu0 0.0
  %356 = vmatpush1.msra.mxu0 %v173
  %357 = vmatprep.subr.mxu0 0.0
  %358 = vmatpush1.msra.mxu0 %v172
  %359 = vmatprep.subr.mxu0 0.0
  %360 = vmatpush1.msra.mxu0 %v171
  %361 = vmatprep.subr.mxu0 0.0
  %362 = vmatpush1.msra.mxu0 %v170
  %363 = vmatprep.subr.mxu0 0.0
  %364 = vmatpush1.msra.mxu0 %v169
  %365 = vmatprep.subr.mxu0 0.0
  %366 = vmatpush1.msra.mxu0 %v168
  %367 = vmatprep.subr.mxu0 0.0
  %368 = vmatpush1.msra.mxu0 %v167
  %369 = vmatprep.subr.mxu0 0.0
  %370 = vmatpush1.msra.mxu0 %v166
  %371 = vmatprep.subr.mxu0 0.0
  %372 = vmatpush1.msra.mxu0 %v165
  %373 = vmatprep.subr.mxu0 0.0
  %374 = vmatpush2.msra.mxu0 0.0
  %375 = vmatprep.subr.mxu0 0.0
  %376 = vmatpush2.msra.mxu0 0.0
  %377 = vmatprep.subr.mxu0 0.0
  %378 = vmatpush2.msra.mxu0 0.0
  %379 = vmatprep.subr.mxu0 0.0
  %380 = vmatpush2.msra.mxu0 0.0
  %381 = vmatprep.subr.mxu0 0.0
  %382 = vmatpush2.msra.mxu0 0.0
  %383 = vmatprep.subr.mxu0 0.0
  %384 = vmatpush2.msra.mxu0 0.0
  %385 = vmatprep.subr.mxu0 0.0
  %386 = vmatpush2.msra.mxu0 %v190
  %387 = vmatprep.subr.mxu0 0.0
  %388 = vmatpush2.msra.mxu0 %v189
  %389 = vmatprep.subr.mxu0 0.0
  %390 = vmatpush2.msra.mxu0 %v188
  %391 = vmatprep.subr.mxu0 0.0
  %392 = vmatpush2.msra.mxu0 %v187
  %393 = vmatprep.subr.mxu0 0.0
  %394 = vmatpush2.msra.mxu0 %v186
  %395 = vmatprep.subr.mxu0 0.0
  %396 = vmatpush2.msra.mxu0 %v185
  %397 = vmatprep.subr.mxu0 0.0
  %398 = vmatpush2.msra.mxu0 %v184
  %399 = vmatprep.subr.mxu0 0.0
  %400 = vmatpush2.msra.mxu0 %v183
  %401 = vmatprep.subr.mxu0 0.0
  %402 = vmatpush2.msra.mxu0 %v182
  %403 = vmatprep.subr.mxu0 0.0
  %404 = vmatpush2.msra.mxu0 %v181
  %405 = vmatprep.mubr.f32.mxu0 %v199
  %406 = vmatmul.mubr.f32.gmra.mxu0 %v195
  %v407 = vpop.f32.mrf.mxu0
  %v408 = vadd.f32 %v338, %v407
  %v409 = vpop.f32.mrf.mxu0
  %410 = vdwg.mxu0
  %411 = vst [vmem:[%s2] sm:$0xff] %v408
  // Predicated region
  $region10: #{model_forward.5} parent=0 // pred_check
    _
  $region11: #{model_forward.5} parent=0 // pred_check_branch
    %413 = sbr.rel (0) target = $region13
  $region12: #{model_forward.5} parent=0 // pred_region
    _
  $region13: #{model_forward.5} parent=0 // pred_fallthru
    _
  // Predicated region
  $region14: #{model_forward.5} parent=0 // pred_check
    _
  $region15: #{model_forward.5} parent=0 // pred_check_branch
    %415 = sbr.rel (0) target = $region17
  $region16: #{model_forward.5} parent=0 // pred_region
    _
  $region17: #{model_forward.5} parent=0 // pred_fallthru
    _

// kernel: model_forward.4
$region0: #{model_forward.4}
  #allocation0 [shape = 'u32[]', space=smem, size = 0x4, offset = 0x4, fixed_abs, tag = 'smem constant byte address 0x4 - core index']
  #allocation1 [shape = 'u32[144,128]{1,0:T(1,128)}', space=vmem, size = 0x12000, scoped, tag = 'internal scratch']
  %s0 = inlined_call_operand.vmem [shape: f32[8,1520], index: 0, kind: input, shape index: {}]
  %s1 = inlined_call_operand.vmem [shape: bf16[1520,384], index: 1, kind: input, shape index: {}]
  %s2 = inlined_call_operand.vmem [shape: f32[8,384], index: 2, kind: output, shape index: {}]
  %s3 = sld [smem:[#allocation0]]
  $region82: #{model_forward.4} parent=0
    _
  %s5 = ssub.s32 1, %s3
  %s6 = scalar_select 0, %s5, %s3
  $region1: #{model_forward.4} parent=0
    #allocation2 [shape = 'u8[778240]{0}', space=vmem, size = 0xbe000, scoped, tag = 'input window, operand 1']
    loop: start=0, step=1, limit=5
    $region2: #{model_forward.4} parent=1 // loop_pre_header
      _
    $region3: #{model_forward.4} parent=1 // loop_header
      %s8 = sphi 0, %s12
      %p9 = scmp.ge.s32.totalorder %s8, 5
      %s16 = sphi 0, %s16
      %s18 = sphi 0, %s16
      %s19 = sphi 0, %s18
      %s33 = sphi 0, %s19
      %s39 = sphi 0, %s41
      %s42 = sphi 0, %s39
      %s43 = sphi 0, %s42
      %s59 = sphi 0, %s43
      %s65 = sphi 0, %s67
      %s68 = sphi 0, %s65
      %s69 = sphi 0, %s68
      %s85 = sphi 0, %s69
    $region4: #{model_forward.4} parent=1 // loop_header_branch
      %11 = sbr.rel (%p9) target = $region8
    $region5: #{model_forward.4} parent=1 // loop_body
      %s13 = ssub.s32 %s8, 1
      %s14 = ssub.s32 %s8, 2
      %s15 = sadd.s32 %s8, 1
      %s17 = sadd.s32 %s16, 1
      %p20 = scmp.eq.s32.totalorder %s8, 2
      %p21 = scmp.ne.s32.totalorder %s16, %s18
      %p22 = scmp.eq.s32.totalorder %s8, 0
      %p23 = por %p21, %p22
      %p24 = scmp.ne.s32.totalorder %s16, %s18
      %p25 = scmp.eq.s32.totalorder %s13, 2
      %p26 = por %p24, %p25
      %p27 = scmp.ne.s32.totalorder %s18, %s19
      %p28 = scmp.eq.s32.totalorder %s13, 0
      %p29 = por %p27, %p28
      %p30 = scmp.ne.s32.totalorder %s18, %s19
      %p31 = scmp.eq.s32.totalorder %s14, 2
      %p32 = por %p30, %p31
      %p34 = scmp.ne.s32.totalorder %s19, %s33
      %p35 = scmp.eq.s32.totalorder %s14, 0
      %p36 = por %p34, %p35
      %s37 = ssub.s32 %s8, %s15
      %p38 = scmp.eq.s32.totalorder %s37, 0
      %s40 = sadd.s32 %s39, 1
      %s41 = scalar_select %p38, %s39, %s40
      %p44 = pneg %p38
      %p45 = scmp.eq.s32.totalorder %s8, 2
      %p46 = por %p44, %p45
      %p47 = scmp.ne.s32.totalorder %s39, %s42
      %p48 = scmp.eq.s32.totalorder %s8, 0
      %p49 = por %p47, %p48
      %p50 = scmp.ne.s32.totalorder %s39, %s42
      %p51 = scmp.eq.s32.totalorder %s13, 2
      %p52 = por %p50, %p51
      %p53 = scmp.ne.s32.totalorder %s42, %s43
      %p54 = scmp.eq.s32.totalorder %s13, 0
      %p55 = por %p53, %p54
      %p56 = scmp.ne.s32.totalorder %s42, %s43
      %p57 = scmp.eq.s32.totalorder %s14, 2
      %p58 = por %p56, %p57
      %p60 = scmp.ne.s32.totalorder %s43, %s59
      %p61 = scmp.eq.s32.totalorder %s14, 0
      %p62 = por %p60, %p61
      %s63 = ssub.s32 %s8, %s15
      %p64 = scmp.eq.s32.totalorder %s63, 0
      %s66 = sadd.s32 %s65, 1
      %s67 = scalar_select %p64, %s65, %s66
      %p70 = pneg %p64
      %p71 = scmp.eq.s32.totalorder %s8, 2
      %p72 = por %p70, %p71
      %p73 = scmp.ne.s32.totalorder %s65, %s68
      %p74 = scmp.eq.s32.totalorder %s8, 0
      %p75 = por %p73, %p74
      %p76 = scmp.ne.s32.totalorder %s65, %s68
      %p77 = scmp.eq.s32.totalorder %s13, 2
      %p78 = por %p76, %p77
      %p79 = scmp.ne.s32.totalorder %s68, %s69
      %p80 = scmp.eq.s32.totalorder %s13, 0
      %p81 = por %p79, %p80
      %p82 = scmp.ne.s32.totalorder %s68, %s69
      %p83 = scmp.eq.s32.totalorder %s14, 2
      %p84 = por %p82, %p83
      %p86 = scmp.ne.s32.totalorder %s69, %s85
      %p87 = scmp.eq.s32.totalorder %s14, 0
      %p88 = por %p86, %p87
      %p89 = scmp.le.s32.totalorder 1, %s8
      %p90 = scmp.lt.s32.totalorder %s8, 4
      %p91 = pnand %p89, %p90
      %p92 = pneg %p91
      // Predicated region
      $region9: #{model_forward.4} parent=5 // pred_check
        _
      $region10: #{model_forward.4} parent=5 // pred_check_branch
        %94 = sbr.rel (%p91) target = $region12
      $region11: #{model_forward.4} parent=5 // pred_region
        %s95 = ssub.s32 %s8, 1
        // Predicated region
        $region13: #{model_forward.4} parent=11 // pred_check
          %p96 = pneg %p29
        $region14: #{model_forward.4} parent=11 // pred_check_branch
          %98 = sbr.rel (%p96) target = $region16
        $region15: #{model_forward.4} parent=11 // pred_region
          _
        $region16: #{model_forward.4} parent=11 // pred_fallthru
          _
      $region12: #{model_forward.4} parent=5 // pred_fallthru
        _
      %p99 = scmp.lt.s32.totalorder %s8, 3
      // Predicated region
      $region17: #{model_forward.4} parent=5 // pred_check
        %p100 = pneg %p99
      $region18: #{model_forward.4} parent=5 // pred_check_branch
        %102 = sbr.rel (%p100) target = $region20
      $region19: #{model_forward.4} parent=5 // pred_region
        // Predicated region
        $region21: #{model_forward.4} parent=19 // pred_check
          %p103 = pneg %p49
        $region22: #{model_forward.4} parent=19 // pred_check_branch
          %105 = sbr.rel (%p103) target = $region24
        $region23: #{model_forward.4} parent=19 // pred_region
          %s106 = sand.u32 %s39, 1
          %s107 = sand.u32 %s39, 1
          %s108 = smul.addr %s107, 760
          %s109 = scalar_lea.vmem [#allocation2], %s108
          %s110 = smul.addr %s8, 4
          %s111 = scalar_lea.vmem %s1, %s110
          // Predicated region
          $region25: #{model_forward.4} parent=23 // pred_check
            _
          $region26: #{model_forward.4} parent=23 // pred_check_branch
            %113 = sbr.rel (0) target = $region28
          $region27: #{model_forward.4} parent=23 // pred_region
            // Predicated region
            $region29: #{model_forward.4} parent=27 // pred_check
              _
            $region30: #{model_forward.4} parent=27 // pred_check_branch
              %115 = sbr.rel target = $region32
            $region31: #{model_forward.4} parent=27 // pred_region
              // Predicated region
              $region44: #{model_forward.4} parent=31 // pred_check
                _
              $region45: #{model_forward.4} parent=31 // pred_check_branch
                %509 = sbr.rel (0) target = $region47
              $region46: #{model_forward.4} parent=31 // pred_region
                loop: start=0, step=1, limit=1
                $region48: #{model_forward.4} parent=46 // loop_pre_header
                  _
                $region49: #{model_forward.4} parent=46 // loop_header
                  %s511 = sphi 0, %s515
                  %p512 = scmp.ge.s32.totalorder %s511, 1
                  %s516 = sphi %s111, %s111
                  %s517 = sphi %s109, %s109
                $region50: #{model_forward.4} parent=46 // loop_header_branch
                  %514 = sbr.rel (%p512) target = $region54
                $region51: #{model_forward.4} parent=46 // loop_body
                  _
                $region52: #{model_forward.4} parent=46 // loop_footer
                  %s515 = sadd.s32 1, %s511
                $region53: #{model_forward.4} parent=46 // loop_footer_branch
                  %510 = sbr.rel target = $region49
                $region54: #{model_forward.4} parent=46 // loop_exit
                  _
                %s519 = ssub.s32 16, 1
                loop: start=0, step=1, limit=1
                $region55: #{model_forward.4} parent=46 // loop_pre_header
                  _
                $region56: #{model_forward.4} parent=46 // loop_header
                  %s521 = sphi 0, %s525
                  %p522 = scmp.ge.s32.totalorder %s521, 1
                  %s526 = sphi %s111, %s111
                  %s527 = sphi %s109, %s109
                $region57: #{model_forward.4} parent=46 // loop_header_branch
                  %524 = sbr.rel (%p522) target = $region61
                $region58: #{model_forward.4} parent=46 // loop_body
                  %v528 = vld [vmem:[%s526] sm:%s519]
                  %529 = vst [vmem:[%s527] sm:%s519] %v528
                  %v530 = vld [vmem:[%s526 + $0xc] sm:%s519]
                  %531 = vst [vmem:[%s527 + $0x4] sm:%s519] %v530
                  %v532 = vld [vmem:[%s526 + $0x18] sm:%s519]
                  %533 = vst [vmem:[%s527 + $0x8] sm:%s519] %v532
                  %v534 = vld [vmem:[%s526 + $0x24] sm:%s519]
                  %535 = vst [vmem:[%s527 + $0xc] sm:%s519] %v534
                  %v536 = vld [vmem:[%s526 + $0x30] sm:%s519]
                  %537 = vst [vmem:[%s527 + $0x10] sm:%s519] %v536
                  %v538 = vld [vmem:[%s526 + $0x3c] sm:%s519]
                  %539 = vst [vmem:[%s527 + $0x14] sm:%s519] %v538
                  %v540 = vld [vmem:[%s526 + $0x48] sm:%s519]
                  %541 = vst [vmem:[%s527 + $0x18] sm:%s519] %v540
                  %v542 = vld [vmem:[%s526 + $0x54] sm:%s519]
                  %543 = vst [vmem:[%s527 + $0x1c] sm:%s519] %v542
                  %v544 = vld [vmem:[%s526 + $0x60] sm:%s519]
                  %545 = vst [vmem:[%s527 + $0x20] sm:%s519] %v544
                  %v546 = vld [vmem:[%s526 + $0x6c] sm:%s519]
                  %547 = vst [vmem:[%s527 + $0x24] sm:%s519] %v546
                  %v548 = vld [vmem:[%s526 + $0x78] sm:%s519]
                  %549 = vst [vmem:[%s527 + $0x28] sm:%s519] %v548
                  %v550 = vld [vmem:[%s526 + $0x84] sm:%s519]
                  %551 = vst [vmem:[%s527 + $0x2c] sm:%s519] %v550
                  %v552 = vld [vmem:[%s526 + $0x90] sm:%s519]
                  %553 = vst [vmem:[%s527 + $0x30] sm:%s519] %v552
                  %v554 = vld [vmem:[%s526 + $0x9c] sm:%s519]
                  %555 = vst [vmem:[%s527 + $0x34] sm:%s519] %v554
                  %v556 = vld [vmem:[%s526 + $0xa8] sm:%s519]
                  %557 = vst [vmem:[%s527 + $0x38] sm:%s519] %v556
                  %v558 = vld [vmem:[%s526 + $0xb4] sm:%s519]
                  %559 = vst [vmem:[%s527 + $0x3c] sm:%s519] %v558
                  %v560 = vld [vmem:[%s526 + $0xc0] sm:%s519]
                  %561 = vst [vmem:[%s527 + $0x40] sm:%s519] %v560
                  %v562 = vld [vmem:[%s526 + $0xcc] sm:%s519]
                  %563 = vst [vmem:[%s527 + $0x44] sm:%s519] %v562
                  %v564 = vld [vmem:[%s526 + $0xd8] sm:%s519]
                  %565 = vst [vmem:[%s527 + $0x48] sm:%s519] %v564
                  %v566 = vld [vmem:[%s526 + $0xe4] sm:%s519]
                  %567 = vst [vmem:[%s527 + $0x4c] sm:%s519] %v566
                  %v568 = vld [vmem:[%s526 + $0xf0] sm:%s519]
                  %569 = vst [vmem:[%s527 + $0x50] sm:%s519] %v568
                  %v570 = vld [vmem:[%s526 + $0xfc] sm:%s519]
                  %571 = vst [vmem:[%s527 + $0x54] sm:%s519] %v570
                  %v572 = vld [vmem:[%s526 + $0x108] sm:%s519]
                  %573 = vst [vmem:[%s527 + $0x58] sm:%s519] %v572
                  %v574 = vld [vmem:[%s526 + $0x114] sm:%s519]
                  %575 = vst [vmem:[%s527 + $0x5c] sm:%s519] %v574
                  %v576 = vld [vmem:[%s526 + $0x120] sm:%s519]
                  %577 = vst [vmem:[%s527 + $0x60] sm:%s519] %v576
                  %v578 = vld [vmem:[%s526 + $0x12c] sm:%s519]
                  %579 = vst [vmem:[%s527 + $0x64] sm:%s519] %v578
                  %v580 = vld [vmem:[%s526 + $0x138] sm:%s519]
                  %581 = vst [vmem:[%s527 + $0x68] sm:%s519] %v580
                  %v582 = vld [vmem:[%s526 + $0x144] sm:%s519]
                  %583 = vst [vmem:[%s527 + $0x6c] sm:%s519] %v582
                  %v584 = vld [vmem:[%s526 + $0x150] sm:%s519]
                  %585 = vst [vmem:[%s527 + $0x70] sm:%s519] %v584
                  %v586 = vld [vmem:[%s526 + $0x15c] sm:%s519]
                  %587 = vst [vmem:[%s527 + $0x74] sm:%s519] %v586
                  %v588 = vld [vmem:[%s526 + $0x168] sm:%s519]
                  %589 = vst [vmem:[%s527 + $0x78] sm:%s519] %v588
                  %v590 = vld [vmem:[%s526 + $0x174] sm:%s519]
                  %591 = vst [vmem:[%s527 + $0x7c] sm:%s519] %v590
                  %v592 = vld [vmem:[%s526 + $0x180] sm:%s519]
                  %593 = vst [vmem:[%s527 + $0x80] sm:%s519] %v592
                  %v594 = vld [vmem:[%s526 + $0x18c] sm:%s519]
                  %595 = vst [vmem:[%s527 + $0x84] sm:%s519] %v594
                  %v596 = vld [vmem:[%s526 + $0x198] sm:%s519]
                  %597 = vst [vmem:[%s527 + $0x88] sm:%s519] %v596
                  %v598 = vld [vmem:[%s526 + $0x1a4] sm:%s519]
                  %599 = vst [vmem:[%s527 + $0x8c] sm:%s519] %v598
                  %v600 = vld [vmem:[%s526 + $0x1b0] sm:%s519]
                  %601 = vst [vmem:[%s527 + $0x90] sm:%s519] %v600
                  %v602 = vld [vmem:[%s526 + $0x1bc] sm:%s519]
                  %603 = vst [vmem:[%s527 + $0x94] sm:%s519] %v602
                  %v604 = vld [vmem:[%s526 + $0x1c8] sm:%s519]
                  %605 = vst [vmem:[%s527 + $0x98] sm:%s519] %v604
                  %v606 = vld [vmem:[%s526 + $0x1d4] sm:%s519]
                  %607 = vst [vmem:[%s527 + $0x9c] sm:%s519] %v606
                  %v608 = vld [vmem:[%s526 + $0x1e0] sm:%s519]
                  %609 = vst [vmem:[%s527 + $0xa0] sm:%s519] %v608
                  %v610 = vld [vmem:[%s526 + $0x1ec] sm:%s519]
                  %611 = vst [vmem:[%s527 + $0xa4] sm:%s519] %v610
                  %v612 = vld [vmem:[%s526 + $0x1f8] sm:%s519]
                  %613 = vst [vmem:[%s527 + $0xa8] sm:%s519] %v612
                  %v614 = vld [vmem:[%s526 + $0x204] sm:%s519]
                  %615 = vst [vmem:[%s527 + $0xac] sm:%s519] %v614
                  %v616 = vld [vmem:[%s526 + $0x210] sm:%s519]
                  %617 = vst [vmem:[%s527 + $0xb0] sm:%s519] %v616
                  %v618 = vld [vmem:[%s526 + $0x21c] sm:%s519]
                  %619 = vst [vmem:[%s527 + $0xb4] sm:%s519] %v618
                  %v620 = vld [vmem:[%s526 + $0x228] sm:%s519]
                  %621 = vst [vmem:[%s527 + $0xb8] sm:%s519] %v620
                  %v622 = vld [vmem:[%s526 + $0x234] sm:%s519]
                  %623 = vst [vmem:[%s527 + $0xbc] sm:%s519] %v622
                  %v624 = vld [vmem:[%s526 + $0x240] sm:%s519]
                  %625 = vst [vmem:[%s527 + $0xc0] sm:%s519] %v624
                  %v626 = vld [vmem:[%s526 + $0x24c] sm:%s519]
                  %627 = vst [vmem:[%s527 + $0xc4] sm:%s519] %v626
                  %v628 = vld [vmem:[%s526 + $0x258] sm:%s519]
                  %629 = vst [vmem:[%s527 + $0xc8] sm:%s519] %v628
                  %v630 = vld [vmem:[%s526 + $0x264] sm:%s519]
                  %631 = vst [vmem:[%s527 + $0xcc] sm:%s519] %v630
                  %v632 = vld [vmem:[%s526 + $0x270] sm:%s519]
                  %633 = vst [vmem:[%s527 + $0xd0] sm:%s519] %v632
                  %v634 = vld [vmem:[%s526 + $0x27c] sm:%s519]
                  %635 = vst [vmem:[%s527 + $0xd4] sm:%s519] %v634
                  %v636 = vld [vmem:[%s526 + $0x288] sm:%s519]
                  %637 = vst [vmem:[%s527 + $0xd8] sm:%s519] %v636
                  %v638 = vld [vmem:[%s526 + $0x294] sm:%s519]
                  %639 = vst [vmem:[%s527 + $0xdc] sm:%s519] %v638
                  %v640 = vld [vmem:[%s526 + $0x2a0] sm:%s519]
                  %641 = vst [vmem:[%s527 + $0xe0] sm:%s519] %v640
                  %v642 = vld [vmem:[%s526 + $0x2ac] sm:%s519]
                  %643 = vst [vmem:[%s527 + $0xe4] sm:%s519] %v642
                  %v644 = vld [vmem:[%s526 + $0x2b8] sm:%s519]
                  %645 = vst [vmem:[%s527 + $0xe8] sm:%s519] %v644
                  %v646 = vld [vmem:[%s526 + $0x2c4] sm:%s519]
                  %647 = vst [vmem:[%s527 + $0xec] sm:%s519] %v646
                  %v648 = vld [vmem:[%s526 + $0x2d0] sm:%s519]
                  %649 = vst [vmem:[%s527 + $0xf0] sm:%s519] %v648
                  %v650 = vld [vmem:[%s526 + $0x2dc] sm:%s519]
                  %651 = vst [vmem:[%s527 + $0xf4] sm:%s519] %v650
                  %v652 = vld [vmem:[%s526 + $0x2e8] sm:%s519]
                  %653 = vst [vmem:[%s527 + $0xf8] sm:%s519] %v652
                  %v654 = vld [vmem:[%s526 + $0x2f4] sm:%s519]
                  %655 = vst [vmem:[%s527 + $0xfc] sm:%s519] %v654
                  %v656 = vld [vmem:[%s526 + $0x300] sm:%s519]
                  %657 = vst [vmem:[%s527 + $0x100] sm:%s519] %v656
                  %v658 = vld [vmem:[%s526 + $0x30c] sm:%s519]
                  %659 = vst [vmem:[%s527 + $0x104] sm:%s519] %v658
                  %v660 = vld [vmem:[%s526 + $0x318] sm:%s519]
                  %661 = vst [vmem:[%s527 + $0x108] sm:%s519] %v660
                  %v662 = vld [vmem:[%s526 + $0x324] sm:%s519]
                  %663 = vst [vmem:[%s527 + $0x10c] sm:%s519] %v662
                  %v664 = vld [vmem:[%s526 + $0x330] sm:%s519]
                  %665 = vst [vmem:[%s527 + $0x110] sm:%s519] %v664
                  %v666 = vld [vmem:[%s526 + $0x33c] sm:%s519]
                  %667 = vst [vmem:[%s527 + $0x114] sm:%s519] %v666
                  %v668 = vld [vmem:[%s526 + $0x348] sm:%s519]
                  %669 = vst [vmem:[%s527 + $0x118] sm:%s519] %v668
                  %v670 = vld [vmem:[%s526 + $0x354] sm:%s519]
                  %671 = vst [vmem:[%s527 + $0x11c] sm:%s519] %v670
                  %v672 = vld [vmem:[%s526 + $0x360] sm:%s519]
                  %673 = vst [vmem:[%s527 + $0x120] sm:%s519] %v672
                  %v674 = vld [vmem:[%s526 + $0x36c] sm:%s519]
                  %675 = vst [vmem:[%s527 + $0x124] sm:%s519] %v674
                  %v676 = vld [vmem:[%s526 + $0x378] sm:%s519]
                  %677 = vst [vmem:[%s527 + $0x128] sm:%s519] %v676
                  %v678 = vld [vmem:[%s526 + $0x384] sm:%s519]
                  %679 = vst [vmem:[%s527 + $0x12c] sm:%s519] %v678
                  %v680 = vld [vmem:[%s526 + $0x390] sm:%s519]
                  %681 = vst [vmem:[%s527 + $0x130] sm:%s519] %v680
                  %v682 = vld [vmem:[%s526 + $0x39c] sm:%s519]
                  %683 = vst [vmem:[%s527 + $0x134] sm:%s519] %v682
                  %v684 = vld [vmem:[%s526 + $0x3a8] sm:%s519]
                  %685 = vst [vmem:[%s527 + $0x138] sm:%s519] %v684
                  %v686 = vld [vmem:[%s526 + $0x3b4] sm:%s519]
                  %687 = vst [vmem:[%s527 + $0x13c] sm:%s519] %v686
                  %v688 = vld [vmem:[%s526 + $0x3c0] sm:%s519]
                  %689 = vst [vmem:[%s527 + $0x140] sm:%s519] %v688
                  %v690 = vld [vmem:[%s526 + $0x3cc] sm:%s519]
                  %691 = vst [vmem:[%s527 + $0x144] sm:%s519] %v690
                  %v692 = vld [vmem:[%s526 + $0x3d8] sm:%s519]
                  %693 = vst [vmem:[%s527 + $0x148] sm:%s519] %v692
                  %v694 = vld [vmem:[%s526 + $0x3e4] sm:%s519]
                  %695 = vst [vmem:[%s527 + $0x14c] sm:%s519] %v694
                  %v696 = vld [vmem:[%s526 + $0x3f0] sm:%s519]
                  %697 = vst [vmem:[%s527 + $0x150] sm:%s519] %v696
                  %v698 = vld [vmem:[%s526 + $0x3fc] sm:%s519]
                  %699 = vst [vmem:[%s527 + $0x154] sm:%s519] %v698
                  %v700 = vld [vmem:[%s526 + $0x408] sm:%s519]
                  %701 = vst [vmem:[%s527 + $0x158] sm:%s519] %v700
                  %v702 = vld [vmem:[%s526 + $0x414] sm:%s519]
                  %703 = vst [vmem:[%s527 + $0x15c] sm:%s519] %v702
                  %v704 = vld [vmem:[%s526 + $0x420] sm:%s519]
                  %705 = vst [vmem:[%s527 + $0x160] sm:%s519] %v704
                  %v706 = vld [vmem:[%s526 + $0x42c] sm:%s519]
                  %707 = vst [vmem:[%s527 + $0x164] sm:%s519] %v706
                  %v708 = vld [vmem:[%s526 + $0x438] sm:%s519]
                  %709 = vst [vmem:[%s527 + $0x168] sm:%s519] %v708
                  %v710 = vld [vmem:[%s526 + $0x444] sm:%s519]
                  %711 = vst [vmem:[%s527 + $0x16c] sm:%s519] %v710
                  %v712 = vld [vmem:[%s526 + $0x450] sm:%s519]
                  %713 = vst [vmem:[%s527 + $0x170] sm:%s519] %v712
                  %v714 = vld [vmem:[%s526 + $0x45c] sm:%s519]
                  %715 = vst [vmem:[%s527 + $0x174] sm:%s519] %v714
                  %v716 = vld [vmem:[%s526 + $0x468] sm:%s519]
                  %717 = vst [vmem:[%s527 + $0x178] sm:%s519] %v716
                  %v718 = vld [vmem:[%s526 + $0x474] sm:%s519]
                  %719 = vst [vmem:[%s527 + $0x17c] sm:%s519] %v718
                  %v720 = vld [vmem:[%s526 + $0x480] sm:%s519]
                  %721 = vst [vmem:[%s527 + $0x180] sm:%s519] %v720
                  %v722 = vld [vmem:[%s526 + $0x48c] sm:%s519]
                  %723 = vst [vmem:[%s527 + $0x184] sm:%s519] %v722
                  %v724 = vld [vmem:[%s526 + $0x498] sm:%s519]
                  %725 = vst [vmem:[%s527 + $0x188] sm:%s519] %v724
                  %v726 = vld [vmem:[%s526 + $0x4a4] sm:%s519]
                  %727 = vst [vmem:[%s527 + $0x18c] sm:%s519] %v726
                  %v728 = vld [vmem:[%s526 + $0x4b0] sm:%s519]
                  %729 = vst [vmem:[%s527 + $0x190] sm:%s519] %v728
                  %v730 = vld [vmem:[%s526 + $0x4bc] sm:%s519]
                  %731 = vst [vmem:[%s527 + $0x194] sm:%s519] %v730
                  %v732 = vld [vmem:[%s526 + $0x4c8] sm:%s519]
                  %733 = vst [vmem:[%s527 + $0x198] sm:%s519] %v732
                  %v734 = vld [vmem:[%s526 + $0x4d4] sm:%s519]
                  %735 = vst [vmem:[%s527 + $0x19c] sm:%s519] %v734
                  %v736 = vld [vmem:[%s526 + $0x4e0] sm:%s519]
                  %737 = vst [vmem:[%s527 + $0x1a0] sm:%s519] %v736
                  %v738 = vld [vmem:[%s526 + $0x4ec] sm:%s519]
                  %739 = vst [vmem:[%s527 + $0x1a4] sm:%s519] %v738
                  %v740 = vld [vmem:[%s526 + $0x4f8] sm:%s519]
                  %741 = vst [vmem:[%s527 + $0x1a8] sm:%s519] %v740
                  %v742 = vld [vmem:[%s526 + $0x504] sm:%s519]
                  %743 = vst [vmem:[%s527 + $0x1ac] sm:%s519] %v742
                  %v744 = vld [vmem:[%s526 + $0x510] sm:%s519]
                  %745 = vst [vmem:[%s527 + $0x1b0] sm:%s519] %v744
                  %v746 = vld [vmem:[%s526 + $0x51c] sm:%s519]
                  %747 = vst [vmem:[%s527 + $0x1b4] sm:%s519] %v746
                  %v748 = vld [vmem:[%s526 + $0x528] sm:%s519]
                  %749 = vst [vmem:[%s527 + $0x1b8] sm:%s519] %v748
                  %v750 = vld [vmem:[%s526 + $0x534] sm:%s519]
                  %751 = vst [vmem:[%s527 + $0x1bc] sm:%s519] %v750
                  %v752 = vld [vmem:[%s526 + $0x540] sm:%s519]
                  %753 = vst [vmem:[%s527 + $0x1c0] sm:%s519] %v752
                  %v754 = vld [vmem:[%s526 + $0x54c] sm:%s519]
                  %755 = vst [vmem:[%s527 + $0x1c4] sm:%s519] %v754
                  %v756 = vld [vmem:[%s526 + $0x558] sm:%s519]
                  %757 = vst [vmem:[%s527 + $0x1c8] sm:%s519] %v756
                  %v758 = vld [vmem:[%s526 + $0x564] sm:%s519]
                  %759 = vst [vmem:[%s527 + $0x1cc] sm:%s519] %v758
                  %v760 = vld [vmem:[%s526 + $0x570] sm:%s519]
                  %761 = vst [vmem:[%s527 + $0x1d0] sm:%s519] %v760
                  %v762 = vld [vmem:[%s526 + $0x57c] sm:%s519]
                  %763 = vst [vmem:[%s527 + $0x1d4] sm:%s519] %v762
                  %v764 = vld [vmem:[%s526 + $0x588] sm:%s519]
                  %765 = vst [vmem:[%s527 + $0x1d8] sm:%s519] %v764
                  %v766 = vld [vmem:[%s526 + $0x594] sm:%s519]
                  %767 = vst [vmem:[%s527 + $0x1dc] sm:%s519] %v766
                  %v768 = vld [vmem:[%s526 + $0x5a0] sm:%s519]
                  %769 = vst [vmem:[%s527 + $0x1e0] sm:%s519] %v768
                  %v770 = vld [vmem:[%s526 + $0x5ac] sm:%s519]
                  %771 = vst [vmem:[%s527 + $0x1e4] sm:%s519] %v770
                  %v772 = vld [vmem:[%s526 + $0x5b8] sm:%s519]
                  %773 = vst [vmem:[%s527 + $0x1e8] sm:%s519] %v772
                  %v774 = vld [vmem:[%s526 + $0x5c4] sm:%s519]
                  %775 = vst [vmem:[%s527 + $0x1ec] sm:%s519] %v774
                  %v776 = vld [vmem:[%s526 + $0x5d0] sm:%s519]
                  %777 = vst [vmem:[%s527 + $0x1f0] sm:%s519] %v776
                  %v778 = vld [vmem:[%s526 + $0x5dc] sm:%s519]
                  %779 = vst [vmem:[%s527 + $0x1f4] sm:%s519] %v778
                  %v780 = vld [vmem:[%s526 + $0x5e8] sm:%s519]
                  %781 = vst [vmem:[%s527 + $0x1f8] sm:%s519] %v780
                  %v782 = vld [vmem:[%s526 + $0x5f4] sm:%s519]
                  %783 = vst [vmem:[%s527 + $0x1fc] sm:%s519] %v782
                  %v784 = vld [vmem:[%s526 + $0x600] sm:%s519]
                  %785 = vst [vmem:[%s527 + $0x200] sm:%s519] %v784
                  %v786 = vld [vmem:[%s526 + $0x60c] sm:%s519]
                  %787 = vst [vmem:[%s527 + $0x204] sm:%s519] %v786
                  %v788 = vld [vmem:[%s526 + $0x618] sm:%s519]
                  %789 = vst [vmem:[%s527 + $0x208] sm:%s519] %v788
                  %v790 = vld [vmem:[%s526 + $0x624] sm:%s519]
                  %791 = vst [vmem:[%s527 + $0x20c] sm:%s519] %v790
                  %v792 = vld [vmem:[%s526 + $0x630] sm:%s519]
                  %793 = vst [vmem:[%s527 + $0x210] sm:%s519] %v792
                  %v794 = vld [vmem:[%s526 + $0x63c] sm:%s519]
                  %795 = vst [vmem:[%s527 + $0x214] sm:%s519] %v794
                  %v796 = vld [vmem:[%s526 + $0x648] sm:%s519]
                  %797 = vst [vmem:[%s527 + $0x218] sm:%s519] %v796
                  %v798 = vld [vmem:[%s526 + $0x654] sm:%s519]
                  %799 = vst [vmem:[%s527 + $0x21c] sm:%s519] %v798
                  %v800 = vld [vmem:[%s526 + $0x660] sm:%s519]
                  %801 = vst [vmem:[%s527 + $0x220] sm:%s519] %v800
                  %v802 = vld [vmem:[%s526 + $0x66c] sm:%s519]
                  %803 = vst [vmem:[%s527 + $0x224] sm:%s519] %v802
                  %v804 = vld [vmem:[%s526 + $0x678] sm:%s519]
                  %805 = vst [vmem:[%s527 + $0x228] sm:%s519] %v804
                  %v806 = vld [vmem:[%s526 + $0x684] sm:%s519]
                  %807 = vst [vmem:[%s527 + $0x22c] sm:%s519] %v806
                  %v808 = vld [vmem:[%s526 + $0x690] sm:%s519]
                  %809 = vst [vmem:[%s527 + $0x230] sm:%s519] %v808
                  %v810 = vld [vmem:[%s526 + $0x69c] sm:%s519]
                  %811 = vst [vmem:[%s527 + $0x234] sm:%s519] %v810
                  %v812 = vld [vmem:[%s526 + $0x6a8] sm:%s519]
                  %813 = vst [vmem:[%s527 + $0x238] sm:%s519] %v812
                  %v814 = vld [vmem:[%s526 + $0x6b4] sm:%s519]
                  %815 = vst [vmem:[%s527 + $0x23c] sm:%s519] %v814
                  %v816 = vld [vmem:[%s526 + $0x6c0] sm:%s519]
                  %817 = vst [vmem:[%s527 + $0x240] sm:%s519] %v816
                  %v818 = vld [vmem:[%s526 + $0x6cc] sm:%s519]
                  %819 = vst [vmem:[%s527 + $0x244] sm:%s519] %v818
                  %v820 = vld [vmem:[%s526 + $0x6d8] sm:%s519]
                  %821 = vst [vmem:[%s527 + $0x248] sm:%s519] %v820
                  %v822 = vld [vmem:[%s526 + $0x6e4] sm:%s519]
                  %823 = vst [vmem:[%s527 + $0x24c] sm:%s519] %v822
                  %v824 = vld [vmem:[%s526 + $0x6f0] sm:%s519]
                  %825 = vst [vmem:[%s527 + $0x250] sm:%s519] %v824
                  %v826 = vld [vmem:[%s526 + $0x6fc] sm:%s519]
                  %827 = vst [vmem:[%s527 + $0x254] sm:%s519] %v826
                  %v828 = vld [vmem:[%s526 + $0x708] sm:%s519]
                  %829 = vst [vmem:[%s527 + $0x258] sm:%s519] %v828
                  %v830 = vld [vmem:[%s526 + $0x714] sm:%s519]
                  %831 = vst [vmem:[%s527 + $0x25c] sm:%s519] %v830
                  %v832 = vld [vmem:[%s526 + $0x720] sm:%s519]
                  %833 = vst [vmem:[%s527 + $0x260] sm:%s519] %v832
                  %v834 = vld [vmem:[%s526 + $0x72c] sm:%s519]
                  %835 = vst [vmem:[%s527 + $0x264] sm:%s519] %v834
                  %v836 = vld [vmem:[%s526 + $0x738] sm:%s519]
                  %837 = vst [vmem:[%s527 + $0x268] sm:%s519] %v836
                  %v838 = vld [vmem:[%s526 + $0x744] sm:%s519]
                  %839 = vst [vmem:[%s527 + $0x26c] sm:%s519] %v838
                  %v840 = vld [vmem:[%s526 + $0x750] sm:%s519]
                  %841 = vst [vmem:[%s527 + $0x270] sm:%s519] %v840
                  %v842 = vld [vmem:[%s526 + $0x75c] sm:%s519]
                  %843 = vst [vmem:[%s527 + $0x274] sm:%s519] %v842
                  %v844 = vld [vmem:[%s526 + $0x768] sm:%s519]
                  %845 = vst [vmem:[%s527 + $0x278] sm:%s519] %v844
                  %v846 = vld [vmem:[%s526 + $0x774] sm:%s519]
                  %847 = vst [vmem:[%s527 + $0x27c] sm:%s519] %v846
                  %v848 = vld [vmem:[%s526 + $0x780] sm:%s519]
                  %849 = vst [vmem:[%s527 + $0x280] sm:%s519] %v848
                  %v850 = vld [vmem:[%s526 + $0x78c] sm:%s519]
                  %851 = vst [vmem:[%s527 + $0x284] sm:%s519] %v850
                  %v852 = vld [vmem:[%s526 + $0x798] sm:%s519]
                  %853 = vst [vmem:[%s527 + $0x288] sm:%s519] %v852
                  %v854 = vld [vmem:[%s526 + $0x7a4] sm:%s519]
                  %855 = vst [vmem:[%s527 + $0x28c] sm:%s519] %v854
                  %v856 = vld [vmem:[%s526 + $0x7b0] sm:%s519]
                  %857 = vst [vmem:[%s527 + $0x290] sm:%s519] %v856
                  %v858 = vld [vmem:[%s526 + $0x7bc] sm:%s519]
                  %859 = vst [vmem:[%s527 + $0x294] sm:%s519] %v858
                  %v860 = vld [vmem:[%s526 + $0x7c8] sm:%s519]
                  %861 = vst [vmem:[%s527 + $0x298] sm:%s519] %v860
                  %v862 = vld [vmem:[%s526 + $0x7d4] sm:%s519]
                  %863 = vst [vmem:[%s527 + $0x29c] sm:%s519] %v862
                  %v864 = vld [vmem:[%s526 + $0x7e0] sm:%s519]
                  %865 = vst [vmem:[%s527 + $0x2a0] sm:%s519] %v864
                  %v866 = vld [vmem:[%s526 + $0x7ec] sm:%s519]
                  %867 = vst [vmem:[%s527 + $0x2a4] sm:%s519] %v866
                  %v868 = vld [vmem:[%s526 + $0x7f8] sm:%s519]
                  %869 = vst [vmem:[%s527 + $0x2a8] sm:%s519] %v868
                  %v870 = vld [vmem:[%s526 + $0x804] sm:%s519]
                  %871 = vst [vmem:[%s527 + $0x2ac] sm:%s519] %v870
                  %v872 = vld [vmem:[%s526 + $0x810] sm:%s519]
                  %873 = vst [vmem:[%s527 + $0x2b0] sm:%s519] %v872
                  %v874 = vld [vmem:[%s526 + $0x81c] sm:%s519]
                  %875 = vst [vmem:[%s527 + $0x2b4] sm:%s519] %v874
                  %v876 = vld [vmem:[%s526 + $0x828] sm:%s519]
                  %877 = vst [vmem:[%s527 + $0x2b8] sm:%s519] %v876
                  %v878 = vld [vmem:[%s526 + $0x834] sm:%s519]
                  %879 = vst [vmem:[%s527 + $0x2bc] sm:%s519] %v878
                  %v880 = vld [vmem:[%s526 + $0x840] sm:%s519]
                  %881 = vst [vmem:[%s527 + $0x2c0] sm:%s519] %v880
                  %v882 = vld [vmem:[%s526 + $0x84c] sm:%s519]
                  %883 = vst [vmem:[%s527 + $0x2c4] sm:%s519] %v882
                  %v884 = vld [vmem:[%s526 + $0x858] sm:%s519]
                  %885 = vst [vmem:[%s527 + $0x2c8] sm:%s519] %v884
                  %v886 = vld [vmem:[%s526 + $0x864] sm:%s519]
                  %887 = vst [vmem:[%s527 + $0x2cc] sm:%s519] %v886
                  %v888 = vld [vmem:[%s526 + $0x870] sm:%s519]
                  %889 = vst [vmem:[%s527 + $0x2d0] sm:%s519] %v888
                  %v890 = vld [vmem:[%s526 + $0x87c] sm:%s519]
                  %891 = vst [vmem:[%s527 + $0x2d4] sm:%s519] %v890
                  %v892 = vld [vmem:[%s526 + $0x888] sm:%s519]
                  %893 = vst [vmem:[%s527 + $0x2d8] sm:%s519] %v892
                  %v894 = vld [vmem:[%s526 + $0x894] sm:%s519]
                  %895 = vst [vmem:[%s527 + $0x2dc] sm:%s519] %v894
                  %v896 = vld [vmem:[%s526 + $0x8a0] sm:%s519]
                  %897 = vst [vmem:[%s527 + $0x2e0] sm:%s519] %v896
                  %v898 = vld [vmem:[%s526 + $0x8ac] sm:%s519]
                  %899 = vst [vmem:[%s527 + $0x2e4] sm:%s519] %v898
                  %v900 = vld [vmem:[%s526 + $0x8b8] sm:%s519]
                  %901 = vst [vmem:[%s527 + $0x2e8] sm:%s519] %v900
                  %v902 = vld [vmem:[%s526 + $0x8c4] sm:%s519]
                  %903 = vst [vmem:[%s527 + $0x2ec] sm:%s519] %v902
                  %v904 = vld [vmem:[%s526 + $0x8d0] sm:%s519]
                  %905 = vst [vmem:[%s527 + $0x2f0] sm:%s519] %v904
                  %v906 = vld [vmem:[%s526 + $0x8dc] sm:%s519]
                  %907 = vst [vmem:[%s527 + $0x2f4] sm:%s519] %v906
                $region59: #{model_forward.4} parent=46 // loop_footer
                  %s525 = sadd.s32 1, %s521
                $region60: #{model_forward.4} parent=46 // loop_footer_branch
                  %520 = sbr.rel target = $region56
                $region61: #{model_forward.4} parent=46 // loop_exit
                  _
              $region47: #{model_forward.4} parent=31 // pred_fallthru
                _
            $region32: #{model_forward.4} parent=27 // pred_fallthru
              _
            // Predicated region
            $region33: #{model_forward.4} parent=27 // pred_check
              _
            $region34: #{model_forward.4} parent=27 // pred_check_branch
              %117 = sbr.rel (0) target = $region36
            $region35: #{model_forward.4} parent=27 // pred_region
              %s119 = ssub.s32 16, 1
              loop: start=0, step=1, limit=1
              $region37: #{model_forward.4} parent=35 // loop_pre_header
                _
              $region38: #{model_forward.4} parent=35 // loop_header
                %s121 = sphi 0, %s125
                %p122 = scmp.ge.s32.totalorder %s121, 1
                %s126 = sphi %s111, %s111
                %s127 = sphi %s109, %s109
              $region39: #{model_forward.4} parent=35 // loop_header_branch
                %124 = sbr.rel (%p122) target = $region43
              $region40: #{model_forward.4} parent=35 // loop_body
                %v128 = vld [vmem:[%s126] sm:%s119]
                %129 = vst [vmem:[%s127] sm:%s119] %v128
                %v130 = vld [vmem:[%s126 + $0xc] sm:%s119]
                %131 = vst [vmem:[%s127 + $0x4] sm:%s119] %v130
                %v132 = vld [vmem:[%s126 + $0x18] sm:%s119]
                %133 = vst [vmem:[%s127 + $0x8] sm:%s119] %v132
                %v134 = vld [vmem:[%s126 + $0x24] sm:%s119]
                %135 = vst [vmem:[%s127 + $0xc] sm:%s119] %v134
                %v136 = vld [vmem:[%s126 + $0x30] sm:%s119]
                %137 = vst [vmem:[%s127 + $0x10] sm:%s119] %v136
                %v138 = vld [vmem:[%s126 + $0x3c] sm:%s119]
                %139 = vst [vmem:[%s127 + $0x14] sm:%s119] %v138
                %v140 = vld [vmem:[%s126 + $0x48] sm:%s119]
                %141 = vst [vmem:[%s127 + $0x18] sm:%s119] %v140
                %v142 = vld [vmem:[%s126 + $0x54] sm:%s119]
                %143 = vst [vmem:[%s127 + $0x1c] sm:%s119] %v142
                %v144 = vld [vmem:[%s126 + $0x60] sm:%s119]
                %145 = vst [vmem:[%s127 + $0x20] sm:%s119] %v144
                %v146 = vld [vmem:[%s126 + $0x6c] sm:%s119]
                %147 = vst [vmem:[%s127 + $0x24] sm:%s119] %v146
                %v148 = vld [vmem:[%s126 + $0x78] sm:%s119]
                %149 = vst [vmem:[%s127 + $0x28] sm:%s119] %v148
                %v150 = vld [vmem:[%s126 + $0x84] sm:%s119]
                %151 = vst [vmem:[%s127 + $0x2c] sm:%s119] %v150
                %v152 = vld [vmem:[%s126 + $0x90] sm:%s119]
                %153 = vst [vmem:[%s127 + $0x30] sm:%s119] %v152
                %v154 = vld [vmem:[%s126 + $0x9c] sm:%s119]
                %155 = vst [vmem:[%s127 + $0x34] sm:%s119] %v154
                %v156 = vld [vmem:[%s126 + $0xa8] sm:%s119]
                %157 = vst [vmem:[%s127 + $0x38] sm:%s119] %v156
                %v158 = vld [vmem:[%s126 + $0xb4] sm:%s119]
                %159 = vst [vmem:[%s127 + $0x3c] sm:%s119] %v158
                %v160 = vld [vmem:[%s126 + $0xc0] sm:%s119]
                %161 = vst [vmem:[%s127 + $0x40] sm:%s119] %v160
                %v162 = vld [vmem:[%s126 + $0xcc] sm:%s119]
                %163 = vst [vmem:[%s127 + $0x44] sm:%s119] %v162
                %v164 = vld [vmem:[%s126 + $0xd8] sm:%s119]
                %165 = vst [vmem:[%s127 + $0x48] sm:%s119] %v164
                %v166 = vld [vmem:[%s126 + $0xe4] sm:%s119]
                %167 = vst [vmem:[%s127 + $0x4c] sm:%s119] %v166
                %v168 = vld [vmem:[%s126 + $0xf0] sm:%s119]
                %169 = vst [vmem:[%s127 + $0x50] sm:%s119] %v168
                %v170 = vld [vmem:[%s126 + $0xfc] sm:%s119]
                %171 = vst [vmem:[%s127 + $0x54] sm:%s119] %v170
                %v172 = vld [vmem:[%s126 + $0x108] sm:%s119]
                %173 = vst [vmem:[%s127 + $0x58] sm:%s119] %v172
                %v174 = vld [vmem:[%s126 + $0x114] sm:%s119]
                %175 = vst [vmem:[%s127 + $0x5c] sm:%s119] %v174
                %v176 = vld [vmem:[%s126 + $0x120] sm:%s119]
                %177 = vst [vmem:[%s127 + $0x60] sm:%s119] %v176
                %v178 = vld [vmem:[%s126 + $0x12c] sm:%s119]
                %179 = vst [vmem:[%s127 + $0x64] sm:%s119] %v178
                %v180 = vld [vmem:[%s126 + $0x138] sm:%s119]
                %181 = vst [vmem:[%s127 + $0x68] sm:%s119] %v180
                %v182 = vld [vmem:[%s126 + $0x144] sm:%s119]
                %183 = vst [vmem:[%s127 + $0x6c] sm:%s119] %v182
                %v184 = vld [vmem:[%s126 + $0x150] sm:%s119]
                %185 = vst [vmem:[%s127 + $0x70] sm:%s119] %v184
                %v186 = vld [vmem:[%s126 + $0x15c] sm:%s119]
                %187 = vst [vmem:[%s127 + $0x74] sm:%s119] %v186
                %v188 = vld [vmem:[%s126 + $0x168] sm:%s119]
                %189 = vst [vmem:[%s127 + $0x78] sm:%s119] %v188
                %v190 = vld [vmem:[%s126 + $0x174] sm:%s119]
                %191 = vst [vmem:[%s127 + $0x7c] sm:%s119] %v190
                %v192 = vld [vmem:[%s126 + $0x180] sm:%s119]
                %193 = vst [vmem:[%s127 + $0x80] sm:%s119] %v192
                %v194 = vld [vmem:[%s126 + $0x18c] sm:%s119]
                %195 = vst [vmem:[%s127 + $0x84] sm:%s119] %v194
                %v196 = vld [vmem:[%s126 + $0x198] sm:%s119]
                %197 = vst [vmem:[%s127 + $0x88] sm:%s119] %v196
                %v198 = vld [vmem:[%s126 + $0x1a4] sm:%s119]
                %199 = vst [vmem:[%s127 + $0x8c] sm:%s119] %v198
                %v200 = vld [vmem:[%s126 + $0x1b0] sm:%s119]
                %201 = vst [vmem:[%s127 + $0x90] sm:%s119] %v200
                %v202 = vld [vmem:[%s126 + $0x1bc] sm:%s119]
                %203 = vst [vmem:[%s127 + $0x94] sm:%s119] %v202
                %v204 = vld [vmem:[%s126 + $0x1c8] sm:%s119]
                %205 = vst [vmem:[%s127 + $0x98] sm:%s119] %v204
                %v206 = vld [vmem:[%s126 + $0x1d4] sm:%s119]
                %207 = vst [vmem:[%s127 + $0x9c] sm:%s119] %v206
                %v208 = vld [vmem:[%s126 + $0x1e0] sm:%s119]
                %209 = vst [vmem:[%s127 + $0xa0] sm:%s119] %v208
                %v210 = vld [vmem:[%s126 + $0x1ec] sm:%s119]
                %211 = vst [vmem:[%s127 + $0xa4] sm:%s119] %v210
                %v212 = vld [vmem:[%s126 + $0x1f8] sm:%s119]
                %213 = vst [vmem:[%s127 + $0xa8] sm:%s119] %v212
                %v214 = vld [vmem:[%s126 + $0x204] sm:%s119]
                %215 = vst [vmem:[%s127 + $0xac] sm:%s119] %v214
                %v216 = vld [vmem:[%s126 + $0x210] sm:%s119]
                %217 = vst [vmem:[%s127 + $0xb0] sm:%s119] %v216
                %v218 = vld [vmem:[%s126 + $0x21c] sm:%s119]
                %219 = vst [vmem:[%s127 + $0xb4] sm:%s119] %v218
                %v220 = vld [vmem:[%s126 + $0x228] sm:%s119]
                %221 = vst [vmem:[%s127 + $0xb8] sm:%s119] %v220
                %v222 = vld [vmem:[%s126 + $0x234] sm:%s119]
                %223 = vst [vmem:[%s127 + $0xbc] sm:%s119] %v222
                %v224 = vld [vmem:[%s126 + $0x240] sm:%s119]
                %225 = vst [vmem:[%s127 + $0xc0] sm:%s119] %v224
                %v226 = vld [vmem:[%s126 + $0x24c] sm:%s119]
                %227 = vst [vmem:[%s127 + $0xc4] sm:%s119] %v226
                %v228 = vld [vmem:[%s126 + $0x258] sm:%s119]
                %229 = vst [vmem:[%s127 + $0xc8] sm:%s119] %v228
                %v230 = vld [vmem:[%s126 + $0x264] sm:%s119]
                %231 = vst [vmem:[%s127 + $0xcc] sm:%s119] %v230
                %v232 = vld [vmem:[%s126 + $0x270] sm:%s119]
                %233 = vst [vmem:[%s127 + $0xd0] sm:%s119] %v232
                %v234 = vld [vmem:[%s126 + $0x27c] sm:%s119]
                %235 = vst [vmem:[%s127 + $0xd4] sm:%s119] %v234
                %v236 = vld [vmem:[%s126 + $0x288] sm:%s119]
                %237 = vst [vmem:[%s127 + $0xd8] sm:%s119] %v236
                %v238 = vld [vmem:[%s126 + $0x294] sm:%s119]
                %239 = vst [vmem:[%s127 + $0xdc] sm:%s119] %v238
                %v240 = vld [vmem:[%s126 + $0x2a0] sm:%s119]
                %241 = vst [vmem:[%s127 + $0xe0] sm:%s119] %v240
                %v242 = vld [vmem:[%s126 + $0x2ac] sm:%s119]
                %243 = vst [vmem:[%s127 + $0xe4] sm:%s119] %v242
                %v244 = vld [vmem:[%s126 + $0x2b8] sm:%s119]
                %245 = vst [vmem:[%s127 + $0xe8] sm:%s119] %v244
                %v246 = vld [vmem:[%s126 + $0x2c4] sm:%s119]
                %247 = vst [vmem:[%s127 + $0xec] sm:%s119] %v246
                %v248 = vld [vmem:[%s126 + $0x2d0] sm:%s119]
                %249 = vst [vmem:[%s127 + $0xf0] sm:%s119] %v248
                %v250 = vld [vmem:[%s126 + $0x2dc] sm:%s119]
                %251 = vst [vmem:[%s127 + $0xf4] sm:%s119] %v250
                %v252 = vld [vmem:[%s126 + $0x2e8] sm:%s119]
                %253 = vst [vmem:[%s127 + $0xf8] sm:%s119] %v252
                %v254 = vld [vmem:[%s126 + $0x2f4] sm:%s119]
                %255 = vst [vmem:[%s127 + $0xfc] sm:%s119] %v254
                %v256 = vld [vmem:[%s126 + $0x300] sm:%s119]
                %257 = vst [vmem:[%s127 + $0x100] sm:%s119] %v256
                %v258 = vld [vmem:[%s126 + $0x30c] sm:%s119]
                %259 = vst [vmem:[%s127 + $0x104] sm:%s119] %v258
                %v260 = vld [vmem:[%s126 + $0x318] sm:%s119]
                %261 = vst [vmem:[%s127 + $0x108] sm:%s119] %v260
                %v262 = vld [vmem:[%s126 + $0x324] sm:%s119]
                %263 = vst [vmem:[%s127 + $0x10c] sm:%s119] %v262
                %v264 = vld [vmem:[%s126 + $0x330] sm:%s119]
                %265 = vst [vmem:[%s127 + $0x110] sm:%s119] %v264
                %v266 = vld [vmem:[%s126 + $0x33c] sm:%s119]
                %267 = vst [vmem:[%s127 + $0x114] sm:%s119] %v266
                %v268 = vld [vmem:[%s126 + $0x348] sm:%s119]
                %269 = vst [vmem:[%s127 + $0x118] sm:%s119] %v268
                %v270 = vld [vmem:[%s126 + $0x354] sm:%s119]
                %271 = vst [vmem:[%s127 + $0x11c] sm:%s119] %v270
                %v272 = vld [vmem:[%s126 + $0x360] sm:%s119]
                %273 = vst [vmem:[%s127 + $0x120] sm:%s119] %v272
                %v274 = vld [vmem:[%s126 + $0x36c] sm:%s119]
                %275 = vst [vmem:[%s127 + $0x124] sm:%s119] %v274
                %v276 = vld [vmem:[%s126 + $0x378] sm:%s119]
                %277 = vst [vmem:[%s127 + $0x128] sm:%s119] %v276
                %v278 = vld [vmem:[%s126 + $0x384] sm:%s119]
                %279 = vst [vmem:[%s127 + $0x12c] sm:%s119] %v278
                %v280 = vld [vmem:[%s126 + $0x390] sm:%s119]
                %281 = vst [vmem:[%s127 + $0x130] sm:%s119] %v280
                %v282 = vld [vmem:[%s126 + $0x39c] sm:%s119]
                %283 = vst [vmem:[%s127 + $0x134] sm:%s119] %v282
                %v284 = vld [vmem:[%s126 + $0x3a8] sm:%s119]
                %285 = vst [vmem:[%s127 + $0x138] sm:%s119] %v284
                %v286 = vld [vmem:[%s126 + $0x3b4] sm:%s119]
                %287 = vst [vmem:[%s127 + $0x13c] sm:%s119] %v286
                %v288 = vld [vmem:[%s126 + $0x3c0] sm:%s119]
                %289 = vst [vmem:[%s127 + $0x140] sm:%s119] %v288
                %v290 = vld [vmem:[%s126 + $0x3cc] sm:%s119]
                %291 = vst [vmem:[%s127 + $0x144] sm:%s119] %v290
                %v292 = vld [vmem:[%s126 + $0x3d8] sm:%s119]
                %293 = vst [vmem:[%s127 + $0x148] sm:%s119] %v292
                %v294 = vld [vmem:[%s126 + $0x3e4] sm:%s119]
                %295 = vst [vmem:[%s127 + $0x14c] sm:%s119] %v294
                %v296 = vld [vmem:[%s126 + $0x3f0] sm:%s119]
                %297 = vst [vmem:[%s127 + $0x150] sm:%s119] %v296
                %v298 = vld [vmem:[%s126 + $0x3fc] sm:%s119]
                %299 = vst [vmem:[%s127 + $0x154] sm:%s119] %v298
                %v300 = vld [vmem:[%s126 + $0x408] sm:%s119]
                %301 = vst [vmem:[%s127 + $0x158] sm:%s119] %v300
                %v302 = vld [vmem:[%s126 + $0x414] sm:%s119]
                %303 = vst [vmem:[%s127 + $0x15c] sm:%s119] %v302
                %v304 = vld [vmem:[%s126 + $0x420] sm:%s119]
                %305 = vst [vmem:[%s127 + $0x160] sm:%s119] %v304
                %v306 = vld [vmem:[%s126 + $0x42c] sm:%s119]
                %307 = vst [vmem:[%s127 + $0x164] sm:%s119] %v306
                %v308 = vld [vmem:[%s126 + $0x438] sm:%s119]
                %309 = vst [vmem:[%s127 + $0x168] sm:%s119] %v308
                %v310 = vld [vmem:[%s126 + $0x444] sm:%s119]
                %311 = vst [vmem:[%s127 + $0x16c] sm:%s119] %v310
                %v312 = vld [vmem:[%s126 + $0x450] sm:%s119]
                %313 = vst [vmem:[%s127 + $0x170] sm:%s119] %v312
                %v314 = vld [vmem:[%s126 + $0x45c] sm:%s119]
                %315 = vst [vmem:[%s127 + $0x174] sm:%s119] %v314
                %v316 = vld [vmem:[%s126 + $0x468] sm:%s119]
                %317 = vst [vmem:[%s127 + $0x178] sm:%s119] %v316
                %v318 = vld [vmem:[%s126 + $0x474] sm:%s119]
                %319 = vst [vmem:[%s127 + $0x17c] sm:%s119] %v318
                %v320 = vld [vmem:[%s126 + $0x480] sm:%s119]
                %321 = vst [vmem:[%s127 + $0x180] sm:%s119] %v320
                %v322 = vld [vmem:[%s126 + $0x48c] sm:%s119]
                %323 = vst [vmem:[%s127 + $0x184] sm:%s119] %v322
                %v324 = vld [vmem:[%s126 + $0x498] sm:%s119]
                %325 = vst [vmem:[%s127 + $0x188] sm:%s119] %v324
                %v326 = vld [vmem:[%s126 + $0x4a4] sm:%s119]
                %327 = vst [vmem:[%s127 + $0x18c] sm:%s119] %v326
                %v328 = vld [vmem:[%s126 + $0x4b0] sm:%s119]
                %329 = vst [vmem:[%s127 + $0x190] sm:%s119] %v328
                %v330 = vld [vmem:[%s126 + $0x4bc] sm:%s119]
                %331 = vst [vmem:[%s127 + $0x194] sm:%s119] %v330
                %v332 = vld [vmem:[%s126 + $0x4c8] sm:%s119]
                %333 = vst [vmem:[%s127 + $0x198] sm:%s119] %v332
                %v334 = vld [vmem:[%s126 + $0x4d4] sm:%s119]
                %335 = vst [vmem:[%s127 + $0x19c] sm:%s119] %v334
                %v336 = vld [vmem:[%s126 + $0x4e0] sm:%s119]
                %337 = vst [vmem:[%s127 + $0x1a0] sm:%s119] %v336
                %v338 = vld [vmem:[%s126 + $0x4ec] sm:%s119]
                %339 = vst [vmem:[%s127 + $0x1a4] sm:%s119] %v338
                %v340 = vld [vmem:[%s126 + $0x4f8] sm:%s119]
                %341 = vst [vmem:[%s127 + $0x1a8] sm:%s119] %v340
                %v342 = vld [vmem:[%s126 + $0x504] sm:%s119]
                %343 = vst [vmem:[%s127 + $0x1ac] sm:%s119] %v342
                %v344 = vld [vmem:[%s126 + $0x510] sm:%s119]
                %345 = vst [vmem:[%s127 + $0x1b0] sm:%s119] %v344
                %v346 = vld [vmem:[%s126 + $0x51c] sm:%s119]
                %347 = vst [vmem:[%s127 + $0x1b4] sm:%s119] %v346
                %v348 = vld [vmem:[%s126 + $0x528] sm:%s119]
                %349 = vst [vmem:[%s127 + $0x1b8] sm:%s119] %v348
                %v350 = vld [vmem:[%s126 + $0x534] sm:%s119]
                %351 = vst [vmem:[%s127 + $0x1bc] sm:%s119] %v350
                %v352 = vld [vmem:[%s126 + $0x540] sm:%s119]
                %353 = vst [vmem:[%s127 + $0x1c0] sm:%s119] %v352
                %v354 = vld [vmem:[%s126 + $0x54c] sm:%s119]
                %355 = vst [vmem:[%s127 + $0x1c4] sm:%s119] %v354
                %v356 = vld [vmem:[%s126 + $0x558] sm:%s119]
                %357 = vst [vmem:[%s127 + $0x1c8] sm:%s119] %v356
                %v358 = vld [vmem:[%s126 + $0x564] sm:%s119]
                %359 = vst [vmem:[%s127 + $0x1cc] sm:%s119] %v358
                %v360 = vld [vmem:[%s126 + $0x570] sm:%s119]
                %361 = vst [vmem:[%s127 + $0x1d0] sm:%s119] %v360
                %v362 = vld [vmem:[%s126 + $0x57c] sm:%s119]
                %363 = vst [vmem:[%s127 + $0x1d4] sm:%s119] %v362
                %v364 = vld [vmem:[%s126 + $0x588] sm:%s119]
                %365 = vst [vmem:[%s127 + $0x1d8] sm:%s119] %v364
                %v366 = vld [vmem:[%s126 + $0x594] sm:%s119]
                %367 = vst [vmem:[%s127 + $0x1dc] sm:%s119] %v366
                %v368 = vld [vmem:[%s126 + $0x5a0] sm:%s119]
                %369 = vst [vmem:[%s127 + $0x1e0] sm:%s119] %v368
                %v370 = vld [vmem:[%s126 + $0x5ac] sm:%s119]
                %371 = vst [vmem:[%s127 + $0x1e4] sm:%s119] %v370
                %v372 = vld [vmem:[%s126 + $0x5b8] sm:%s119]
                %373 = vst [vmem:[%s127 + $0x1e8] sm:%s119] %v372
                %v374 = vld [vmem:[%s126 + $0x5c4] sm:%s119]
                %375 = vst [vmem:[%s127 + $0x1ec] sm:%s119] %v374
                %v376 = vld [vmem:[%s126 + $0x5d0] sm:%s119]
                %377 = vst [vmem:[%s127 + $0x1f0] sm:%s119] %v376
                %v378 = vld [vmem:[%s126 + $0x5dc] sm:%s119]
                %379 = vst [vmem:[%s127 + $0x1f4] sm:%s119] %v378
                %v380 = vld [vmem:[%s126 + $0x5e8] sm:%s119]
                %381 = vst [vmem:[%s127 + $0x1f8] sm:%s119] %v380
                %v382 = vld [vmem:[%s126 + $0x5f4] sm:%s119]
                %383 = vst [vmem:[%s127 + $0x1fc] sm:%s119] %v382
                %v384 = vld [vmem:[%s126 + $0x600] sm:%s119]
                %385 = vst [vmem:[%s127 + $0x200] sm:%s119] %v384
                %v386 = vld [vmem:[%s126 + $0x60c] sm:%s119]
                %387 = vst [vmem:[%s127 + $0x204] sm:%s119] %v386
                %v388 = vld [vmem:[%s126 + $0x618] sm:%s119]
                %389 = vst [vmem:[%s127 + $0x208] sm:%s119] %v388
                %v390 = vld [vmem:[%s126 + $0x624] sm:%s119]
                %391 = vst [vmem:[%s127 + $0x20c] sm:%s119] %v390
                %v392 = vld [vmem:[%s126 + $0x630] sm:%s119]
                %393 = vst [vmem:[%s127 + $0x210] sm:%s119] %v392
                %v394 = vld [vmem:[%s126 + $0x63c] sm:%s119]
                %395 = vst [vmem:[%s127 + $0x214] sm:%s119] %v394
                %v396 = vld [vmem:[%s126 + $0x648] sm:%s119]
                %397 = vst [vmem:[%s127 + $0x218] sm:%s119] %v396
                %v398 = vld [vmem:[%s126 + $0x654] sm:%s119]
                %399 = vst [vmem:[%s127 + $0x21c] sm:%s119] %v398
                %v400 = vld [vmem:[%s126 + $0x660] sm:%s119]
                %401 = vst [vmem:[%s127 + $0x220] sm:%s119] %v400
                %v402 = vld [vmem:[%s126 + $0x66c] sm:%s119]
                %403 = vst [vmem:[%s127 + $0x224] sm:%s119] %v402
                %v404 = vld [vmem:[%s126 + $0x678] sm:%s119]
                %405 = vst [vmem:[%s127 + $0x228] sm:%s119] %v404
                %v406 = vld [vmem:[%s126 + $0x684] sm:%s119]
                %407 = vst [vmem:[%s127 + $0x22c] sm:%s119] %v406
                %v408 = vld [vmem:[%s126 + $0x690] sm:%s119]
                %409 = vst [vmem:[%s127 + $0x230] sm:%s119] %v408
                %v410 = vld [vmem:[%s126 + $0x69c] sm:%s119]
                %411 = vst [vmem:[%s127 + $0x234] sm:%s119] %v410
                %v412 = vld [vmem:[%s126 + $0x6a8] sm:%s119]
                %413 = vst [vmem:[%s127 + $0x238] sm:%s119] %v412
                %v414 = vld [vmem:[%s126 + $0x6b4] sm:%s119]
                %415 = vst [vmem:[%s127 + $0x23c] sm:%s119] %v414
                %v416 = vld [vmem:[%s126 + $0x6c0] sm:%s119]
                %417 = vst [vmem:[%s127 + $0x240] sm:%s119] %v416
                %v418 = vld [vmem:[%s126 + $0x6cc] sm:%s119]
                %419 = vst [vmem:[%s127 + $0x244] sm:%s119] %v418
                %v420 = vld [vmem:[%s126 + $0x6d8] sm:%s119]
                %421 = vst [vmem:[%s127 + $0x248] sm:%s119] %v420
                %v422 = vld [vmem:[%s126 + $0x6e4] sm:%s119]
                %423 = vst [vmem:[%s127 + $0x24c] sm:%s119] %v422
                %v424 = vld [vmem:[%s126 + $0x6f0] sm:%s119]
                %425 = vst [vmem:[%s127 + $0x250] sm:%s119] %v424
                %v426 = vld [vmem:[%s126 + $0x6fc] sm:%s119]
                %427 = vst [vmem:[%s127 + $0x254] sm:%s119] %v426
                %v428 = vld [vmem:[%s126 + $0x708] sm:%s119]
                %429 = vst [vmem:[%s127 + $0x258] sm:%s119] %v428
                %v430 = vld [vmem:[%s126 + $0x714] sm:%s119]
                %431 = vst [vmem:[%s127 + $0x25c] sm:%s119] %v430
                %v432 = vld [vmem:[%s126 + $0x720] sm:%s119]
                %433 = vst [vmem:[%s127 + $0x260] sm:%s119] %v432
                %v434 = vld [vmem:[%s126 + $0x72c] sm:%s119]
                %435 = vst [vmem:[%s127 + $0x264] sm:%s119] %v434
                %v436 = vld [vmem:[%s126 + $0x738] sm:%s119]
                %437 = vst [vmem:[%s127 + $0x268] sm:%s119] %v436
                %v438 = vld [vmem:[%s126 + $0x744] sm:%s119]
                %439 = vst [vmem:[%s127 + $0x26c] sm:%s119] %v438
                %v440 = vld [vmem:[%s126 + $0x750] sm:%s119]
                %441 = vst [vmem:[%s127 + $0x270] sm:%s119] %v440
                %v442 = vld [vmem:[%s126 + $0x75c] sm:%s119]
                %443 = vst [vmem:[%s127 + $0x274] sm:%s119] %v442
                %v444 = vld [vmem:[%s126 + $0x768] sm:%s119]
                %445 = vst [vmem:[%s127 + $0x278] sm:%s119] %v444
                %v446 = vld [vmem:[%s126 + $0x774] sm:%s119]
                %447 = vst [vmem:[%s127 + $0x27c] sm:%s119] %v446
                %v448 = vld [vmem:[%s126 + $0x780] sm:%s119]
                %449 = vst [vmem:[%s127 + $0x280] sm:%s119] %v448
                %v450 = vld [vmem:[%s126 + $0x78c] sm:%s119]
                %451 = vst [vmem:[%s127 + $0x284] sm:%s119] %v450
                %v452 = vld [vmem:[%s126 + $0x798] sm:%s119]
                %453 = vst [vmem:[%s127 + $0x288] sm:%s119] %v452
                %v454 = vld [vmem:[%s126 + $0x7a4] sm:%s119]
                %455 = vst [vmem:[%s127 + $0x28c] sm:%s119] %v454
                %v456 = vld [vmem:[%s126 + $0x7b0] sm:%s119]
                %457 = vst [vmem:[%s127 + $0x290] sm:%s119] %v456
                %v458 = vld [vmem:[%s126 + $0x7bc] sm:%s119]
                %459 = vst [vmem:[%s127 + $0x294] sm:%s119] %v458
                %v460 = vld [vmem:[%s126 + $0x7c8] sm:%s119]
                %461 = vst [vmem:[%s127 + $0x298] sm:%s119] %v460
                %v462 = vld [vmem:[%s126 + $0x7d4] sm:%s119]
                %463 = vst [vmem:[%s127 + $0x29c] sm:%s119] %v462
                %v464 = vld [vmem:[%s126 + $0x7e0] sm:%s119]
                %465 = vst [vmem:[%s127 + $0x2a0] sm:%s119] %v464
                %v466 = vld [vmem:[%s126 + $0x7ec] sm:%s119]
                %467 = vst [vmem:[%s127 + $0x2a4] sm:%s119] %v466
                %v468 = vld [vmem:[%s126 + $0x7f8] sm:%s119]
                %469 = vst [vmem:[%s127 + $0x2a8] sm:%s119] %v468
                %v470 = vld [vmem:[%s126 + $0x804] sm:%s119]
                %471 = vst [vmem:[%s127 + $0x2ac] sm:%s119] %v470
                %v472 = vld [vmem:[%s126 + $0x810] sm:%s119]
                %473 = vst [vmem:[%s127 + $0x2b0] sm:%s119] %v472
                %v474 = vld [vmem:[%s126 + $0x81c] sm:%s119]
                %475 = vst [vmem:[%s127 + $0x2b4] sm:%s119] %v474
                %v476 = vld [vmem:[%s126 + $0x828] sm:%s119]
                %477 = vst [vmem:[%s127 + $0x2b8] sm:%s119] %v476
                %v478 = vld [vmem:[%s126 + $0x834] sm:%s119]
                %479 = vst [vmem:[%s127 + $0x2bc] sm:%s119] %v478
                %v480 = vld [vmem:[%s126 + $0x840] sm:%s119]
                %481 = vst [vmem:[%s127 + $0x2c0] sm:%s119] %v480
                %v482 = vld [vmem:[%s126 + $0x84c] sm:%s119]
                %483 = vst [vmem:[%s127 + $0x2c4] sm:%s119] %v482
                %v484 = vld [vmem:[%s126 + $0x858] sm:%s119]
                %485 = vst [vmem:[%s127 + $0x2c8] sm:%s119] %v484
                %v486 = vld [vmem:[%s126 + $0x864] sm:%s119]
                %487 = vst [vmem:[%s127 + $0x2cc] sm:%s119] %v486
                %v488 = vld [vmem:[%s126 + $0x870] sm:%s119]
                %489 = vst [vmem:[%s127 + $0x2d0] sm:%s119] %v488
                %v490 = vld [vmem:[%s126 + $0x87c] sm:%s119]
                %491 = vst [vmem:[%s127 + $0x2d4] sm:%s119] %v490
                %v492 = vld [vmem:[%s126 + $0x888] sm:%s119]
                %493 = vst [vmem:[%s127 + $0x2d8] sm:%s119] %v492
                %v494 = vld [vmem:[%s126 + $0x894] sm:%s119]
                %495 = vst [vmem:[%s127 + $0x2dc] sm:%s119] %v494
                %v496 = vld [vmem:[%s126 + $0x8a0] sm:%s119]
                %497 = vst [vmem:[%s127 + $0x2e0] sm:%s119] %v496
                %v498 = vld [vmem:[%s126 + $0x8ac] sm:%s119]
                %499 = vst [vmem:[%s127 + $0x2e4] sm:%s119] %v498
                %v500 = vld [vmem:[%s126 + $0x8b8] sm:%s119]
                %501 = vst [vmem:[%s127 + $0x2e8] sm:%s119] %v500
                %v502 = vld [vmem:[%s126 + $0x8c4] sm:%s119]
                %503 = vst [vmem:[%s127 + $0x2ec] sm:%s119] %v502
                %v504 = vld [vmem:[%s126 + $0x8d0] sm:%s119]
                %505 = vst [vmem:[%s127 + $0x2f0] sm:%s119] %v504
                %v506 = vld [vmem:[%s126 + $0x8dc] sm:%s119]
                %507 = vst [vmem:[%s127 + $0x2f4] sm:%s119] %v506
              $region41: #{model_forward.4} parent=35 // loop_footer
                %s125 = sadd.s32 1, %s121
              $region42: #{model_forward.4} parent=35 // loop_footer_branch
                %120 = sbr.rel target = $region38
              $region43: #{model_forward.4} parent=35 // loop_exit
                _
            $region36: #{model_forward.4} parent=27 // pred_fallthru
              _
          $region28: #{model_forward.4} parent=23 // pred_fallthru
            _
          %908 = vnop
        $region24: #{model_forward.4} parent=19 // pred_fallthru
          _
      $region20: #{model_forward.4} parent=5 // pred_fallthru
        _
      %p909 = scmp.le.s32.totalorder 1, %s8
      %p910 = scmp.lt.s32.totalorder %s8, 4
      %p911 = pnand %p909, %p910
      %p912 = pneg %p911
      // Predicated region
      $region62: #{model_forward.4} parent=5 // pred_check
        _
      $region63: #{model_forward.4} parent=5 // pred_check_branch
        %914 = sbr.rel (%p911) target = $region65
      $region64: #{model_forward.4} parent=5 // pred_region
        %s915 = ssub.s32 %s8, 1
        %s916 = sand.u32 %s42, 1
        %s917 = sand.u32 %s42, 1
        %s918 = smul.addr %s917, 760
        %s919 = scalar_lea.vmem [#allocation2], %s918
        // Predicated region
        $region66: #{model_forward.4} parent=64 // pred_check
          %p920 = pneg %p55
        $region67: #{model_forward.4} parent=64 // pred_check_branch
          %922 = sbr.rel (%p920) target = $region69
        $region68: #{model_forward.4} parent=64 // pred_region
          _
        $region69: #{model_forward.4} parent=64 // pred_fallthru
          _
        %p923 = pneg %p29
        %p924 = pneg %p26
        %s925 = sand.u32 %s42, 1
        %s926 = sand.u32 %s42, 1
        %s927 = smul.addr %s926, 760
        %s928 = scalar_lea.vmem [#allocation2], %s927
        %p929 = pneg %p55
        %p930 = pneg %p52
        %p931 = pneg %p81
        %p932 = pneg %p78
        %p933 = scmp.lt.s32.totalorder %s13, 2
        %s934 = scalar_select %p933, %s13, 2
        %s935 = smul.addr %s934, 8
        %s936 = scalar_lea.vmem %s2, %s935
        %p937 = scmp.lt.s32.totalorder %s13, 2
        %s938 = scalar_select %p937, %s13, 2
        %s939 = smul.addr %s938, 8
        %s940 = scalar_lea.vmem %s2, %s939
        %v941 = vld [vmem:[%s919] sm:$0xf]
        %v942 = vld [vmem:[%s919 + $0x4] sm:$0xf]
        %v943 = vld [vmem:[%s919 + $0x8] sm:$0xf]
        %v944 = vld [vmem:[%s919 + $0xc] sm:$0xf]
        %v945 = vld [vmem:[%s919 + $0x10] sm:$0xf]
        %v946 = vld [vmem:[%s919 + $0x14] sm:$0xf]
        %v947 = vld [vmem:[%s919 + $0x18] sm:$0xf]
        %v948 = vld [vmem:[%s919 + $0x1c] sm:$0xf]
        %v949 = vld [vmem:[%s919 + $0x20] sm:$0xf]
        %v950 = vld [vmem:[%s919 + $0x24] sm:$0xf]
        %v951 = vld [vmem:[%s919 + $0x28] sm:$0xf]
        %v952 = vld [vmem:[%s919 + $0x2c] sm:$0xf]
        %v953 = vld [vmem:[%s919 + $0x30] sm:$0xf]
        %v954 = vld [vmem:[%s919 + $0x34] sm:$0xf]
        %v955 = vld [vmem:[%s919 + $0x38] sm:$0xf]
        %v956 = vld [vmem:[%s919 + $0x3c] sm:$0xf]
        %v957 = vld [vmem:[%s919 + $0x40] sm:$0xf]
        %v958 = vld [vmem:[%s919 + $0x44] sm:$0xf]
        %v959 = vld [vmem:[%s919 + $0x48] sm:$0xf]
        %v960 = vld [vmem:[%s919 + $0x4c] sm:$0xf]
        %v961 = vld [vmem:[%s919 + $0x50] sm:$0xf]
        %v962 = vld [vmem:[%s919 + $0x54] sm:$0xf]
        %v963 = vld [vmem:[%s919 + $0x58] sm:$0xf]
        %v964 = vld [vmem:[%s919 + $0x5c] sm:$0xf]
        %v965 = vld [vmem:[%s919 + $0x60] sm:$0xf]
        %v966 = vld [vmem:[%s919 + $0x64] sm:$0xf]
        %v967 = vld [vmem:[%s919 + $0x68] sm:$0xf]
        %v968 = vld [vmem:[%s919 + $0x6c] sm:$0xf]
        %v969 = vld [vmem:[%s919 + $0x70] sm:$0xf]
        %v970 = vld [vmem:[%s919 + $0x74] sm:$0xf]
        %v971 = vld [vmem:[%s919 + $0x78] sm:$0xf]
        %v972 = vld [vmem:[%s919 + $0x7c] sm:$0xf]
        %v973 = vld [vmem:[%s919 + $0x80] sm:$0xf]
        %v974 = vld [vmem:[%s919 + $0x84] sm:$0xf]
        %v975 = vld [vmem:[%s919 + $0x88] sm:$0xf]
        %v976 = vld [vmem:[%s919 + $0x8c] sm:$0xf]
        %v977 = vld [vmem:[%s919 + $0x90] sm:$0xf]
        %v978 = vld [vmem:[%s919 + $0x94] sm:$0xf]
        %v979 = vld [vmem:[%s919 + $0x98] sm:$0xf]
        %v980 = vld [vmem:[%s919 + $0x9c] sm:$0xf]
        %v981 = vld [vmem:[%s919 + $0xa0] sm:$0xf]
        %v982 = vld [vmem:[%s919 + $0xa4] sm:$0xf]
        %v983 = vld [vmem:[%s919 + $0xa8] sm:$0xf]
        %v984 = vld [vmem:[%s919 + $0xac] sm:$0xf]
        %v985 = vld [vmem:[%s919 + $0xb0] sm:$0xf]
        %v986 = vld [vmem:[%s919 + $0xb4] sm:$0xf]
        %v987 = vld [vmem:[%s919 + $0xb8] sm:$0xf]
        %v988 = vld [vmem:[%s919 + $0xbc] sm:$0xf]
        %v989 = vld [vmem:[%s919 + $0xc0] sm:$0xf]
        %v990 = vld [vmem:[%s919 + $0xc4] sm:$0xf]
        %v991 = vld [vmem:[%s919 + $0xc8] sm:$0xf]
        %v992 = vld [vmem:[%s919 + $0xcc] sm:$0xf]
        %v993 = vld [vmem:[%s919 + $0xd0] sm:$0xf]
        %v994 = vld [vmem:[%s919 + $0xd4] sm:$0xf]
        %v995 = vld [vmem:[%s919 + $0xd8] sm:$0xf]
        %v996 = vld [vmem:[%s919 + $0xdc] sm:$0xf]
        %v997 = vld [vmem:[%s919 + $0xe0] sm:$0xf]
        %v998 = vld [vmem:[%s919 + $0xe4] sm:$0xf]
        %v999 = vld [vmem:[%s919 + $0xe8] sm:$0xf]
        %v1000 = vld [vmem:[%s919 + $0xec] sm:$0xf]
        %v1001 = vld [vmem:[%s919 + $0xf0] sm:$0xf]
        %v1002 = vld [vmem:[%s919 + $0xf4] sm:$0xf]
        %v1003 = vld [vmem:[%s919 + $0xf8] sm:$0xf]
        %v1004 = vld [vmem:[%s919 + $0xfc] sm:$0xf]
        %v1005 = vld [vmem:[%s919 + $0x100] sm:$0xf]
        %v1006 = vld [vmem:[%s919 + $0x104] sm:$0xf]
        %v1007 = vld [vmem:[%s919 + $0x108] sm:$0xf]
        %v1008 = vld [vmem:[%s919 + $0x10c] sm:$0xf]
        %v1009 = vld [vmem:[%s919 + $0x110] sm:$0xf]
        %v1010 = vld [vmem:[%s919 + $0x114] sm:$0xf]
        %v1011 = vld [vmem:[%s919 + $0x118] sm:$0xf]
        %v1012 = vld [vmem:[%s919 + $0x11c] sm:$0xf]
        %v1013 = vld [vmem:[%s919 + $0x120] sm:$0xf]
        %v1014 = vld [vmem:[%s919 + $0x124] sm:$0xf]
        %v1015 = vld [vmem:[%s919 + $0x128] sm:$0xf]
        %v1016 = vld [vmem:[%s919 + $0x12c] sm:$0xf]
        %v1017 = vld [vmem:[%s919 + $0x130] sm:$0xf]
        %v1018 = vld [vmem:[%s919 + $0x134] sm:$0xf]
        %v1019 = vld [vmem:[%s919 + $0x138] sm:$0xf]
        %v1020 = vld [vmem:[%s919 + $0x13c] sm:$0xf]
        %v1021 = vld [vmem:[%s919 + $0x140] sm:$0xf]
        %v1022 = vld [vmem:[%s919 + $0x144] sm:$0xf]
        %v1023 = vld [vmem:[%s919 + $0x148] sm:$0xf]
        %v1024 = vld [vmem:[%s919 + $0x14c] sm:$0xf]
        %v1025 = vld [vmem:[%s919 + $0x150] sm:$0xf]
        %v1026 = vld [vmem:[%s919 + $0x154] sm:$0xf]
        %v1027 = vld [vmem:[%s919 + $0x158] sm:$0xf]
        %v1028 = vld [vmem:[%s919 + $0x15c] sm:$0xf]
        %v1029 = vld [vmem:[%s919 + $0x160] sm:$0xf]
        %v1030 = vld [vmem:[%s919 + $0x164] sm:$0xf]
        %v1031 = vld [vmem:[%s919 + $0x168] sm:$0xf]
        %v1032 = vld [vmem:[%s919 + $0x16c] sm:$0xf]
        %v1033 = vld [vmem:[%s919 + $0x170] sm:$0xf]
        %v1034 = vld [vmem:[%s919 + $0x174] sm:$0xf]
        %v1035 = vld [vmem:[%s919 + $0x178] sm:$0xf]
        %v1036 = vld [vmem:[%s919 + $0x17c] sm:$0xf]
        %v1037 = vld [vmem:[%s919 + $0x180] sm:$0xf]
        %v1038 = vld [vmem:[%s919 + $0x184] sm:$0xf]
        %v1039 = vld [vmem:[%s919 + $0x188] sm:$0xf]
        %v1040 = vld [vmem:[%s919 + $0x18c] sm:$0xf]
        %v1041 = vld [vmem:[%s919 + $0x190] sm:$0xf]
        %v1042 = vld [vmem:[%s919 + $0x194] sm:$0xf]
        %v1043 = vld [vmem:[%s919 + $0x198] sm:$0xf]
        %v1044 = vld [vmem:[%s919 + $0x19c] sm:$0xf]
        %v1045 = vld [vmem:[%s919 + $0x1a0] sm:$0xf]
        %v1046 = vld [vmem:[%s919 + $0x1a4] sm:$0xf]
        %v1047 = vld [vmem:[%s919 + $0x1a8] sm:$0xf]
        %v1048 = vld [vmem:[%s919 + $0x1ac] sm:$0xf]
        %v1049 = vld [vmem:[%s919 + $0x1b0] sm:$0xf]
        %v1050 = vld [vmem:[%s919 + $0x1b4] sm:$0xf]
        %v1051 = vld [vmem:[%s919 + $0x1b8] sm:$0xf]
        %v1052 = vld [vmem:[%s919 + $0x1bc] sm:$0xf]
        %v1053 = vld [vmem:[%s919 + $0x1c0] sm:$0xf]
        %v1054 = vld [vmem:[%s919 + $0x1c4] sm:$0xf]
        %v1055 = vld [vmem:[%s919 + $0x1c8] sm:$0xf]
        %v1056 = vld [vmem:[%s919 + $0x1cc] sm:$0xf]
        %v1057 = vld [vmem:[%s919 + $0x1d0] sm:$0xf]
        %v1058 = vld [vmem:[%s919 + $0x1d4] sm:$0xf]
        %v1059 = vld [vmem:[%s919 + $0x1d8] sm:$0xf]
        %v1060 = vld [vmem:[%s919 + $0x1dc] sm:$0xf]
        %v1061 = vld [vmem:[%s919 + $0x1e0] sm:$0xf]
        %v1062 = vld [vmem:[%s919 + $0x1e4] sm:$0xf]
        %v1063 = vld [vmem:[%s919 + $0x1e8] sm:$0xf]
        %v1064 = vld [vmem:[%s919 + $0x1ec] sm:$0xf]
        %v1065 = vld [vmem:[%s919 + $0x1f0] sm:$0xf]
        %v1066 = vld [vmem:[%s919 + $0x1f4] sm:$0xf]
        %v1067 = vld [vmem:[%s919 + $0x1f8] sm:$0xf]
        %v1068 = vld [vmem:[%s919 + $0x1fc] sm:$0xf]
        %v1069 = vld [vmem:[%s919 + $0x200] sm:$0xf]
        %v1070 = vld [vmem:[%s919 + $0x204] sm:$0xf]
        %v1071 = vld [vmem:[%s919 + $0x208] sm:$0xf]
        %v1072 = vld [vmem:[%s919 + $0x20c] sm:$0xf]
        %v1073 = vld [vmem:[%s919 + $0x210] sm:$0xf]
        %v1074 = vld [vmem:[%s919 + $0x214] sm:$0xf]
        %v1075 = vld [vmem:[%s919 + $0x218] sm:$0xf]
        %v1076 = vld [vmem:[%s919 + $0x21c] sm:$0xf]
        %v1077 = vld [vmem:[%s919 + $0x220] sm:$0xf]
        %v1078 = vld [vmem:[%s919 + $0x224] sm:$0xf]
        %v1079 = vld [vmem:[%s919 + $0x228] sm:$0xf]
        %v1080 = vld [vmem:[%s919 + $0x22c] sm:$0xf]
        %v1081 = vld [vmem:[%s919 + $0x230] sm:$0xf]
        %v1082 = vld [vmem:[%s919 + $0x234] sm:$0xf]
        %v1083 = vld [vmem:[%s919 + $0x238] sm:$0xf]
        %v1084 = vld [vmem:[%s919 + $0x23c] sm:$0xf]
        %v1085 = vld [vmem:[%s919 + $0x240] sm:$0xf]
        %v1086 = vld [vmem:[%s919 + $0x244] sm:$0xf]
        %v1087 = vld [vmem:[%s919 + $0x248] sm:$0xf]
        %v1088 = vld [vmem:[%s919 + $0x24c] sm:$0xf]
        %v1089 = vld [vmem:[%s919 + $0x250] sm:$0xf]
        %v1090 = vld [vmem:[%s919 + $0x254] sm:$0xf]
        %v1091 = vld [vmem:[%s919 + $0x258] sm:$0xf]
        %v1092 = vld [vmem:[%s919 + $0x25c] sm:$0xf]
        %v1093 = vld [vmem:[%s919 + $0x260] sm:$0xf]
        %v1094 = vld [vmem:[%s919 + $0x264] sm:$0xf]
        %v1095 = vld [vmem:[%s919 + $0x268] sm:$0xf]
        %v1096 = vld [vmem:[%s919 + $0x26c] sm:$0xf]
        %v1097 = vld [vmem:[%s919 + $0x270] sm:$0xf]
        %v1098 = vld [vmem:[%s919 + $0x274] sm:$0xf]
        %v1099 = vld [vmem:[%s919 + $0x278] sm:$0xf]
        %v1100 = vld [vmem:[%s919 + $0x27c] sm:$0xf]
        %v1101 = vld [vmem:[%s919 + $0x280] sm:$0xf]
        %v1102 = vld [vmem:[%s919 + $0x284] sm:$0xf]
        %v1103 = vld [vmem:[%s919 + $0x288] sm:$0xf]
        %v1104 = vld [vmem:[%s919 + $0x28c] sm:$0xf]
        %v1105 = vld [vmem:[%s919 + $0x290] sm:$0xf]
        %v1106 = vld [vmem:[%s919 + $0x294] sm:$0xf]
        %v1107 = vld [vmem:[%s919 + $0x298] sm:$0xf]
        %v1108 = vld [vmem:[%s919 + $0x29c] sm:$0xf]
        %v1109 = vld [vmem:[%s919 + $0x2a0] sm:$0xf]
        %v1110 = vld [vmem:[%s919 + $0x2a4] sm:$0xf]
        %v1111 = vld [vmem:[%s919 + $0x2a8] sm:$0xf]
        %v1112 = vld [vmem:[%s919 + $0x2ac] sm:$0xf]
        %v1113 = vld [vmem:[%s919 + $0x2b0] sm:$0xf]
        %v1114 = vld [vmem:[%s919 + $0x2b4] sm:$0xf]
        %v1115 = vld [vmem:[%s919 + $0x2b8] sm:$0xf]
        %v1116 = vld [vmem:[%s919 + $0x2bc] sm:$0xf]
        %v1117 = vld [vmem:[%s919 + $0x2c0] sm:$0xf]
        %v1118 = vld [vmem:[%s919 + $0x2c4] sm:$0xf]
        %v1119 = vld [vmem:[%s919 + $0x2c8] sm:$0xf]
        %v1120 = vld [vmem:[%s919 + $0x2cc] sm:$0xf]
        %v1121 = vld [vmem:[%s919 + $0x2d0] sm:$0xf]
        %v1122 = vld [vmem:[%s919 + $0x2d4] sm:$0xf]
        %v1123 = vld [vmem:[%s919 + $0x2d8] sm:$0xf]
        %v1124 = vld [vmem:[%s919 + $0x2dc] sm:$0xf]
        %v1125 = vld [vmem:[%s919 + $0x2e0] sm:$0xf]
        %v1126 = vld [vmem:[%s919 + $0x2e4] sm:$0xf]
        %v1127 = vld [vmem:[%s919 + $0x2e8] sm:$0xf]
        %v1128 = vld [vmem:[%s919 + $0x2ec] sm:$0xf]
        %v1129 = vld [vmem:[%s919 + $0x2f0] sm:$0xf]
        %v1130 = vld [vmem:[%s919 + $0x2f4] sm:$0xf]
        %v1131 = vunpack.c.l.bf16 %v941
        %v1132 = vunpack.c.l.bf16 %v942
        %v1133 = vunpack.c.l.bf16 %v943
        %v1134 = vunpack.c.l.bf16 %v944
        %v1135 = vunpack.c.l.bf16 %v945
        %v1136 = vunpack.c.l.bf16 %v946
        %v1137 = vunpack.c.l.bf16 %v947
        %v1138 = vunpack.c.l.bf16 %v948
        %v1139 = vunpack.c.l.bf16 %v949
        %v1140 = vunpack.c.l.bf16 %v950
        %v1141 = vunpack.c.l.bf16 %v951
        %v1142 = vunpack.c.l.bf16 %v952
        %v1143 = vunpack.c.l.bf16 %v953
        %v1144 = vunpack.c.l.bf16 %v954
        %v1145 = vunpack.c.l.bf16 %v955
        %v1146 = vunpack.c.l.bf16 %v956
        %v1147 = vunpack.c.l.bf16 %v957
        %v1148 = vunpack.c.l.bf16 %v958
        %v1149 = vunpack.c.l.bf16 %v959
        %v1150 = vunpack.c.l.bf16 %v960
        %v1151 = vunpack.c.l.bf16 %v961
        %v1152 = vunpack.c.l.bf16 %v962
        %v1153 = vunpack.c.l.bf16 %v963
        %v1154 = vunpack.c.l.bf16 %v964
        %v1155 = vunpack.c.l.bf16 %v965
        %v1156 = vunpack.c.l.bf16 %v966
        %v1157 = vunpack.c.l.bf16 %v967
        %v1158 = vunpack.c.l.bf16 %v968
        %v1159 = vunpack.c.l.bf16 %v969
        %v1160 = vunpack.c.l.bf16 %v970
        %v1161 = vunpack.c.l.bf16 %v971
        %v1162 = vunpack.c.l.bf16 %v972
        %v1163 = vunpack.c.l.bf16 %v973
        %v1164 = vunpack.c.l.bf16 %v974
        %v1165 = vunpack.c.l.bf16 %v975
        %v1166 = vunpack.c.l.bf16 %v976
        %v1167 = vunpack.c.l.bf16 %v977
        %v1168 = vunpack.c.l.bf16 %v978
        %v1169 = vunpack.c.l.bf16 %v979
        %v1170 = vunpack.c.l.bf16 %v980
        %v1171 = vunpack.c.l.bf16 %v981
        %v1172 = vunpack.c.l.bf16 %v982
        %v1173 = vunpack.c.l.bf16 %v983
        %v1174 = vunpack.c.l.bf16 %v984
        %v1175 = vunpack.c.l.bf16 %v985
        %v1176 = vunpack.c.l.bf16 %v986
        %v1177 = vunpack.c.l.bf16 %v987
        %v1178 = vunpack.c.l.bf16 %v988
        %v1179 = vunpack.c.l.bf16 %v989
        %v1180 = vunpack.c.l.bf16 %v990
        %v1181 = vunpack.c.l.bf16 %v991
        %v1182 = vunpack.c.l.bf16 %v992
        %v1183 = vunpack.c.l.bf16 %v993
        %v1184 = vunpack.c.l.bf16 %v994
        %v1185 = vunpack.c.l.bf16 %v995
        %v1186 = vunpack.c.l.bf16 %v996
        %v1187 = vunpack.c.l.bf16 %v997
        %v1188 = vunpack.c.l.bf16 %v998
        %v1189 = vunpack.c.l.bf16 %v999
        %v1190 = vunpack.c.l.bf16 %v1000
        %v1191 = vunpack.c.l.bf16 %v1001
        %v1192 = vunpack.c.l.bf16 %v1002
        %v1193 = vunpack.c.l.bf16 %v1003
        %v1194 = vunpack.c.l.bf16 %v1004
        %v1195 = vunpack.c.l.bf16 %v1005
        %v1196 = vunpack.c.l.bf16 %v1006
        %v1197 = vunpack.c.l.bf16 %v1007
        %v1198 = vunpack.c.l.bf16 %v1008
        %v1199 = vunpack.c.l.bf16 %v1009
        %v1200 = vunpack.c.l.bf16 %v1010
        %v1201 = vunpack.c.l.bf16 %v1011
        %v1202 = vunpack.c.l.bf16 %v1012
        %v1203 = vunpack.c.l.bf16 %v1013
        %v1204 = vunpack.c.l.bf16 %v1014
        %v1205 = vunpack.c.l.bf16 %v1015
        %v1206 = vunpack.c.l.bf16 %v1016
        %v1207 = vunpack.c.l.bf16 %v1017
        %v1208 = vunpack.c.l.bf16 %v1018
        %v1209 = vunpack.c.l.bf16 %v1019
        %v1210 = vunpack.c.l.bf16 %v1020
        %v1211 = vunpack.c.l.bf16 %v1021
        %v1212 = vunpack.c.l.bf16 %v1022
        %v1213 = vunpack.c.l.bf16 %v1023
        %v1214 = vunpack.c.l.bf16 %v1024
        %v1215 = vunpack.c.l.bf16 %v1025
        %v1216 = vunpack.c.l.bf16 %v1026
        %v1217 = vunpack.c.l.bf16 %v1027
        %v1218 = vunpack.c.l.bf16 %v1028
        %v1219 = vunpack.c.l.bf16 %v1029
        %v1220 = vunpack.c.l.bf16 %v1030
        %v1221 = vunpack.c.l.bf16 %v1031
        %v1222 = vunpack.c.l.bf16 %v1032
        %v1223 = vunpack.c.l.bf16 %v1033
        %v1224 = vunpack.c.l.bf16 %v1034
        %v1225 = vunpack.c.l.bf16 %v1035
        %v1226 = vunpack.c.l.bf16 %v1036
        %v1227 = vunpack.c.l.bf16 %v1037
        %v1228 = vunpack.c.l.bf16 %v1038
        %v1229 = vunpack.c.l.bf16 %v1039
        %v1230 = vunpack.c.l.bf16 %v1040
        %v1231 = vunpack.c.l.bf16 %v1041
        %v1232 = vunpack.c.l.bf16 %v1042
        %v1233 = vunpack.c.l.bf16 %v1043
        %v1234 = vunpack.c.l.bf16 %v1044
        %v1235 = vunpack.c.l.bf16 %v1045
        %v1236 = vunpack.c.l.bf16 %v1046
        %v1237 = vunpack.c.l.bf16 %v1047
        %v1238 = vunpack.c.l.bf16 %v1048
        %v1239 = vunpack.c.l.bf16 %v1049
        %v1240 = vunpack.c.l.bf16 %v1050
        %v1241 = vunpack.c.l.bf16 %v1051
        %v1242 = vunpack.c.l.bf16 %v1052
        %v1243 = vunpack.c.l.bf16 %v1053
        %v1244 = vunpack.c.l.bf16 %v1054
        %v1245 = vunpack.c.l.bf16 %v1055
        %v1246 = vunpack.c.l.bf16 %v1056
        %v1247 = vunpack.c.l.bf16 %v1057
        %v1248 = vunpack.c.l.bf16 %v1058
        %v1249 = vunpack.c.l.bf16 %v1059
        %v1250 = vunpack.c.l.bf16 %v1060
        %v1251 = vunpack.c.l.bf16 %v1061
        %v1252 = vunpack.c.l.bf16 %v1062
        %v1253 = vunpack.c.l.bf16 %v1063
        %v1254 = vunpack.c.l.bf16 %v1064
        %v1255 = vunpack.c.l.bf16 %v1065
        %v1256 = vunpack.c.l.bf16 %v1066
        %v1257 = vunpack.c.l.bf16 %v1067
        %v1258 = vunpack.c.l.bf16 %v1068
        %v1259 = vunpack.c.l.bf16 %v1069
        %v1260 = vunpack.c.l.bf16 %v1070
        %v1261 = vunpack.c.l.bf16 %v1071
        %v1262 = vunpack.c.l.bf16 %v1072
        %v1263 = vunpack.c.l.bf16 %v1073
        %v1264 = vunpack.c.l.bf16 %v1074
        %v1265 = vunpack.c.l.bf16 %v1075
        %v1266 = vunpack.c.l.bf16 %v1076
        %v1267 = vunpack.c.l.bf16 %v1077
        %v1268 = vunpack.c.l.bf16 %v1078
        %v1269 = vunpack.c.l.bf16 %v1079
        %v1270 = vunpack.c.l.bf16 %v1080
        %v1271 = vunpack.c.l.bf16 %v1081
        %v1272 = vunpack.c.l.bf16 %v1082
        %v1273 = vunpack.c.l.bf16 %v1083
        %v1274 = vunpack.c.l.bf16 %v1084
        %v1275 = vunpack.c.l.bf16 %v1085
        %v1276 = vunpack.c.l.bf16 %v1086
        %v1277 = vunpack.c.l.bf16 %v1087
        %v1278 = vunpack.c.l.bf16 %v1088
        %v1279 = vunpack.c.l.bf16 %v1089
        %v1280 = vunpack.c.l.bf16 %v1090
        %v1281 = vunpack.c.l.bf16 %v1091
        %v1282 = vunpack.c.l.bf16 %v1092
        %v1283 = vunpack.c.l.bf16 %v1093
        %v1284 = vunpack.c.l.bf16 %v1094
        %v1285 = vunpack.c.l.bf16 %v1095
        %v1286 = vunpack.c.l.bf16 %v1096
        %v1287 = vunpack.c.l.bf16 %v1097
        %v1288 = vunpack.c.l.bf16 %v1098
        %v1289 = vunpack.c.l.bf16 %v1099
        %v1290 = vunpack.c.l.bf16 %v1100
        %v1291 = vunpack.c.l.bf16 %v1101
        %v1292 = vunpack.c.l.bf16 %v1102
        %v1293 = vunpack.c.l.bf16 %v1103
        %v1294 = vunpack.c.l.bf16 %v1104
        %v1295 = vunpack.c.l.bf16 %v1105
        %v1296 = vunpack.c.l.bf16 %v1106
        %v1297 = vunpack.c.l.bf16 %v1107
        %v1298 = vunpack.c.l.bf16 %v1108
        %v1299 = vunpack.c.l.bf16 %v1109
        %v1300 = vunpack.c.l.bf16 %v1110
        %v1301 = vunpack.c.l.bf16 %v1111
        %v1302 = vunpack.c.l.bf16 %v1112
        %v1303 = vunpack.c.l.bf16 %v1113
        %v1304 = vunpack.c.l.bf16 %v1114
        %v1305 = vunpack.c.l.bf16 %v1115
        %v1306 = vunpack.c.l.bf16 %v1116
        %v1307 = vunpack.c.l.bf16 %v1117
        %v1308 = vunpack.c.l.bf16 %v1118
        %v1309 = vunpack.c.l.bf16 %v1119
        %v1310 = vunpack.c.l.bf16 %v1120
        %v1311 = vunpack.c.l.bf16 %v1121
        %v1312 = vunpack.c.l.bf16 %v1122
        %v1313 = vunpack.c.l.bf16 %v1123
        %v1314 = vunpack.c.l.bf16 %v1124
        %v1315 = vunpack.c.l.bf16 %v1125
        %v1316 = vunpack.c.l.bf16 %v1126
        %v1317 = vunpack.c.l.bf16 %v1127
        %v1318 = vunpack.c.l.bf16 %v1128
        %v1319 = vunpack.c.l.bf16 %v1129
        %v1320 = vunpack.c.l.bf16 %v1130
        %v1321 = vld [vmem:[%s0] sm:$0xff]
        %v1322 = vld [vmem:[%s0 + $0x8] sm:$0xff]
        %v1323 = vld [vmem:[%s0 + $0x10] sm:$0xff]
        %v1324 = vld [vmem:[%s0 + $0x18] sm:$0xff]
        %v1325 = vld [vmem:[%s0 + $0x20] sm:$0xff]
        %v1326 = vld [vmem:[%s0 + $0x28] sm:$0xff]
        %v1327 = vld [vmem:[%s0 + $0x30] sm:$0xff]
        %v1328 = vld [vmem:[%s0 + $0x38] sm:$0xff]
        %v1329 = vld [vmem:[%s0 + $0x40] sm:$0xff]
        %v1330 = vld [vmem:[%s0 + $0x48] sm:$0xff]
        %v1331 = vld [vmem:[%s0 + $0x50] sm:$0xff]
        %v1332 = vld [vmem:[%s0 + $0x58] sm:$0xff]
        %vm1333 = vcmask 916480
        %v1335 = vsel %vm1333, %v1332, 0
        %1337 = vmatprep.subr.mxu0 0.0
        %1338 = vmatpush1.msra.mxu0 %v1146
        %1339 = vmatprep.subr.mxu0 0.0
        %1340 = vmatpush1.msra.mxu0 %v1145
        %1341 = vmatprep.subr.mxu0 0.0
        %1342 = vmatpush1.msra.mxu0 %v1144
        %1343 = vmatprep.subr.mxu0 0.0
        %1344 = vmatpush1.msra.mxu0 %v1143
        %1345 = vmatprep.subr.mxu0 0.0
        %1346 = vmatpush1.msra.mxu0 %v1142
        %1347 = vmatprep.subr.mxu0 0.0
        %1348 = vmatpush1.msra.mxu0 %v1141
        %1349 = vmatprep.subr.mxu0 0.0
        %1350 = vmatpush1.msra.mxu0 %v1140
        %1351 = vmatprep.subr.mxu0 0.0
        %1352 = vmatpush1.msra.mxu0 %v1139
        %1353 = vmatprep.subr.mxu0 0.0
        %1354 = vmatpush1.msra.mxu0 %v1138
        %1355 = vmatprep.subr.mxu0 0.0
        %1356 = vmatpush1.msra.mxu0 %v1137
        %1357 = vmatprep.subr.mxu0 0.0
        %1358 = vmatpush1.msra.mxu0 %v1136
        %1359 = vmatprep.subr.mxu0 0.0
        %1360 = vmatpush1.msra.mxu0 %v1135
        %1361 = vmatprep.subr.mxu0 0.0
        %1362 = vmatpush1.msra.mxu0 %v1134
        %1363 = vmatprep.subr.mxu0 0.0
        %1364 = vmatpush1.msra.mxu0 %v1133
        %1365 = vmatprep.subr.mxu0 0.0
        %1366 = vmatpush1.msra.mxu0 %v1132
        %1367 = vmatprep.subr.mxu0 0.0
        %1368 = vmatpush1.msra.mxu0 %v1131
        %1369 = vmatprep.subr.mxu0 0.0
        %1370 = vmatpush2.msra.mxu0 %v1162
        %1371 = vmatprep.subr.mxu0 0.0
        %1372 = vmatpush2.msra.mxu0 %v1161
        %1373 = vmatprep.subr.mxu0 0.0
        %1374 = vmatpush2.msra.mxu0 %v1160
        %1375 = vmatprep.subr.mxu0 0.0
        %1376 = vmatpush2.msra.mxu0 %v1159
        %1377 = vmatprep.subr.mxu0 0.0
        %1378 = vmatpush2.msra.mxu0 %v1158
        %1379 = vmatprep.subr.mxu0 0.0
        %1380 = vmatpush2.msra.mxu0 %v1157
        %1381 = vmatprep.subr.mxu0 0.0
        %1382 = vmatpush2.msra.mxu0 %v1156
        %1383 = vmatprep.subr.mxu0 0.0
        %1384 = vmatpush2.msra.mxu0 %v1155
        %1385 = vmatprep.subr.mxu0 0.0
        %1386 = vmatpush2.msra.mxu0 %v1154
        %1387 = vmatprep.subr.mxu0 0.0
        %1388 = vmatpush2.msra.mxu0 %v1153
        %1389 = vmatprep.subr.mxu0 0.0
        %1390 = vmatpush2.msra.mxu0 %v1152
        %1391 = vmatprep.subr.mxu0 0.0
        %1392 = vmatpush2.msra.mxu0 %v1151
        %1393 = vmatprep.subr.mxu0 0.0
        %1394 = vmatpush2.msra.mxu0 %v1150
        %1395 = vmatprep.subr.mxu0 0.0
        %1396 = vmatpush2.msra.mxu0 %v1149
        %1397 = vmatprep.subr.mxu0 0.0
        %1398 = vmatpush2.msra.mxu0 %v1148
        %1399 = vmatprep.subr.mxu0 0.0
        %1400 = vmatpush2.msra.mxu0 %v1147
        %1401 = vmatprep.mubr.f32.mxu0 %v1322
        %1402 = vmatmul.mubr.f32.gmra.mxu0 %v1321
        %v1403 = vpop.f32.mrf.mxu0
        %v1404 = vadd.f32 0.0, %v1403
        %v1405 = vpop.f32.mrf.mxu0
        %1406 = vdwg.mxu0
        %1407 = vmatprep.subr.mxu0 0.0
        %1408 = vmatpush1.msra.mxu0 %v1178
        %1409 = vmatprep.subr.mxu0 0.0
        %1410 = vmatpush1.msra.mxu0 %v1177
        %1411 = vmatprep.subr.mxu0 0.0
        %1412 = vmatpush1.msra.mxu0 %v1176
        %1413 = vmatprep.subr.mxu0 0.0
        %1414 = vmatpush1.msra.mxu0 %v1175
        %1415 = vmatprep.subr.mxu0 0.0
        %1416 = vmatpush1.msra.mxu0 %v1174
        %1417 = vmatprep.subr.mxu0 0.0
        %1418 = vmatpush1.msra.mxu0 %v1173
        %1419 = vmatprep.subr.mxu0 0.0
        %1420 = vmatpush1.msra.mxu0 %v1172
        %1421 = vmatprep.subr.mxu0 0.0
        %1422 = vmatpush1.msra.mxu0 %v1171
        %1423 = vmatprep.subr.mxu0 0.0
        %1424 = vmatpush1.msra.mxu0 %v1170
        %1425 = vmatprep.subr.mxu0 0.0
        %1426 = vmatpush1.msra.mxu0 %v1169
        %1427 = vmatprep.subr.mxu0 0.0
        %1428 = vmatpush1.msra.mxu0 %v1168
        %1429 = vmatprep.subr.mxu0 0.0
        %1430 = vmatpush1.msra.mxu0 %v1167
        %1431 = vmatprep.subr.mxu0 0.0
        %1432 = vmatpush1.msra.mxu0 %v1166
        %1433 = vmatprep.subr.mxu0 0.0
        %1434 = vmatpush1.msra.mxu0 %v1165
        %1435 = vmatprep.subr.mxu0 0.0
        %1436 = vmatpush1.msra.mxu0 %v1164
        %1437 = vmatprep.subr.mxu0 0.0
        %1438 = vmatpush1.msra.mxu0 %v1163
        %1439 = vmatprep.subr.mxu0 0.0
        %1440 = vmatpush2.msra.mxu0 %v1194
        %1441 = vmatprep.subr.mxu0 0.0
        %1442 = vmatpush2.msra.mxu0 %v1193
        %1443 = vmatprep.subr.mxu0 0.0
        %1444 = vmatpush2.msra.mxu0 %v1192
        %1445 = vmatprep.subr.mxu0 0.0
        %1446 = vmatpush2.msra.mxu0 %v1191
        %1447 = vmatprep.subr.mxu0 0.0
        %1448 = vmatpush2.msra.mxu0 %v1190
        %1449 = vmatprep.subr.mxu0 0.0
        %1450 = vmatpush2.msra.mxu0 %v1189
        %1451 = vmatprep.subr.mxu0 0.0
        %1452 = vmatpush2.msra.mxu0 %v1188
        %1453 = vmatprep.subr.mxu0 0.0
        %1454 = vmatpush2.msra.mxu0 %v1187
        %1455 = vmatprep.subr.mxu0 0.0
        %1456 = vmatpush2.msra.mxu0 %v1186
        %1457 = vmatprep.subr.mxu0 0.0
        %1458 = vmatpush2.msra.mxu0 %v1185
        %1459 = vmatprep.subr.mxu0 0.0
        %1460 = vmatpush2.msra.mxu0 %v1184
        %1461 = vmatprep.subr.mxu0 0.0
        %1462 = vmatpush2.msra.mxu0 %v1183
        %1463 = vmatprep.subr.mxu0 0.0
        %1464 = vmatpush2.msra.mxu0 %v1182
        %1465 = vmatprep.subr.mxu0 0.0
        %1466 = vmatpush2.msra.mxu0 %v1181
        %1467 = vmatprep.subr.mxu0 0.0
        %1468 = vmatpush2.msra.mxu0 %v1180
        %1469 = vmatprep.subr.mxu0 0.0
        %1470 = vmatpush2.msra.mxu0 %v1179
        %1471 = vmatprep.mubr.f32.mxu0 %v1324
        %1472 = vmatmul.mubr.f32.gmra.mxu0 %v1323
        %v1473 = vpop.f32.mrf.mxu0
        %v1474 = vadd.f32 %v1404, %v1473
        %v1475 = vpop.f32.mrf.mxu0
        %1476 = vdwg.mxu0
        %1477 = vmatprep.subr.mxu0 0.0
        %1478 = vmatpush1.msra.mxu0 %v1210
        %1479 = vmatprep.subr.mxu0 0.0
        %1480 = vmatpush1.msra.mxu0 %v1209
        %1481 = vmatprep.subr.mxu0 0.0
        %1482 = vmatpush1.msra.mxu0 %v1208
        %1483 = vmatprep.subr.mxu0 0.0
        %1484 = vmatpush1.msra.mxu0 %v1207
        %1485 = vmatprep.subr.mxu0 0.0
        %1486 = vmatpush1.msra.mxu0 %v1206
        %1487 = vmatprep.subr.mxu0 0.0
        %1488 = vmatpush1.msra.mxu0 %v1205
        %1489 = vmatprep.subr.mxu0 0.0
        %1490 = vmatpush1.msra.mxu0 %v1204
        %1491 = vmatprep.subr.mxu0 0.0
        %1492 = vmatpush1.msra.mxu0 %v1203
        %1493 = vmatprep.subr.mxu0 0.0
        %1494 = vmatpush1.msra.mxu0 %v1202
        %1495 = vmatprep.subr.mxu0 0.0
        %1496 = vmatpush1.msra.mxu0 %v1201
        %1497 = vmatprep.subr.mxu0 0.0
        %1498 = vmatpush1.msra.mxu0 %v1200
        %1499 = vmatprep.subr.mxu0 0.0
        %1500 = vmatpush1.msra.mxu0 %v1199
        %1501 = vmatprep.subr.mxu0 0.0
        %1502 = vmatpush1.msra.mxu0 %v1198
        %1503 = vmatprep.subr.mxu0 0.0
        %1504 = vmatpush1.msra.mxu0 %v1197
        %1505 = vmatprep.subr.mxu0 0.0
        %1506 = vmatpush1.msra.mxu0 %v1196
        %1507 = vmatprep.subr.mxu0 0.0
        %1508 = vmatpush1.msra.mxu0 %v1195
        %1509 = vmatprep.subr.mxu0 0.0
        %1510 = vmatpush2.msra.mxu0 %v1226
        %1511 = vmatprep.subr.mxu0 0.0
        %1512 = vmatpush2.msra.mxu0 %v1225
        %1513 = vmatprep.subr.mxu0 0.0
        %1514 = vmatpush2.msra.mxu0 %v1224
        %1515 = vmatprep.subr.mxu0 0.0
        %1516 = vmatpush2.msra.mxu0 %v1223
        %1517 = vmatprep.subr.mxu0 0.0
        %1518 = vmatpush2.msra.mxu0 %v1222
        %1519 = vmatprep.subr.mxu0 0.0
        %1520 = vmatpush2.msra.mxu0 %v1221
        %1521 = vmatprep.subr.mxu0 0.0
        %1522 = vmatpush2.msra.mxu0 %v1220
        %1523 = vmatprep.subr.mxu0 0.0
        %1524 = vmatpush2.msra.mxu0 %v1219
        %1525 = vmatprep.subr.mxu0 0.0
        %1526 = vmatpush2.msra.mxu0 %v1218
        %1527 = vmatprep.subr.mxu0 0.0
        %1528 = vmatpush2.msra.mxu0 %v1217
        %1529 = vmatprep.subr.mxu0 0.0
        %1530 = vmatpush2.msra.mxu0 %v1216
        %1531 = vmatprep.subr.mxu0 0.0
        %1532 = vmatpush2.msra.mxu0 %v1215
        %1533 = vmatprep.subr.mxu0 0.0
        %1534 = vmatpush2.msra.mxu0 %v1214
        %1535 = vmatprep.subr.mxu0 0.0
        %1536 = vmatpush2.msra.mxu0 %v1213
        %1537 = vmatprep.subr.mxu0 0.0
        %1538 = vmatpush2.msra.mxu0 %v1212
        %1539 = vmatprep.subr.mxu0 0.0
        %1540 = vmatpush2.msra.mxu0 %v1211
        %1541 = vmatprep.mubr.f32.mxu0 %v1326
        %1542 = vmatmul.mubr.f32.gmra.mxu0 %v1325
        %v1543 = vpop.f32.mrf.mxu0
        %v1544 = vadd.f32 %v1474, %v1543
        %v1545 = vpop.f32.mrf.mxu0
        %1546 = vdwg.mxu0
        %1547 = vmatprep.subr.mxu0 0.0
        %1548 = vmatpush1.msra.mxu0 %v1242
        %1549 = vmatprep.subr.mxu0 0.0
        %1550 = vmatpush1.msra.mxu0 %v1241
        %1551 = vmatprep.subr.mxu0 0.0
        %1552 = vmatpush1.msra.mxu0 %v1240
        %1553 = vmatprep.subr.mxu0 0.0
        %1554 = vmatpush1.msra.mxu0 %v1239
        %1555 = vmatprep.subr.mxu0 0.0
        %1556 = vmatpush1.msra.mxu0 %v1238
        %1557 = vmatprep.subr.mxu0 0.0
        %1558 = vmatpush1.msra.mxu0 %v1237
        %1559 = vmatprep.subr.mxu0 0.0
        %1560 = vmatpush1.msra.mxu0 %v1236
        %1561 = vmatprep.subr.mxu0 0.0
        %1562 = vmatpush1.msra.mxu0 %v1235
        %1563 = vmatprep.subr.mxu0 0.0
        %1564 = vmatpush1.msra.mxu0 %v1234
        %1565 = vmatprep.subr.mxu0 0.0
        %1566 = vmatpush1.msra.mxu0 %v1233
        %1567 = vmatprep.subr.mxu0 0.0
        %1568 = vmatpush1.msra.mxu0 %v1232
        %1569 = vmatprep.subr.mxu0 0.0
        %1570 = vmatpush1.msra.mxu0 %v1231
        %1571 = vmatprep.subr.mxu0 0.0
        %1572 = vmatpush1.msra.mxu0 %v1230
        %1573 = vmatprep.subr.mxu0 0.0
        %1574 = vmatpush1.msra.mxu0 %v1229
        %1575 = vmatprep.subr.mxu0 0.0
        %1576 = vmatpush1.msra.mxu0 %v1228
        %1577 = vmatprep.subr.mxu0 0.0
        %1578 = vmatpush1.msra.mxu0 %v1227
        %1579 = vmatprep.subr.mxu0 0.0
        %1580 = vmatpush2.msra.mxu0 %v1258
        %1581 = vmatprep.subr.mxu0 0.0
        %1582 = vmatpush2.msra.mxu0 %v1257
        %1583 = vmatprep.subr.mxu0 0.0
        %1584 = vmatpush2.msra.mxu0 %v1256
        %1585 = vmatprep.subr.mxu0 0.0
        %1586 = vmatpush2.msra.mxu0 %v1255
        %1587 = vmatprep.subr.mxu0 0.0
        %1588 = vmatpush2.msra.mxu0 %v1254
        %1589 = vmatprep.subr.mxu0 0.0
        %1590 = vmatpush2.msra.mxu0 %v1253
        %1591 = vmatprep.subr.mxu0 0.0
        %1592 = vmatpush2.msra.mxu0 %v1252
        %1593 = vmatprep.subr.mxu0 0.0
        %1594 = vmatpush2.msra.mxu0 %v1251
        %1595 = vmatprep.subr.mxu0 0.0
        %1596 = vmatpush2.msra.mxu0 %v1250
        %1597 = vmatprep.subr.mxu0 0.0
        %1598 = vmatpush2.msra.mxu0 %v1249
        %1599 = vmatprep.subr.mxu0 0.0
        %1600 = vmatpush2.msra.mxu0 %v1248
        %1601 = vmatprep.subr.mxu0 0.0
        %1602 = vmatpush2.msra.mxu0 %v1247
        %1603 = vmatprep.subr.mxu0 0.0
        %1604 = vmatpush2.msra.mxu0 %v1246
        %1605 = vmatprep.subr.mxu0 0.0
        %1606 = vmatpush2.msra.mxu0 %v1245
        %1607 = vmatprep.subr.mxu0 0.0
        %1608 = vmatpush2.msra.mxu0 %v1244
        %1609 = vmatprep.subr.mxu0 0.0
        %1610 = vmatpush2.msra.mxu0 %v1243
        %1611 = vmatprep.mubr.f32.mxu0 %v1328
        %1612 = vmatmul.mubr.f32.gmra.mxu0 %v1327
        %v1613 = vpop.f32.mrf.mxu0
        %v1614 = vadd.f32 %v1544, %v1613
        %v1615 = vpop.f32.mrf.mxu0
        %1616 = vdwg.mxu0
        %1617 = vmatprep.subr.mxu0 0.0
        %1618 = vmatpush1.msra.mxu0 %v1274
        %1619 = vmatprep.subr.mxu0 0.0
        %1620 = vmatpush1.msra.mxu0 %v1273
        %1621 = vmatprep.subr.mxu0 0.0
        %1622 = vmatpush1.msra.mxu0 %v1272
        %1623 = vmatprep.subr.mxu0 0.0
        %1624 = vmatpush1.msra.mxu0 %v1271
        %1625 = vmatprep.subr.mxu0 0.0
        %1626 = vmatpush1.msra.mxu0 %v1270
        %1627 = vmatprep.subr.mxu0 0.0
        %1628 = vmatpush1.msra.mxu0 %v1269
        %1629 = vmatprep.subr.mxu0 0.0
        %1630 = vmatpush1.msra.mxu0 %v1268
        %1631 = vmatprep.subr.mxu0 0.0
        %1632 = vmatpush1.msra.mxu0 %v1267
        %1633 = vmatprep.subr.mxu0 0.0
        %1634 = vmatpush1.msra.mxu0 %v1266
        %1635 = vmatprep.subr.mxu0 0.0
        %1636 = vmatpush1.msra.mxu0 %v1265
        %1637 = vmatprep.subr.mxu0 0.0
        %1638 = vmatpush1.msra.mxu0 %v1264
        %1639 = vmatprep.subr.mxu0 0.0
        %1640 = vmatpush1.msra.mxu0 %v1263
        %1641 = vmatprep.subr.mxu0 0.0
        %1642 = vmatpush1.msra.mxu0 %v1262
        %1643 = vmatprep.subr.mxu0 0.0
        %1644 = vmatpush1.msra.mxu0 %v1261
        %1645 = vmatprep.subr.mxu0 0.0
        %1646 = vmatpush1.msra.mxu0 %v1260
        %1647 = vmatprep.subr.mxu0 0.0
        %1648 = vmatpush1.msra.mxu0 %v1259
        %1649 = vmatprep.subr.mxu0 0.0
        %1650 = vmatpush2.msra.mxu0 %v1290
        %1651 = vmatprep.subr.mxu0 0.0
        %1652 = vmatpush2.msra.mxu0 %v1289
        %1653 = vmatprep.subr.mxu0 0.0
        %1654 = vmatpush2.msra.mxu0 %v1288
        %1655 = vmatprep.subr.mxu0 0.0
        %1656 = vmatpush2.msra.mxu0 %v1287
        %1657 = vmatprep.subr.mxu0 0.0
        %1658 = vmatpush2.msra.mxu0 %v1286
        %1659 = vmatprep.subr.mxu0 0.0
        %1660 = vmatpush2.msra.mxu0 %v1285
        %1661 = vmatprep.subr.mxu0 0.0
        %1662 = vmatpush2.msra.mxu0 %v1284
        %1663 = vmatprep.subr.mxu0 0.0
        %1664 = vmatpush2.msra.mxu0 %v1283
        %1665 = vmatprep.subr.mxu0 0.0
        %1666 = vmatpush2.msra.mxu0 %v1282
        %1667 = vmatprep.subr.mxu0 0.0
        %1668 = vmatpush2.msra.mxu0 %v1281
        %1669 = vmatprep.subr.mxu0 0.0
        %1670 = vmatpush2.msra.mxu0 %v1280
        %1671 = vmatprep.subr.mxu0 0.0
        %1672 = vmatpush2.msra.mxu0 %v1279
        %1673 = vmatprep.subr.mxu0 0.0
        %1674 = vmatpush2.msra.mxu0 %v1278
        %1675 = vmatprep.subr.mxu0 0.0
        %1676 = vmatpush2.msra.mxu0 %v1277
        %1677 = vmatprep.subr.mxu0 0.0
        %1678 = vmatpush2.msra.mxu0 %v1276
        %1679 = vmatprep.subr.mxu0 0.0
        %1680 = vmatpush2.msra.mxu0 %v1275
        %1681 = vmatprep.mubr.f32.mxu0 %v1330
        %1682 = vmatmul.mubr.f32.gmra.mxu0 %v1329
        %v1683 = vpop.f32.mrf.mxu0
        %v1684 = vadd.f32 %v1614, %v1683
        %v1685 = vpop.f32.mrf.mxu0
        %1686 = vdwg.mxu0
        %1687 = vmatprep.subr.mxu0 0.0
        %1688 = vmatpush1.msra.mxu0 %v1306
        %1689 = vmatprep.subr.mxu0 0.0
        %1690 = vmatpush1.msra.mxu0 %v1305
        %1691 = vmatprep.subr.mxu0 0.0
        %1692 = vmatpush1.msra.mxu0 %v1304
        %1693 = vmatprep.subr.mxu0 0.0
        %1694 = vmatpush1.msra.mxu0 %v1303
        %1695 = vmatprep.subr.mxu0 0.0
        %1696 = vmatpush1.msra.mxu0 %v1302
        %1697 = vmatprep.subr.mxu0 0.0
        %1698 = vmatpush1.msra.mxu0 %v1301
        %1699 = vmatprep.subr.mxu0 0.0
        %1700 = vmatpush1.msra.mxu0 %v1300
        %1701 = vmatprep.subr.mxu0 0.0
        %1702 = vmatpush1.msra.mxu0 %v1299
        %1703 = vmatprep.subr.mxu0 0.0
        %1704 = vmatpush1.msra.mxu0 %v1298
        %1705 = vmatprep.subr.mxu0 0.0
        %1706 = vmatpush1.msra.mxu0 %v1297
        %1707 = vmatprep.subr.mxu0 0.0
        %1708 = vmatpush1.msra.mxu0 %v1296
        %1709 = vmatprep.subr.mxu0 0.0
        %1710 = vmatpush1.msra.mxu0 %v1295
        %1711 = vmatprep.subr.mxu0 0.0
        %1712 = vmatpush1.msra.mxu0 %v1294
        %1713 = vmatprep.subr.mxu0 0.0
        %1714 = vmatpush1.msra.mxu0 %v1293
        %1715 = vmatprep.subr.mxu0 0.0
        %1716 = vmatpush1.msra.mxu0 %v1292
        %1717 = vmatprep.subr.mxu0 0.0
        %1718 = vmatpush1.msra.mxu0 %v1291
        %1719 = vmatprep.subr.mxu0 0.0
        %1720 = vmatpush2.msra.mxu0 0.0
        %1721 = vmatprep.subr.mxu0 0.0
        %1722 = vmatpush2.msra.mxu0 0.0
        %1723 = vmatprep.subr.mxu0 0.0
        %1724 = vmatpush2.msra.mxu0 %v1320
        %1725 = vmatprep.subr.mxu0 0.0
        %1726 = vmatpush2.msra.mxu0 %v1319
        %1727 = vmatprep.subr.mxu0 0.0
        %1728 = vmatpush2.msra.mxu0 %v1318
        %1729 = vmatprep.subr.mxu0 0.0
        %1730 = vmatpush2.msra.mxu0 %v1317
        %1731 = vmatprep.subr.mxu0 0.0
        %1732 = vmatpush2.msra.mxu0 %v1316
        %1733 = vmatprep.subr.mxu0 0.0
        %1734 = vmatpush2.msra.mxu0 %v1315
        %1735 = vmatprep.subr.mxu0 0.0
        %1736 = vmatpush2.msra.mxu0 %v1314
        %1737 = vmatprep.subr.mxu0 0.0
        %1738 = vmatpush2.msra.mxu0 %v1313
        %1739 = vmatprep.subr.mxu0 0.0
        %1740 = vmatpush2.msra.mxu0 %v1312
        %1741 = vmatprep.subr.mxu0 0.0
        %1742 = vmatpush2.msra.mxu0 %v1311
        %1743 = vmatprep.subr.mxu0 0.0
        %1744 = vmatpush2.msra.mxu0 %v1310
        %1745 = vmatprep.subr.mxu0 0.0
        %1746 = vmatpush2.msra.mxu0 %v1309
        %1747 = vmatprep.subr.mxu0 0.0
        %1748 = vmatpush2.msra.mxu0 %v1308
        %1749 = vmatprep.subr.mxu0 0.0
        %1750 = vmatpush2.msra.mxu0 %v1307
        %1751 = vmatprep.mubr.f32.mxu0 %v1335
        %1752 = vmatmul.mubr.f32.gmra.mxu0 %v1331
        %v1753 = vpop.f32.mrf.mxu0
        %v1754 = vadd.f32 %v1684, %v1753
        %v1755 = vpop.f32.mrf.mxu0
        %1756 = vdwg.mxu0
        %1757 = vst [vmem:[%s940] sm:$0xff] %v1754
        %p1758 = scmp.lt.s32.totalorder %s13, 2
        %s1759 = scalar_select %p1758, %s13, 2
        %s1760 = smul.addr %s1759, 8
        %s1761 = scalar_lea.vmem %s2, %s1760
        // Predicated region
        $region70: #{model_forward.4} parent=64 // pred_check
          %p1762 = pneg %p78
        $region71: #{model_forward.4} parent=64 // pred_check_branch
          %1764 = sbr.rel (%p1762) target = $region73
        $region72: #{model_forward.4} parent=64 // pred_region
          _
        $region73: #{model_forward.4} parent=64 // pred_fallthru
          _
      $region65: #{model_forward.4} parent=5 // pred_fallthru
        _
      %p1765 = scmp.le.s32.totalorder 2, %s8
      // Predicated region
      $region74: #{model_forward.4} parent=5 // pred_check
        %p1766 = pneg %p1765
      $region75: #{model_forward.4} parent=5 // pred_check_branch
        %1768 = sbr.rel (%p1766) target = $region77
      $region76: #{model_forward.4} parent=5 // pred_region
        %s1769 = ssub.s32 %s8, 2
        // Predicated region
        $region78: #{model_forward.4} parent=76 // pred_check
          %p1770 = pneg %p84
        $region79: #{model_forward.4} parent=76 // pred_check_branch
          %1772 = sbr.rel (%p1770) target = $region81
        $region80: #{model_forward.4} parent=76 // pred_region
          %p1773 = scmp.lt.s32.totalorder %s14, 2
          %s1774 = scalar_select %p1773, %s14, 2
          %s1775 = smul.addr %s1774, 8
          %s1776 = scalar_lea.vmem %s2, %s1775
        $region81: #{model_forward.4} parent=76 // pred_fallthru
          _
      $region77: #{model_forward.4} parent=5 // pred_fallthru
        _
    $region6: #{model_forward.4} parent=1 // loop_footer
      %s12 = sadd.s32 1, %s8
    $region7: #{model_forward.4} parent=1 // loop_footer_branch
      %7 = sbr.rel target = $region3
    $region8: #{model_forward.4} parent=1 // loop_exit
      _

// kernel: model_forward.3
$region0: #{model_forward.3}
  #allocation0 [shape = 'u32[]', space=smem, size = 0x4, offset = 0x4, fixed_abs, tag = 'smem constant byte address 0x4 - core index']
  #allocation1 [shape = 'u32[144,128]{1,0:T(1,128)}', space=vmem, size = 0x12000, scoped, tag = 'internal scratch']
  %s0 = inlined_call_operand.vmem [shape: f32[8,3600], index: 0, kind: input, shape index: {}]
  %s1 = inlined_call_operand.hbm [shape: bf16[3600,512], index: 1, kind: input, shape index: {}]
  %s2 = inlined_call_operand.vmem [shape: f32[8,512], index: 2, kind: output, shape index: {}]
  %s3 = sld [smem:[#allocation0]]
  $region45: #{model_forward.3} parent=0
    _
  %s5 = ssub.s32 1, %s3
  %s6 = scalar_select 0, %s5, %s3
  $region1: #{model_forward.3} parent=0
    #allocation2 [shape = 'u8[3686400]{0}', space=vmem, size = 0x384000, scoped, tag = 'input window, operand 1']
    #allocation3 [shape = 's32[2]{0}', space=sflag, size = 0x8, scoped, tag = 'scoped memory for model_forward.3']
    %7 = vsyncpa [#allocation3], 0
    %s8 = scalar_lea.sflag [#allocation3], 1
    %9 = vsyncpa %s8, 0
    loop: start=0, step=1, limit=4
    $region2: #{model_forward.3} parent=1 // loop_pre_header
      _
    $region3: #{model_forward.3} parent=1 // loop_header
      %s11 = sphi 0, %s15
      %p12 = scmp.ge.s32.totalorder %s11, 4
      %s19 = sphi 0, %s19
      %s21 = sphi 0, %s19
      %s22 = sphi 0, %s21
      %s36 = sphi 0, %s22
      %s42 = sphi 0, %s44
      %s45 = sphi 0, %s42
      %s46 = sphi 0, %s45
      %s62 = sphi 0, %s46
      %s68 = sphi 0, %s70
      %s71 = sphi 0, %s68
      %s72 = sphi 0, %s71
      %s88 = sphi 0, %s72
    $region4: #{model_forward.3} parent=1 // loop_header_branch
      %14 = sbr.rel (%p12) target = $region8
    $region5: #{model_forward.3} parent=1 // loop_body
      %s16 = ssub.s32 %s11, 1
      %s17 = ssub.s32 %s11, 2
      %s18 = sadd.s32 %s11, 1
      %s20 = sadd.s32 %s19, 1
      %p23 = scmp.eq.s32.totalorder %s11, 1
      %p24 = scmp.ne.s32.totalorder %s19, %s21
      %p25 = scmp.eq.s32.totalorder %s11, 0
      %p26 = por %p24, %p25
      %p27 = scmp.ne.s32.totalorder %s19, %s21
      %p28 = scmp.eq.s32.totalorder %s16, 1
      %p29 = por %p27, %p28
      %p30 = scmp.ne.s32.totalorder %s21, %s22
      %p31 = scmp.eq.s32.totalorder %s16, 0
      %p32 = por %p30, %p31
      %p33 = scmp.ne.s32.totalorder %s21, %s22
      %p34 = scmp.eq.s32.totalorder %s17, 1
      %p35 = por %p33, %p34
      %p37 = scmp.ne.s32.totalorder %s22, %s36
      %p38 = scmp.eq.s32.totalorder %s17, 0
      %p39 = por %p37, %p38
      %s40 = ssub.s32 %s11, %s18
      %p41 = scmp.eq.s32.totalorder %s40, 0
      %s43 = sadd.s32 %s42, 1
      %s44 = scalar_select %p41, %s42, %s43
      %p47 = pneg %p41
      %p48 = scmp.eq.s32.totalorder %s11, 1
      %p49 = por %p47, %p48
      %p50 = scmp.ne.s32.totalorder %s42, %s45
      %p51 = scmp.eq.s32.totalorder %s11, 0
      %p52 = por %p50, %p51
      %p53 = scmp.ne.s32.totalorder %s42, %s45
      %p54 = scmp.eq.s32.totalorder %s16, 1
      %p55 = por %p53, %p54
      %p56 = scmp.ne.s32.totalorder %s45, %s46
      %p57 = scmp.eq.s32.totalorder %s16, 0
      %p58 = por %p56, %p57
      %p59 = scmp.ne.s32.totalorder %s45, %s46
      %p60 = scmp.eq.s32.totalorder %s17, 1
      %p61 = por %p59, %p60
      %p63 = scmp.ne.s32.totalorder %s46, %s62
      %p64 = scmp.eq.s32.totalorder %s17, 0
      %p65 = por %p63, %p64
      %s66 = ssub.s32 %s11, %s18
      %p67 = scmp.eq.s32.totalorder %s66, 0
      %s69 = sadd.s32 %s68, 1
      %s70 = scalar_select %p67, %s68, %s69
      %p73 = pneg %p67
      %p74 = scmp.eq.s32.totalorder %s11, 1
      %p75 = por %p73, %p74
      %p76 = scmp.ne.s32.totalorder %s68, %s71
      %p77 = scmp.eq.s32.totalorder %s11, 0
      %p78 = por %p76, %p77
      %p79 = scmp.ne.s32.totalorder %s68, %s71
      %p80 = scmp.eq.s32.totalorder %s16, 1
      %p81 = por %p79, %p80
      %p82 = scmp.ne.s32.totalorder %s71, %s72
      %p83 = scmp.eq.s32.totalorder %s16, 0
      %p84 = por %p82, %p83
      %p85 = scmp.ne.s32.totalorder %s71, %s72
      %p86 = scmp.eq.s32.totalorder %s17, 1
      %p87 = por %p85, %p86
      %p89 = scmp.ne.s32.totalorder %s72, %s88
      %p90 = scmp.eq.s32.totalorder %s17, 0
      %p91 = por %p89, %p90
      %p92 = scmp.le.s32.totalorder 1, %s11
      %p93 = scmp.lt.s32.totalorder %s11, 3
      %p94 = pnand %p92, %p93
      %p95 = pneg %p94
      // Predicated region
      $region9: #{model_forward.3} parent=5 // pred_check
        _
      $region10: #{model_forward.3} parent=5 // pred_check_branch
        %97 = sbr.rel (%p94) target = $region12
      $region11: #{model_forward.3} parent=5 // pred_region
        %s98 = ssub.s32 %s11, 1
        // Predicated region
        $region13: #{model_forward.3} parent=11 // pred_check
          %p99 = pneg %p32
        $region14: #{model_forward.3} parent=11 // pred_check_branch
          %101 = sbr.rel (%p99) target = $region16
        $region15: #{model_forward.3} parent=11 // pred_region
          _
        $region16: #{model_forward.3} parent=11 // pred_fallthru
          _
      $region12: #{model_forward.3} parent=5 // pred_fallthru
        _
      %p102 = scmp.lt.s32.totalorder %s11, 2
      // Predicated region
      $region17: #{model_forward.3} parent=5 // pred_check
        %p103 = pneg %p102
      $region18: #{model_forward.3} parent=5 // pred_check_branch
        %105 = sbr.rel (%p103) target = $region20
      $region19: #{model_forward.3} parent=5 // pred_region
        // Predicated region
        $region21: #{model_forward.3} parent=19 // pred_check
          %p106 = pneg %p52
        $region22: #{model_forward.3} parent=19 // pred_check_branch
          %108 = sbr.rel (%p106) target = $region24
        $region23: #{model_forward.3} parent=19 // pred_region
          %s109 = sand.u32 %s42, 1
          %s110 = scalar_lea.sflag [#allocation3], %s109
          %s111 = sand.u32 %s42, 1
          %s112 = smul.addr %s111, 3600
          %s113 = scalar_lea.vmem [#allocation2], %s112
          %s114 = smul.u32 2, %s11
          %s116 = ssub.s32 57600, 57600
          %117 = vsyncadd %s110, %s116
          %s118 = smul.addr %s114, 64
          %s119 = scalar_lea.hbm %s1, %s118
          %s120 = sshll.u32 %s113, 4
          %s121 = int_to_ptr.vmem [resolvable:$true] %s120
          %126 = dma.hbm_to_vmem [thread:$0]  %s119, 57600, %s121, %s110, 256, 128, 8
        $region24: #{model_forward.3} parent=19 // pred_fallthru
          _
      $region20: #{model_forward.3} parent=5 // pred_fallthru
        _
      %p127 = scmp.le.s32.totalorder 1, %s11
      %p128 = scmp.lt.s32.totalorder %s11, 3
      %p129 = pnand %p127, %p128
      %p130 = pneg %p129
      // Predicated region
      $region25: #{model_forward.3} parent=5 // pred_check
        _
      $region26: #{model_forward.3} parent=5 // pred_check_branch
        %132 = sbr.rel (%p129) target = $region28
      $region27: #{model_forward.3} parent=5 // pred_region
        %s133 = ssub.s32 %s11, 1
        %s134 = sand.u32 %s45, 1
        %s135 = scalar_lea.sflag [#allocation3], %s134
        %s136 = sand.u32 %s45, 1
        %s137 = smul.addr %s136, 3600
        %s138 = scalar_lea.vmem [#allocation2], %s137
        // Predicated region
        $region29: #{model_forward.3} parent=27 // pred_check
          %p139 = pneg %p58
        $region30: #{model_forward.3} parent=27 // pred_check_branch
          %141 = sbr.rel (%p139) target = $region32
        $region31: #{model_forward.3} parent=27 // pred_region
          %142 = dma.done %s135, 57600
        $region32: #{model_forward.3} parent=27 // pred_fallthru
          _
        %p143 = pneg %p32
        %p144 = pneg %p29
        %s145 = sand.u32 %s45, 1
        %s146 = scalar_lea.sflag [#allocation3], %s145
        %s147 = sand.u32 %s45, 1
        %s148 = smul.addr %s147, 3600
        %s149 = scalar_lea.vmem [#allocation2], %s148
        %p150 = pneg %p58
        %p151 = pneg %p55
        %p152 = pneg %p84
        %p153 = pneg %p81
        %s154 = smul.u32 2, %s16
        %p155 = scmp.lt.s32.totalorder %s154, 3
        %s156 = scalar_select %p155, %s154, 3
        %s157 = smul.addr %s156, 8
        %s158 = scalar_lea.vmem %s2, %s157
        %s159 = smul.u32 2, %s16
        %s160 = smul.u32 2, %s16
        %p161 = scmp.lt.s32.totalorder %s160, 3
        %s162 = scalar_select %p161, %s160, 3
        %s163 = smul.addr %s162, 8
        %s164 = scalar_lea.vmem %s2, %s163
        %s165 = smul.u32 2, %s16
        %v166 = vld [vmem:[%s138] sm:$0xff]
        %v167 = vld [vmem:[%s138 + $0x8] sm:$0xff]
        %v168 = vld [vmem:[%s138 + $0x10] sm:$0xff]
        %v169 = vld [vmem:[%s138 + $0x18] sm:$0xff]
        %v170 = vld [vmem:[%s138 + $0x20] sm:$0xff]
        %v171 = vld [vmem:[%s138 + $0x28] sm:$0xff]
        %v172 = vld [vmem:[%s138 + $0x30] sm:$0xff]
        %v173 = vld [vmem:[%s138 + $0x38] sm:$0xff]
        %v174 = vld [vmem:[%s138 + $0x40] sm:$0xff]
        %v175 = vld [vmem:[%s138 + $0x48] sm:$0xff]
        %v176 = vld [vmem:[%s138 + $0x50] sm:$0xff]
        %v177 = vld [vmem:[%s138 + $0x58] sm:$0xff]
        %v178 = vld [vmem:[%s138 + $0x60] sm:$0xff]
        %v179 = vld [vmem:[%s138 + $0x68] sm:$0xff]
        %v180 = vld [vmem:[%s138 + $0x70] sm:$0xff]
        %v181 = vld [vmem:[%s138 + $0x78] sm:$0xff]
        %v182 = vld [vmem:[%s138 + $0x80] sm:$0xff]
        %v183 = vld [vmem:[%s138 + $0x88] sm:$0xff]
        %v184 = vld [vmem:[%s138 + $0x90] sm:$0xff]
        %v185 = vld [vmem:[%s138 + $0x98] sm:$0xff]
        %v186 = vld [vmem:[%s138 + $0xa0] sm:$0xff]
        %v187 = vld [vmem:[%s138 + $0xa8] sm:$0xff]
        %v188 = vld [vmem:[%s138 + $0xb0] sm:$0xff]
        %v189 = vld [vmem:[%s138 + $0xb8] sm:$0xff]
        %v190 = vld [vmem:[%s138 + $0xc0] sm:$0xff]
        %v191 = vld [vmem:[%s138 + $0xc8] sm:$0xff]
        %v192 = vld [vmem:[%s138 + $0xd0] sm:$0xff]
        %v193 = vld [vmem:[%s138 + $0xd8] sm:$0xff]
        %v194 = vld [vmem:[%s138 + $0xe0] sm:$0xff]
        %v195 = vld [vmem:[%s138 + $0xe8] sm:$0xff]
        %v196 = vld [vmem:[%s138 + $0xf0] sm:$0xff]
        %v197 = vld [vmem:[%s138 + $0xf8] sm:$0xff]
        %v198 = vld [vmem:[%s138 + $0x100] sm:$0xff]
        %v199 = vld [vmem:[%s138 + $0x108] sm:$0xff]
        %v200 = vld [vmem:[%s138 + $0x110] sm:$0xff]
        %v201 = vld [vmem:[%s138 + $0x118] sm:$0xff]
        %v202 = vld [vmem:[%s138 + $0x120] sm:$0xff]
        %v203 = vld [vmem:[%s138 + $0x128] sm:$0xff]
        %v204 = vld [vmem:[%s138 + $0x130] sm:$0xff]
        %v205 = vld [vmem:[%s138 + $0x138] sm:$0xff]
        %v206 = vld [vmem:[%s138 + $0x140] sm:$0xff]
        %v207 = vld [vmem:[%s138 + $0x148] sm:$0xff]
        %v208 = vld [vmem:[%s138 + $0x150] sm:$0xff]
        %v209 = vld [vmem:[%s138 + $0x158] sm:$0xff]
        %v210 = vld [vmem:[%s138 + $0x160] sm:$0xff]
        %v211 = vld [vmem:[%s138 + $0x168] sm:$0xff]
        %v212 = vld [vmem:[%s138 + $0x170] sm:$0xff]
        %v213 = vld [vmem:[%s138 + $0x178] sm:$0xff]
        %v214 = vld [vmem:[%s138 + $0x180] sm:$0xff]
        %v215 = vld [vmem:[%s138 + $0x188] sm:$0xff]
        %v216 = vld [vmem:[%s138 + $0x190] sm:$0xff]
        %v217 = vld [vmem:[%s138 + $0x198] sm:$0xff]
        %v218 = vld [vmem:[%s138 + $0x1a0] sm:$0xff]
        %v219 = vld [vmem:[%s138 + $0x1a8] sm:$0xff]
        %v220 = vld [vmem:[%s138 + $0x1b0] sm:$0xff]
        %v221 = vld [vmem:[%s138 + $0x1b8] sm:$0xff]
        %v222 = vld [vmem:[%s138 + $0x1c0] sm:$0xff]
        %v223 = vld [vmem:[%s138 + $0x1c8] sm:$0xff]
        %v224 = vld [vmem:[%s138 + $0x1d0] sm:$0xff]
        %v225 = vld [vmem:[%s138 + $0x1d8] sm:$0xff]
        %v226 = vld [vmem:[%s138 + $0x1e0] sm:$0xff]
        %v227 = vld [vmem:[%s138 + $0x1e8] sm:$0xff]
        %v228 = vld [vmem:[%s138 + $0x1f0] sm:$0xff]
        %v229 = vld [vmem:[%s138 + $0x1f8] sm:$0xff]
        %v230 = vld [vmem:[%s138 + $0x200] sm:$0xff]
        %v231 = vld [vmem:[%s138 + $0x208] sm:$0xff]
        %v232 = vld [vmem:[%s138 + $0x210] sm:$0xff]
        %v233 = vld [vmem:[%s138 + $0x218] sm:$0xff]
        %v234 = vld [vmem:[%s138 + $0x220] sm:$0xff]
        %v235 = vld [vmem:[%s138 + $0x228] sm:$0xff]
        %v236 = vld [vmem:[%s138 + $0x230] sm:$0xff]
        %v237 = vld [vmem:[%s138 + $0x238] sm:$0xff]
        %v238 = vld [vmem:[%s138 + $0x240] sm:$0xff]
        %v239 = vld [vmem:[%s138 + $0x248] sm:$0xff]
        %v240 = vld [vmem:[%s138 + $0x250] sm:$0xff]
        %v241 = vld [vmem:[%s138 + $0x258] sm:$0xff]
        %v242 = vld [vmem:[%s138 + $0x260] sm:$0xff]
        %v243 = vld [vmem:[%s138 + $0x268] sm:$0xff]
        %v244 = vld [vmem:[%s138 + $0x270] sm:$0xff]
        %v245 = vld [vmem:[%s138 + $0x278] sm:$0xff]
        %v246 = vld [vmem:[%s138 + $0x280] sm:$0xff]
        %v247 = vld [vmem:[%s138 + $0x288] sm:$0xff]
        %v248 = vld [vmem:[%s138 + $0x290] sm:$0xff]
        %v249 = vld [vmem:[%s138 + $0x298] sm:$0xff]
        %v250 = vld [vmem:[%s138 + $0x2a0] sm:$0xff]
        %v251 = vld [vmem:[%s138 + $0x2a8] sm:$0xff]
        %v252 = vld [vmem:[%s138 + $0x2b0] sm:$0xff]
        %v253 = vld [vmem:[%s138 + $0x2b8] sm:$0xff]
        %v254 = vld [vmem:[%s138 + $0x2c0] sm:$0xff]
        %v255 = vld [vmem:[%s138 + $0x2c8] sm:$0xff]
        %v256 = vld [vmem:[%s138 + $0x2d0] sm:$0xff]
        %v257 = vld [vmem:[%s138 + $0x2d8] sm:$0xff]
        %v258 = vld [vmem:[%s138 + $0x2e0] sm:$0xff]
        %v259 = vld [vmem:[%s138 + $0x2e8] sm:$0xff]
        %v260 = vld [vmem:[%s138 + $0x2f0] sm:$0xff]
        %v261 = vld [vmem:[%s138 + $0x2f8] sm:$0xff]
        %v262 = vld [vmem:[%s138 + $0x300] sm:$0xff]
        %v263 = vld [vmem:[%s138 + $0x308] sm:$0xff]
        %v264 = vld [vmem:[%s138 + $0x310] sm:$0xff]
        %v265 = vld [vmem:[%s138 + $0x318] sm:$0xff]
        %v266 = vld [vmem:[%s138 + $0x320] sm:$0xff]
        %v267 = vld [vmem:[%s138 + $0x328] sm:$0xff]
        %v268 = vld [vmem:[%s138 + $0x330] sm:$0xff]
        %v269 = vld [vmem:[%s138 + $0x338] sm:$0xff]
        %v270 = vld [vmem:[%s138 + $0x340] sm:$0xff]
        %v271 = vld [vmem:[%s138 + $0x348] sm:$0xff]
        %v272 = vld [vmem:[%s138 + $0x350] sm:$0xff]
        %v273 = vld [vmem:[%s138 + $0x358] sm:$0xff]
        %v274 = vld [vmem:[%s138 + $0x360] sm:$0xff]
        %v275 = vld [vmem:[%s138 + $0x368] sm:$0xff]
        %v276 = vld [vmem:[%s138 + $0x370] sm:$0xff]
        %v277 = vld [vmem:[%s138 + $0x378] sm:$0xff]
        %v278 = vld [vmem:[%s138 + $0x380] sm:$0xff]
        %v279 = vld [vmem:[%s138 + $0x388] sm:$0xff]
        %v280 = vld [vmem:[%s138 + $0x390] sm:$0xff]
        %v281 = vld [vmem:[%s138 + $0x398] sm:$0xff]
        %v282 = vld [vmem:[%s138 + $0x3a0] sm:$0xff]
        %v283 = vld [vmem:[%s138 + $0x3a8] sm:$0xff]
        %v284 = vld [vmem:[%s138 + $0x3b0] sm:$0xff]
        %v285 = vld [vmem:[%s138 + $0x3b8] sm:$0xff]
        %v286 = vld [vmem:[%s138 + $0x3c0] sm:$0xff]
        %v287 = vld [vmem:[%s138 + $0x3c8] sm:$0xff]
        %v288 = vld [vmem:[%s138 + $0x3d0] sm:$0xff]
        %v289 = vld [vmem:[%s138 + $0x3d8] sm:$0xff]
        %v290 = vld [vmem:[%s138 + $0x3e0] sm:$0xff]
        %v291 = vld [vmem:[%s138 + $0x3e8] sm:$0xff]
        %v292 = vld [vmem:[%s138 + $0x3f0] sm:$0xff]
        %v293 = vld [vmem:[%s138 + $0x3f8] sm:$0xff]
        %v294 = vld [vmem:[%s138 + $0x400] sm:$0xff]
        %v295 = vld [vmem:[%s138 + $0x408] sm:$0xff]
        %v296 = vld [vmem:[%s138 + $0x410] sm:$0xff]
        %v297 = vld [vmem:[%s138 + $0x418] sm:$0xff]
        %v298 = vld [vmem:[%s138 + $0x420] sm:$0xff]
        %v299 = vld [vmem:[%s138 + $0x428] sm:$0xff]
        %v300 = vld [vmem:[%s138 + $0x430] sm:$0xff]
        %v301 = vld [vmem:[%s138 + $0x438] sm:$0xff]
        %v302 = vld [vmem:[%s138 + $0x440] sm:$0xff]
        %v303 = vld [vmem:[%s138 + $0x448] sm:$0xff]
        %v304 = vld [vmem:[%s138 + $0x450] sm:$0xff]
        %v305 = vld [vmem:[%s138 + $0x458] sm:$0xff]
        %v306 = vld [vmem:[%s138 + $0x460] sm:$0xff]
        %v307 = vld [vmem:[%s138 + $0x468] sm:$0xff]
        %v308 = vld [vmem:[%s138 + $0x470] sm:$0xff]
        %v309 = vld [vmem:[%s138 + $0x478] sm:$0xff]
        %v310 = vld [vmem:[%s138 + $0x480] sm:$0xff]
        %v311 = vld [vmem:[%s138 + $0x488] sm:$0xff]
        %v312 = vld [vmem:[%s138 + $0x490] sm:$0xff]
        %v313 = vld [vmem:[%s138 + $0x498] sm:$0xff]
        %v314 = vld [vmem:[%s138 + $0x4a0] sm:$0xff]
        %v315 = vld [vmem:[%s138 + $0x4a8] sm:$0xff]
        %v316 = vld [vmem:[%s138 + $0x4b0] sm:$0xff]
        %v317 = vld [vmem:[%s138 + $0x4b8] sm:$0xff]
        %v318 = vld [vmem:[%s138 + $0x4c0] sm:$0xff]
        %v319 = vld [vmem:[%s138 + $0x4c8] sm:$0xff]
        %v320 = vld [vmem:[%s138 + $0x4d0] sm:$0xff]
        %v321 = vld [vmem:[%s138 + $0x4d8] sm:$0xff]
        %v322 = vld [vmem:[%s138 + $0x4e0] sm:$0xff]
        %v323 = vld [vmem:[%s138 + $0x4e8] sm:$0xff]
        %v324 = vld [vmem:[%s138 + $0x4f0] sm:$0xff]
        %v325 = vld [vmem:[%s138 + $0x4f8] sm:$0xff]
        %v326 = vld [vmem:[%s138 + $0x500] sm:$0xff]
        %v327 = vld [vmem:[%s138 + $0x508] sm:$0xff]
        %v328 = vld [vmem:[%s138 + $0x510] sm:$0xff]
        %v329 = vld [vmem:[%s138 + $0x518] sm:$0xff]
        %v330 = vld [vmem:[%s138 + $0x520] sm:$0xff]
        %v331 = vld [vmem:[%s138 + $0x528] sm:$0xff]
        %v332 = vld [vmem:[%s138 + $0x530] sm:$0xff]
        %v333 = vld [vmem:[%s138 + $0x538] sm:$0xff]
        %v334 = vld [vmem:[%s138 + $0x540] sm:$0xff]
        %v335 = vld [vmem:[%s138 + $0x548] sm:$0xff]
        %v336 = vld [vmem:[%s138 + $0x550] sm:$0xff]
        %v337 = vld [vmem:[%s138 + $0x558] sm:$0xff]
        %v338 = vld [vmem:[%s138 + $0x560] sm:$0xff]
        %v339 = vld [vmem:[%s138 + $0x568] sm:$0xff]
        %v340 = vld [vmem:[%s138 + $0x570] sm:$0xff]
        %v341 = vld [vmem:[%s138 + $0x578] sm:$0xff]
        %v342 = vld [vmem:[%s138 + $0x580] sm:$0xff]
        %v343 = vld [vmem:[%s138 + $0x588] sm:$0xff]
        %v344 = vld [vmem:[%s138 + $0x590] sm:$0xff]
        %v345 = vld [vmem:[%s138 + $0x598] sm:$0xff]
        %v346 = vld [vmem:[%s138 + $0x5a0] sm:$0xff]
        %v347 = vld [vmem:[%s138 + $0x5a8] sm:$0xff]
        %v348 = vld [vmem:[%s138 + $0x5b0] sm:$0xff]
        %v349 = vld [vmem:[%s138 + $0x5b8] sm:$0xff]
        %v350 = vld [vmem:[%s138 + $0x5c0] sm:$0xff]
        %v351 = vld [vmem:[%s138 + $0x5c8] sm:$0xff]
        %v352 = vld [vmem:[%s138 + $0x5d0] sm:$0xff]
        %v353 = vld [vmem:[%s138 + $0x5d8] sm:$0xff]
        %v354 = vld [vmem:[%s138 + $0x5e0] sm:$0xff]
        %v355 = vld [vmem:[%s138 + $0x5e8] sm:$0xff]
        %v356 = vld [vmem:[%s138 + $0x5f0] sm:$0xff]
        %v357 = vld [vmem:[%s138 + $0x5f8] sm:$0xff]
        %v358 = vld [vmem:[%s138 + $0x600] sm:$0xff]
        %v359 = vld [vmem:[%s138 + $0x608] sm:$0xff]
        %v360 = vld [vmem:[%s138 + $0x610] sm:$0xff]
        %v361 = vld [vmem:[%s138 + $0x618] sm:$0xff]
        %v362 = vld [vmem:[%s138 + $0x620] sm:$0xff]
        %v363 = vld [vmem:[%s138 + $0x628] sm:$0xff]
        %v364 = vld [vmem:[%s138 + $0x630] sm:$0xff]
        %v365 = vld [vmem:[%s138 + $0x638] sm:$0xff]
        %v366 = vld [vmem:[%s138 + $0x640] sm:$0xff]
        %v367 = vld [vmem:[%s138 + $0x648] sm:$0xff]
        %v368 = vld [vmem:[%s138 + $0x650] sm:$0xff]
        %v369 = vld [vmem:[%s138 + $0x658] sm:$0xff]
        %v370 = vld [vmem:[%s138 + $0x660] sm:$0xff]
        %v371 = vld [vmem:[%s138 + $0x668] sm:$0xff]
        %v372 = vld [vmem:[%s138 + $0x670] sm:$0xff]
        %v373 = vld [vmem:[%s138 + $0x678] sm:$0xff]
        %v374 = vld [vmem:[%s138 + $0x680] sm:$0xff]
        %v375 = vld [vmem:[%s138 + $0x688] sm:$0xff]
        %v376 = vld [vmem:[%s138 + $0x690] sm:$0xff]
        %v377 = vld [vmem:[%s138 + $0x698] sm:$0xff]
        %v378 = vld [vmem:[%s138 + $0x6a0] sm:$0xff]
        %v379 = vld [vmem:[%s138 + $0x6a8] sm:$0xff]
        %v380 = vld [vmem:[%s138 + $0x6b0] sm:$0xff]
        %v381 = vld [vmem:[%s138 + $0x6b8] sm:$0xff]
        %v382 = vld [vmem:[%s138 + $0x6c0] sm:$0xff]
        %v383 = vld [vmem:[%s138 + $0x6c8] sm:$0xff]
        %v384 = vld [vmem:[%s138 + $0x6d0] sm:$0xff]
        %v385 = vld [vmem:[%s138 + $0x6d8] sm:$0xff]
        %v386 = vld [vmem:[%s138 + $0x6e0] sm:$0xff]
        %v387 = vld [vmem:[%s138 + $0x6e8] sm:$0xff]
        %v388 = vld [vmem:[%s138 + $0x6f0] sm:$0xff]
        %v389 = vld [vmem:[%s138 + $0x6f8] sm:$0xff]
        %v390 = vld [vmem:[%s138 + $0x700] sm:$0xff]
        %v391 = vld [vmem:[%s138 + $0x708] sm:$0xff]
        %v392 = vld [vmem:[%s138 + $0x710] sm:$0xff]
        %v393 = vld [vmem:[%s138 + $0x718] sm:$0xff]
        %v394 = vld [vmem:[%s138 + $0x720] sm:$0xff]
        %v395 = vld [vmem:[%s138 + $0x728] sm:$0xff]
        %v396 = vld [vmem:[%s138 + $0x730] sm:$0xff]
        %v397 = vld [vmem:[%s138 + $0x738] sm:$0xff]
        %v398 = vld [vmem:[%s138 + $0x740] sm:$0xff]
        %v399 = vld [vmem:[%s138 + $0x748] sm:$0xff]
        %v400 = vld [vmem:[%s138 + $0x750] sm:$0xff]
        %v401 = vld [vmem:[%s138 + $0x758] sm:$0xff]
        %v402 = vld [vmem:[%s138 + $0x760] sm:$0xff]
        %v403 = vld [vmem:[%s138 + $0x768] sm:$0xff]
        %v404 = vld [vmem:[%s138 + $0x770] sm:$0xff]
        %v405 = vld [vmem:[%s138 + $0x778] sm:$0xff]
        %v406 = vld [vmem:[%s138 + $0x780] sm:$0xff]
        %v407 = vld [vmem:[%s138 + $0x788] sm:$0xff]
        %v408 = vld [vmem:[%s138 + $0x790] sm:$0xff]
        %v409 = vld [vmem:[%s138 + $0x798] sm:$0xff]
        %v410 = vld [vmem:[%s138 + $0x7a0] sm:$0xff]
        %v411 = vld [vmem:[%s138 + $0x7a8] sm:$0xff]
        %v412 = vld [vmem:[%s138 + $0x7b0] sm:$0xff]
        %v413 = vld [vmem:[%s138 + $0x7b8] sm:$0xff]
        %v414 = vld [vmem:[%s138 + $0x7c0] sm:$0xff]
        %v415 = vld [vmem:[%s138 + $0x7c8] sm:$0xff]
        %v416 = vld [vmem:[%s138 + $0x7d0] sm:$0xff]
        %v417 = vld [vmem:[%s138 + $0x7d8] sm:$0xff]
        %v418 = vld [vmem:[%s138 + $0x7e0] sm:$0xff]
        %v419 = vld [vmem:[%s138 + $0x7e8] sm:$0xff]
        %v420 = vld [vmem:[%s138 + $0x7f0] sm:$0xff]
        %v421 = vld [vmem:[%s138 + $0x7f8] sm:$0xff]
        %v422 = vld [vmem:[%s138 + $0x800] sm:$0xff]
        %v423 = vld [vmem:[%s138 + $0x808] sm:$0xff]
        %v424 = vld [vmem:[%s138 + $0x810] sm:$0xff]
        %v425 = vld [vmem:[%s138 + $0x818] sm:$0xff]
        %v426 = vld [vmem:[%s138 + $0x820] sm:$0xff]
        %v427 = vld [vmem:[%s138 + $0x828] sm:$0xff]
        %v428 = vld [vmem:[%s138 + $0x830] sm:$0xff]
        %v429 = vld [vmem:[%s138 + $0x838] sm:$0xff]
        %v430 = vld [vmem:[%s138 + $0x840] sm:$0xff]
        %v431 = vld [vmem:[%s138 + $0x848] sm:$0xff]
        %v432 = vld [vmem:[%s138 + $0x850] sm:$0xff]
        %v433 = vld [vmem:[%s138 + $0x858] sm:$0xff]
        %v434 = vld [vmem:[%s138 + $0x860] sm:$0xff]
        %v435 = vld [vmem:[%s138 + $0x868] sm:$0xff]
        %v436 = vld [vmem:[%s138 + $0x870] sm:$0xff]
        %v437 = vld [vmem:[%s138 + $0x878] sm:$0xff]
        %v438 = vld [vmem:[%s138 + $0x880] sm:$0xff]
        %v439 = vld [vmem:[%s138 + $0x888] sm:$0xff]
        %v440 = vld [vmem:[%s138 + $0x890] sm:$0xff]
        %v441 = vld [vmem:[%s138 + $0x898] sm:$0xff]
        %v442 = vld [vmem:[%s138 + $0x8a0] sm:$0xff]
        %v443 = vld [vmem:[%s138 + $0x8a8] sm:$0xff]
        %v444 = vld [vmem:[%s138 + $0x8b0] sm:$0xff]
        %v445 = vld [vmem:[%s138 + $0x8b8] sm:$0xff]
        %v446 = vld [vmem:[%s138 + $0x8c0] sm:$0xff]
        %v447 = vld [vmem:[%s138 + $0x8c8] sm:$0xff]
        %v448 = vld [vmem:[%s138 + $0x8d0] sm:$0xff]
        %v449 = vld [vmem:[%s138 + $0x8d8] sm:$0xff]
        %v450 = vld [vmem:[%s138 + $0x8e0] sm:$0xff]
        %v451 = vld [vmem:[%s138 + $0x8e8] sm:$0xff]
        %v452 = vld [vmem:[%s138 + $0x8f0] sm:$0xff]
        %v453 = vld [vmem:[%s138 + $0x8f8] sm:$0xff]
        %v454 = vld [vmem:[%s138 + $0x900] sm:$0xff]
        %v455 = vld [vmem:[%s138 + $0x908] sm:$0xff]
        %v456 = vld [vmem:[%s138 + $0x910] sm:$0xff]
        %v457 = vld [vmem:[%s138 + $0x918] sm:$0xff]
        %v458 = vld [vmem:[%s138 + $0x920] sm:$0xff]
        %v459 = vld [vmem:[%s138 + $0x928] sm:$0xff]
        %v460 = vld [vmem:[%s138 + $0x930] sm:$0xff]
        %v461 = vld [vmem:[%s138 + $0x938] sm:$0xff]
        %v462 = vld [vmem:[%s138 + $0x940] sm:$0xff]
        %v463 = vld [vmem:[%s138 + $0x948] sm:$0xff]
        %v464 = vld [vmem:[%s138 + $0x950] sm:$0xff]
        %v465 = vld [vmem:[%s138 + $0x958] sm:$0xff]
        %v466 = vld [vmem:[%s138 + $0x960] sm:$0xff]
        %v467 = vld [vmem:[%s138 + $0x968] sm:$0xff]
        %v468 = vld [vmem:[%s138 + $0x970] sm:$0xff]
        %v469 = vld [vmem:[%s138 + $0x978] sm:$0xff]
        %v470 = vld [vmem:[%s138 + $0x980] sm:$0xff]
        %v471 = vld [vmem:[%s138 + $0x988] sm:$0xff]
        %v472 = vld [vmem:[%s138 + $0x990] sm:$0xff]
        %v473 = vld [vmem:[%s138 + $0x998] sm:$0xff]
        %v474 = vld [vmem:[%s138 + $0x9a0] sm:$0xff]
        %v475 = vld [vmem:[%s138 + $0x9a8] sm:$0xff]
        %v476 = vld [vmem:[%s138 + $0x9b0] sm:$0xff]
        %v477 = vld [vmem:[%s138 + $0x9b8] sm:$0xff]
        %v478 = vld [vmem:[%s138 + $0x9c0] sm:$0xff]
        %v479 = vld [vmem:[%s138 + $0x9c8] sm:$0xff]
        %v480 = vld [vmem:[%s138 + $0x9d0] sm:$0xff]
        %v481 = vld [vmem:[%s138 + $0x9d8] sm:$0xff]
        %v482 = vld [vmem:[%s138 + $0x9e0] sm:$0xff]
        %v483 = vld [vmem:[%s138 + $0x9e8] sm:$0xff]
        %v484 = vld [vmem:[%s138 + $0x9f0] sm:$0xff]
        %v485 = vld [vmem:[%s138 + $0x9f8] sm:$0xff]
        %v486 = vld [vmem:[%s138 + $0xa00] sm:$0xff]
        %v487 = vld [vmem:[%s138 + $0xa08] sm:$0xff]
        %v488 = vld [vmem:[%s138 + $0xa10] sm:$0xff]
        %v489 = vld [vmem:[%s138 + $0xa18] sm:$0xff]
        %v490 = vld [vmem:[%s138 + $0xa20] sm:$0xff]
        %v491 = vld [vmem:[%s138 + $0xa28] sm:$0xff]
        %v492 = vld [vmem:[%s138 + $0xa30] sm:$0xff]
        %v493 = vld [vmem:[%s138 + $0xa38] sm:$0xff]
        %v494 = vld [vmem:[%s138 + $0xa40] sm:$0xff]
        %v495 = vld [vmem:[%s138 + $0xa48] sm:$0xff]
        %v496 = vld [vmem:[%s138 + $0xa50] sm:$0xff]
        %v497 = vld [vmem:[%s138 + $0xa58] sm:$0xff]
        %v498 = vld [vmem:[%s138 + $0xa60] sm:$0xff]
        %v499 = vld [vmem:[%s138 + $0xa68] sm:$0xff]
        %v500 = vld [vmem:[%s138 + $0xa70] sm:$0xff]
        %v501 = vld [vmem:[%s138 + $0xa78] sm:$0xff]
        %v502 = vld [vmem:[%s138 + $0xa80] sm:$0xff]
        %v503 = vld [vmem:[%s138 + $0xa88] sm:$0xff]
        %v504 = vld [vmem:[%s138 + $0xa90] sm:$0xff]
        %v505 = vld [vmem:[%s138 + $0xa98] sm:$0xff]
        %v506 = vld [vmem:[%s138 + $0xaa0] sm:$0xff]
        %v507 = vld [vmem:[%s138 + $0xaa8] sm:$0xff]
        %v508 = vld [vmem:[%s138 + $0xab0] sm:$0xff]
        %v509 = vld [vmem:[%s138 + $0xab8] sm:$0xff]
        %v510 = vld [vmem:[%s138 + $0xac0] sm:$0xff]
        %v511 = vld [vmem:[%s138 + $0xac8] sm:$0xff]
        %v512 = vld [vmem:[%s138 + $0xad0] sm:$0xff]
        %v513 = vld [vmem:[%s138 + $0xad8] sm:$0xff]
        %v514 = vld [vmem:[%s138 + $0xae0] sm:$0xff]
        %v515 = vld [vmem:[%s138 + $0xae8] sm:$0xff]
        %v516 = vld [vmem:[%s138 + $0xaf0] sm:$0xff]
        %v517 = vld [vmem:[%s138 + $0xaf8] sm:$0xff]
        %v518 = vld [vmem:[%s138 + $0xb00] sm:$0xff]
        %v519 = vld [vmem:[%s138 + $0xb08] sm:$0xff]
        %v520 = vld [vmem:[%s138 + $0xb10] sm:$0xff]
        %v521 = vld [vmem:[%s138 + $0xb18] sm:$0xff]
        %v522 = vld [vmem:[%s138 + $0xb20] sm:$0xff]
        %v523 = vld [vmem:[%s138 + $0xb28] sm:$0xff]
        %v524 = vld [vmem:[%s138 + $0xb30] sm:$0xff]
        %v525 = vld [vmem:[%s138 + $0xb38] sm:$0xff]
        %v526 = vld [vmem:[%s138 + $0xb40] sm:$0xff]
        %v527 = vld [vmem:[%s138 + $0xb48] sm:$0xff]
        %v528 = vld [vmem:[%s138 + $0xb50] sm:$0xff]
        %v529 = vld [vmem:[%s138 + $0xb58] sm:$0xff]
        %v530 = vld [vmem:[%s138 + $0xb60] sm:$0xff]
        %v531 = vld [vmem:[%s138 + $0xb68] sm:$0xff]
        %v532 = vld [vmem:[%s138 + $0xb70] sm:$0xff]
        %v533 = vld [vmem:[%s138 + $0xb78] sm:$0xff]
        %v534 = vld [vmem:[%s138 + $0xb80] sm:$0xff]
        %v535 = vld [vmem:[%s138 + $0xb88] sm:$0xff]
        %v536 = vld [vmem:[%s138 + $0xb90] sm:$0xff]
        %v537 = vld [vmem:[%s138 + $0xb98] sm:$0xff]
        %v538 = vld [vmem:[%s138 + $0xba0] sm:$0xff]
        %v539 = vld [vmem:[%s138 + $0xba8] sm:$0xff]
        %v540 = vld [vmem:[%s138 + $0xbb0] sm:$0xff]
        %v541 = vld [vmem:[%s138 + $0xbb8] sm:$0xff]
        %v542 = vld [vmem:[%s138 + $0xbc0] sm:$0xff]
        %v543 = vld [vmem:[%s138 + $0xbc8] sm:$0xff]
        %v544 = vld [vmem:[%s138 + $0xbd0] sm:$0xff]
        %v545 = vld [vmem:[%s138 + $0xbd8] sm:$0xff]
        %v546 = vld [vmem:[%s138 + $0xbe0] sm:$0xff]
        %v547 = vld [vmem:[%s138 + $0xbe8] sm:$0xff]
        %v548 = vld [vmem:[%s138 + $0xbf0] sm:$0xff]
        %v549 = vld [vmem:[%s138 + $0xbf8] sm:$0xff]
        %v550 = vld [vmem:[%s138 + $0xc00] sm:$0xff]
        %v551 = vld [vmem:[%s138 + $0xc08] sm:$0xff]
        %v552 = vld [vmem:[%s138 + $0xc10] sm:$0xff]
        %v553 = vld [vmem:[%s138 + $0xc18] sm:$0xff]
        %v554 = vld [vmem:[%s138 + $0xc20] sm:$0xff]
        %v555 = vld [vmem:[%s138 + $0xc28] sm:$0xff]
        %v556 = vld [vmem:[%s138 + $0xc30] sm:$0xff]
        %v557 = vld [vmem:[%s138 + $0xc38] sm:$0xff]
        %v558 = vld [vmem:[%s138 + $0xc40] sm:$0xff]
        %v559 = vld [vmem:[%s138 + $0xc48] sm:$0xff]
        %v560 = vld [vmem:[%s138 + $0xc50] sm:$0xff]
        %v561 = vld [vmem:[%s138 + $0xc58] sm:$0xff]
        %v562 = vld [vmem:[%s138 + $0xc60] sm:$0xff]
        %v563 = vld [vmem:[%s138 + $0xc68] sm:$0xff]
        %v564 = vld [vmem:[%s138 + $0xc70] sm:$0xff]
        %v565 = vld [vmem:[%s138 + $0xc78] sm:$0xff]
        %v566 = vld [vmem:[%s138 + $0xc80] sm:$0xff]
        %v567 = vld [vmem:[%s138 + $0xc88] sm:$0xff]
        %v568 = vld [vmem:[%s138 + $0xc90] sm:$0xff]
        %v569 = vld [vmem:[%s138 + $0xc98] sm:$0xff]
        %v570 = vld [vmem:[%s138 + $0xca0] sm:$0xff]
        %v571 = vld [vmem:[%s138 + $0xca8] sm:$0xff]
        %v572 = vld [vmem:[%s138 + $0xcb0] sm:$0xff]
        %v573 = vld [vmem:[%s138 + $0xcb8] sm:$0xff]
        %v574 = vld [vmem:[%s138 + $0xcc0] sm:$0xff]
        %v575 = vld [vmem:[%s138 + $0xcc8] sm:$0xff]
        %v576 = vld [vmem:[%s138 + $0xcd0] sm:$0xff]
        %v577 = vld [vmem:[%s138 + $0xcd8] sm:$0xff]
        %v578 = vld [vmem:[%s138 + $0xce0] sm:$0xff]
        %v579 = vld [vmem:[%s138 + $0xce8] sm:$0xff]
        %v580 = vld [vmem:[%s138 + $0xcf0] sm:$0xff]
        %v581 = vld [vmem:[%s138 + $0xcf8] sm:$0xff]
        %v582 = vld [vmem:[%s138 + $0xd00] sm:$0xff]
        %v583 = vld [vmem:[%s138 + $0xd08] sm:$0xff]
        %v584 = vld [vmem:[%s138 + $0xd10] sm:$0xff]
        %v585 = vld [vmem:[%s138 + $0xd18] sm:$0xff]
        %v586 = vld [vmem:[%s138 + $0xd20] sm:$0xff]
        %v587 = vld [vmem:[%s138 + $0xd28] sm:$0xff]
        %v588 = vld [vmem:[%s138 + $0xd30] sm:$0xff]
        %v589 = vld [vmem:[%s138 + $0xd38] sm:$0xff]
        %v590 = vld [vmem:[%s138 + $0xd40] sm:$0xff]
        %v591 = vld [vmem:[%s138 + $0xd48] sm:$0xff]
        %v592 = vld [vmem:[%s138 + $0xd50] sm:$0xff]
        %v593 = vld [vmem:[%s138 + $0xd58] sm:$0xff]
        %v594 = vld [vmem:[%s138 + $0xd60] sm:$0xff]
        %v595 = vld [vmem:[%s138 + $0xd68] sm:$0xff]
        %v596 = vld [vmem:[%s138 + $0xd70] sm:$0xff]
        %v597 = vld [vmem:[%s138 + $0xd78] sm:$0xff]
        %v598 = vld [vmem:[%s138 + $0xd80] sm:$0xff]
        %v599 = vld [vmem:[%s138 + $0xd88] sm:$0xff]
        %v600 = vld [vmem:[%s138 + $0xd90] sm:$0xff]
        %v601 = vld [vmem:[%s138 + $0xd98] sm:$0xff]
        %v602 = vld [vmem:[%s138 + $0xda0] sm:$0xff]
        %v603 = vld [vmem:[%s138 + $0xda8] sm:$0xff]
        %v604 = vld [vmem:[%s138 + $0xdb0] sm:$0xff]
        %v605 = vld [vmem:[%s138 + $0xdb8] sm:$0xff]
        %v606 = vld [vmem:[%s138 + $0xdc0] sm:$0xff]
        %v607 = vld [vmem:[%s138 + $0xdc8] sm:$0xff]
        %v608 = vld [vmem:[%s138 + $0xdd0] sm:$0xff]
        %v609 = vld [vmem:[%s138 + $0xdd8] sm:$0xff]
        %v610 = vld [vmem:[%s138 + $0xde0] sm:$0xff]
        %v611 = vld [vmem:[%s138 + $0xde8] sm:$0xff]
        %v612 = vld [vmem:[%s138 + $0xdf0] sm:$0xff]
        %v613 = vld [vmem:[%s138 + $0xdf8] sm:$0xff]
        %v614 = vld [vmem:[%s138 + $0xe00] sm:$0xff]
        %v615 = vld [vmem:[%s138 + $0xe08] sm:$0xff]
        %v616 = vunpack.c.l.bf16 %v166
        %v617 = vunpack.c.h.bf16 %v166
        %v618 = vunpack.c.l.bf16 %v167
        %v619 = vunpack.c.h.bf16 %v167
        %v620 = vunpack.c.l.bf16 %v168
        %v621 = vunpack.c.h.bf16 %v168
        %v622 = vunpack.c.l.bf16 %v169
        %v623 = vunpack.c.h.bf16 %v169
        %v624 = vunpack.c.l.bf16 %v170
        %v625 = vunpack.c.h.bf16 %v170
        %v626 = vunpack.c.l.bf16 %v171
        %v627 = vunpack.c.h.bf16 %v171
        %v628 = vunpack.c.l.bf16 %v172
        %v629 = vunpack.c.h.bf16 %v172
        %v630 = vunpack.c.l.bf16 %v173
        %v631 = vunpack.c.h.bf16 %v173
        %v632 = vunpack.c.l.bf16 %v174
        %v633 = vunpack.c.h.bf16 %v174
        %v634 = vunpack.c.l.bf16 %v175
        %v635 = vunpack.c.h.bf16 %v175
        %v636 = vunpack.c.l.bf16 %v176
        %v637 = vunpack.c.h.bf16 %v176
        %v638 = vunpack.c.l.bf16 %v177
        %v639 = vunpack.c.h.bf16 %v177
        %v640 = vunpack.c.l.bf16 %v178
        %v641 = vunpack.c.h.bf16 %v178
        %v642 = vunpack.c.l.bf16 %v179
        %v643 = vunpack.c.h.bf16 %v179
        %v644 = vunpack.c.l.bf16 %v180
        %v645 = vunpack.c.h.bf16 %v180
        %v646 = vunpack.c.l.bf16 %v181
        %v647 = vunpack.c.h.bf16 %v181
        %v648 = vunpack.c.l.bf16 %v182
        %v649 = vunpack.c.h.bf16 %v182
        %v650 = vunpack.c.l.bf16 %v183
        %v651 = vunpack.c.h.bf16 %v183
        %v652 = vunpack.c.l.bf16 %v184
        %v653 = vunpack.c.h.bf16 %v184
        %v654 = vunpack.c.l.bf16 %v185
        %v655 = vunpack.c.h.bf16 %v185
        %v656 = vunpack.c.l.bf16 %v186
        %v657 = vunpack.c.h.bf16 %v186
        %v658 = vunpack.c.l.bf16 %v187
        %v659 = vunpack.c.h.bf16 %v187
        %v660 = vunpack.c.l.bf16 %v188
        %v661 = vunpack.c.h.bf16 %v188
        %v662 = vunpack.c.l.bf16 %v189
        %v663 = vunpack.c.h.bf16 %v189
        %v664 = vunpack.c.l.bf16 %v190
        %v665 = vunpack.c.h.bf16 %v190
        %v666 = vunpack.c.l.bf16 %v191
        %v667 = vunpack.c.h.bf16 %v191
        %v668 = vunpack.c.l.bf16 %v192
        %v669 = vunpack.c.h.bf16 %v192
        %v670 = vunpack.c.l.bf16 %v193
        %v671 = vunpack.c.h.bf16 %v193
        %v672 = vunpack.c.l.bf16 %v194
        %v673 = vunpack.c.h.bf16 %v194
        %v674 = vunpack.c.l.bf16 %v195
        %v675 = vunpack.c.h.bf16 %v195
        %v676 = vunpack.c.l.bf16 %v196
        %v677 = vunpack.c.h.bf16 %v196
        %v678 = vunpack.c.l.bf16 %v197
        %v679 = vunpack.c.h.bf16 %v197
        %v680 = vunpack.c.l.bf16 %v198
        %v681 = vunpack.c.h.bf16 %v198
        %v682 = vunpack.c.l.bf16 %v199
        %v683 = vunpack.c.h.bf16 %v199
        %v684 = vunpack.c.l.bf16 %v200
        %v685 = vunpack.c.h.bf16 %v200
        %v686 = vunpack.c.l.bf16 %v201
        %v687 = vunpack.c.h.bf16 %v201
        %v688 = vunpack.c.l.bf16 %v202
        %v689 = vunpack.c.h.bf16 %v202
        %v690 = vunpack.c.l.bf16 %v203
        %v691 = vunpack.c.h.bf16 %v203
        %v692 = vunpack.c.l.bf16 %v204
        %v693 = vunpack.c.h.bf16 %v204
        %v694 = vunpack.c.l.bf16 %v205
        %v695 = vunpack.c.h.bf16 %v205
        %v696 = vunpack.c.l.bf16 %v206
        %v697 = vunpack.c.h.bf16 %v206
        %v698 = vunpack.c.l.bf16 %v207
        %v699 = vunpack.c.h.bf16 %v207
        %v700 = vunpack.c.l.bf16 %v208
        %v701 = vunpack.c.h.bf16 %v208
        %v702 = vunpack.c.l.bf16 %v209
        %v703 = vunpack.c.h.bf16 %v209
        %v704 = vunpack.c.l.bf16 %v210
        %v705 = vunpack.c.h.bf16 %v210
        %v706 = vunpack.c.l.bf16 %v211
        %v707 = vunpack.c.h.bf16 %v211
        %v708 = vunpack.c.l.bf16 %v212
        %v709 = vunpack.c.h.bf16 %v212
        %v710 = vunpack.c.l.bf16 %v213
        %v711 = vunpack.c.h.bf16 %v213
        %v712 = vunpack.c.l.bf16 %v214
        %v713 = vunpack.c.h.bf16 %v214
        %v714 = vunpack.c.l.bf16 %v215
        %v715 = vunpack.c.h.bf16 %v215
        %v716 = vunpack.c.l.bf16 %v216
        %v717 = vunpack.c.h.bf16 %v216
        %v718 = vunpack.c.l.bf16 %v217
        %v719 = vunpack.c.h.bf16 %v217
        %v720 = vunpack.c.l.bf16 %v218
        %v721 = vunpack.c.h.bf16 %v218
        %v722 = vunpack.c.l.bf16 %v219
        %v723 = vunpack.c.h.bf16 %v219
        %v724 = vunpack.c.l.bf16 %v220
        %v725 = vunpack.c.h.bf16 %v220
        %v726 = vunpack.c.l.bf16 %v221
        %v727 = vunpack.c.h.bf16 %v221
        %v728 = vunpack.c.l.bf16 %v222
        %v729 = vunpack.c.h.bf16 %v222
        %v730 = vunpack.c.l.bf16 %v223
        %v731 = vunpack.c.h.bf16 %v223
        %v732 = vunpack.c.l.bf16 %v224
        %v733 = vunpack.c.h.bf16 %v224
        %v734 = vunpack.c.l.bf16 %v225
        %v735 = vunpack.c.h.bf16 %v225
        %v736 = vunpack.c.l.bf16 %v226
        %v737 = vunpack.c.h.bf16 %v226
        %v738 = vunpack.c.l.bf16 %v227
        %v739 = vunpack.c.h.bf16 %v227
        %v740 = vunpack.c.l.bf16 %v228
        %v741 = vunpack.c.h.bf16 %v228
        %v742 = vunpack.c.l.bf16 %v229
        %v743 = vunpack.c.h.bf16 %v229
        %v744 = vunpack.c.l.bf16 %v230
        %v745 = vunpack.c.h.bf16 %v230
        %v746 = vunpack.c.l.bf16 %v231
        %v747 = vunpack.c.h.bf16 %v231
        %v748 = vunpack.c.l.bf16 %v232
        %v749 = vunpack.c.h.bf16 %v232
        %v750 = vunpack.c.l.bf16 %v233
        %v751 = vunpack.c.h.bf16 %v233
        %v752 = vunpack.c.l.bf16 %v234
        %v753 = vunpack.c.h.bf16 %v234
        %v754 = vunpack.c.l.bf16 %v235
        %v755 = vunpack.c.h.bf16 %v235
        %v756 = vunpack.c.l.bf16 %v236
        %v757 = vunpack.c.h.bf16 %v236
        %v758 = vunpack.c.l.bf16 %v237
        %v759 = vunpack.c.h.bf16 %v237
        %v760 = vunpack.c.l.bf16 %v238
        %v761 = vunpack.c.h.bf16 %v238
        %v762 = vunpack.c.l.bf16 %v239
        %v763 = vunpack.c.h.bf16 %v239
        %v764 = vunpack.c.l.bf16 %v240
        %v765 = vunpack.c.h.bf16 %v240
        %v766 = vunpack.c.l.bf16 %v241
        %v767 = vunpack.c.h.bf16 %v241
        %v768 = vunpack.c.l.bf16 %v242
        %v769 = vunpack.c.h.bf16 %v242
        %v770 = vunpack.c.l.bf16 %v243
        %v771 = vunpack.c.h.bf16 %v243
        %v772 = vunpack.c.l.bf16 %v244
        %v773 = vunpack.c.h.bf16 %v244
        %v774 = vunpack.c.l.bf16 %v245
        %v775 = vunpack.c.h.bf16 %v245
        %v776 = vunpack.c.l.bf16 %v246
        %v777 = vunpack.c.h.bf16 %v246
        %v778 = vunpack.c.l.bf16 %v247
        %v779 = vunpack.c.h.bf16 %v247
        %v780 = vunpack.c.l.bf16 %v248
        %v781 = vunpack.c.h.bf16 %v248
        %v782 = vunpack.c.l.bf16 %v249
        %v783 = vunpack.c.h.bf16 %v249
        %v784 = vunpack.c.l.bf16 %v250
        %v785 = vunpack.c.h.bf16 %v250
        %v786 = vunpack.c.l.bf16 %v251
        %v787 = vunpack.c.h.bf16 %v251
        %v788 = vunpack.c.l.bf16 %v252
        %v789 = vunpack.c.h.bf16 %v252
        %v790 = vunpack.c.l.bf16 %v253
        %v791 = vunpack.c.h.bf16 %v253
        %v792 = vunpack.c.l.bf16 %v254
        %v793 = vunpack.c.h.bf16 %v254
        %v794 = vunpack.c.l.bf16 %v255
        %v795 = vunpack.c.h.bf16 %v255
        %v796 = vunpack.c.l.bf16 %v256
        %v797 = vunpack.c.h.bf16 %v256
        %v798 = vunpack.c.l.bf16 %v257
        %v799 = vunpack.c.h.bf16 %v257
        %v800 = vunpack.c.l.bf16 %v258
        %v801 = vunpack.c.h.bf16 %v258
        %v802 = vunpack.c.l.bf16 %v259
        %v803 = vunpack.c.h.bf16 %v259
        %v804 = vunpack.c.l.bf16 %v260
        %v805 = vunpack.c.h.bf16 %v260
        %v806 = vunpack.c.l.bf16 %v261
        %v807 = vunpack.c.h.bf16 %v261
        %v808 = vunpack.c.l.bf16 %v262
        %v809 = vunpack.c.h.bf16 %v262
        %v810 = vunpack.c.l.bf16 %v263
        %v811 = vunpack.c.h.bf16 %v263
        %v812 = vunpack.c.l.bf16 %v264
        %v813 = vunpack.c.h.bf16 %v264
        %v814 = vunpack.c.l.bf16 %v265
        %v815 = vunpack.c.h.bf16 %v265
        %v816 = vunpack.c.l.bf16 %v266
        %v817 = vunpack.c.h.bf16 %v266
        %v818 = vunpack.c.l.bf16 %v267
        %v819 = vunpack.c.h.bf16 %v267
        %v820 = vunpack.c.l.bf16 %v268
        %v821 = vunpack.c.h.bf16 %v268
        %v822 = vunpack.c.l.bf16 %v269
        %v823 = vunpack.c.h.bf16 %v269
        %v824 = vunpack.c.l.bf16 %v270
        %v825 = vunpack.c.h.bf16 %v270
        %v826 = vunpack.c.l.bf16 %v271
        %v827 = vunpack.c.h.bf16 %v271
        %v828 = vunpack.c.l.bf16 %v272
        %v829 = vunpack.c.h.bf16 %v272
        %v830 = vunpack.c.l.bf16 %v273
        %v831 = vunpack.c.h.bf16 %v273
        %v832 = vunpack.c.l.bf16 %v274
        %v833 = vunpack.c.h.bf16 %v274
        %v834 = vunpack.c.l.bf16 %v275
        %v835 = vunpack.c.h.bf16 %v275
        %v836 = vunpack.c.l.bf16 %v276
        %v837 = vunpack.c.h.bf16 %v276
        %v838 = vunpack.c.l.bf16 %v277
        %v839 = vunpack.c.h.bf16 %v277
        %v840 = vunpack.c.l.bf16 %v278
        %v841 = vunpack.c.h.bf16 %v278
        %v842 = vunpack.c.l.bf16 %v279
        %v843 = vunpack.c.h.bf16 %v279
        %v844 = vunpack.c.l.bf16 %v280
        %v845 = vunpack.c.h.bf16 %v280
        %v846 = vunpack.c.l.bf16 %v281
        %v847 = vunpack.c.h.bf16 %v281
        %v848 = vunpack.c.l.bf16 %v282
        %v849 = vunpack.c.h.bf16 %v282
        %v850 = vunpack.c.l.bf16 %v283
        %v851 = vunpack.c.h.bf16 %v283
        %v852 = vunpack.c.l.bf16 %v284
        %v853 = vunpack.c.h.bf16 %v284
        %v854 = vunpack.c.l.bf16 %v285
        %v855 = vunpack.c.h.bf16 %v285
        %v856 = vunpack.c.l.bf16 %v286
        %v857 = vunpack.c.h.bf16 %v286
        %v858 = vunpack.c.l.bf16 %v287
        %v859 = vunpack.c.h.bf16 %v287
        %v860 = vunpack.c.l.bf16 %v288
        %v861 = vunpack.c.h.bf16 %v288
        %v862 = vunpack.c.l.bf16 %v289
        %v863 = vunpack.c.h.bf16 %v289
        %v864 = vunpack.c.l.bf16 %v290
        %v865 = vunpack.c.h.bf16 %v290
        %v866 = vunpack.c.l.bf16 %v291
        %v867 = vunpack.c.h.bf16 %v291
        %v868 = vunpack.c.l.bf16 %v292
        %v869 = vunpack.c.h.bf16 %v292
        %v870 = vunpack.c.l.bf16 %v293
        %v871 = vunpack.c.h.bf16 %v293
        %v872 = vunpack.c.l.bf16 %v294
        %v873 = vunpack.c.h.bf16 %v294
        %v874 = vunpack.c.l.bf16 %v295
        %v875 = vunpack.c.h.bf16 %v295
        %v876 = vunpack.c.l.bf16 %v296
        %v877 = vunpack.c.h.bf16 %v296
        %v878 = vunpack.c.l.bf16 %v297
        %v879 = vunpack.c.h.bf16 %v297
        %v880 = vunpack.c.l.bf16 %v298
        %v881 = vunpack.c.h.bf16 %v298
        %v882 = vunpack.c.l.bf16 %v299
        %v883 = vunpack.c.h.bf16 %v299
        %v884 = vunpack.c.l.bf16 %v300
        %v885 = vunpack.c.h.bf16 %v300
        %v886 = vunpack.c.l.bf16 %v301
        %v887 = vunpack.c.h.bf16 %v301
        %v888 = vunpack.c.l.bf16 %v302
        %v889 = vunpack.c.h.bf16 %v302
        %v890 = vunpack.c.l.bf16 %v303
        %v891 = vunpack.c.h.bf16 %v303
        %v892 = vunpack.c.l.bf16 %v304
        %v893 = vunpack.c.h.bf16 %v304
        %v894 = vunpack.c.l.bf16 %v305
        %v895 = vunpack.c.h.bf16 %v305
        %v896 = vunpack.c.l.bf16 %v306
        %v897 = vunpack.c.h.bf16 %v306
        %v898 = vunpack.c.l.bf16 %v307
        %v899 = vunpack.c.h.bf16 %v307
        %v900 = vunpack.c.l.bf16 %v308
        %v901 = vunpack.c.h.bf16 %v308
        %v902 = vunpack.c.l.bf16 %v309
        %v903 = vunpack.c.h.bf16 %v309
        %v904 = vunpack.c.l.bf16 %v310
        %v905 = vunpack.c.h.bf16 %v310
        %v906 = vunpack.c.l.bf16 %v311
        %v907 = vunpack.c.h.bf16 %v311
        %v908 = vunpack.c.l.bf16 %v312
        %v909 = vunpack.c.h.bf16 %v312
        %v910 = vunpack.c.l.bf16 %v313
        %v911 = vunpack.c.h.bf16 %v313
        %v912 = vunpack.c.l.bf16 %v314
        %v913 = vunpack.c.h.bf16 %v314
        %v914 = vunpack.c.l.bf16 %v315
        %v915 = vunpack.c.h.bf16 %v315
        %v916 = vunpack.c.l.bf16 %v316
        %v917 = vunpack.c.h.bf16 %v316
        %v918 = vunpack.c.l.bf16 %v317
        %v919 = vunpack.c.h.bf16 %v317
        %v920 = vunpack.c.l.bf16 %v318
        %v921 = vunpack.c.h.bf16 %v318
        %v922 = vunpack.c.l.bf16 %v319
        %v923 = vunpack.c.h.bf16 %v319
        %v924 = vunpack.c.l.bf16 %v320
        %v925 = vunpack.c.h.bf16 %v320
        %v926 = vunpack.c.l.bf16 %v321
        %v927 = vunpack.c.h.bf16 %v321
        %v928 = vunpack.c.l.bf16 %v322
        %v929 = vunpack.c.h.bf16 %v322
        %v930 = vunpack.c.l.bf16 %v323
        %v931 = vunpack.c.h.bf16 %v323
        %v932 = vunpack.c.l.bf16 %v324
        %v933 = vunpack.c.h.bf16 %v324
        %v934 = vunpack.c.l.bf16 %v325
        %v935 = vunpack.c.h.bf16 %v325
        %v936 = vunpack.c.l.bf16 %v326
        %v937 = vunpack.c.h.bf16 %v326
        %v938 = vunpack.c.l.bf16 %v327
        %v939 = vunpack.c.h.bf16 %v327
        %v940 = vunpack.c.l.bf16 %v328
        %v941 = vunpack.c.h.bf16 %v328
        %v942 = vunpack.c.l.bf16 %v329
        %v943 = vunpack.c.h.bf16 %v329
        %v944 = vunpack.c.l.bf16 %v330
        %v945 = vunpack.c.h.bf16 %v330
        %v946 = vunpack.c.l.bf16 %v331
        %v947 = vunpack.c.h.bf16 %v331
        %v948 = vunpack.c.l.bf16 %v332
        %v949 = vunpack.c.h.bf16 %v332
        %v950 = vunpack.c.l.bf16 %v333
        %v951 = vunpack.c.h.bf16 %v333
        %v952 = vunpack.c.l.bf16 %v334
        %v953 = vunpack.c.h.bf16 %v334
        %v954 = vunpack.c.l.bf16 %v335
        %v955 = vunpack.c.h.bf16 %v335
        %v956 = vunpack.c.l.bf16 %v336
        %v957 = vunpack.c.h.bf16 %v336
        %v958 = vunpack.c.l.bf16 %v337
        %v959 = vunpack.c.h.bf16 %v337
        %v960 = vunpack.c.l.bf16 %v338
        %v961 = vunpack.c.h.bf16 %v338
        %v962 = vunpack.c.l.bf16 %v339
        %v963 = vunpack.c.h.bf16 %v339
        %v964 = vunpack.c.l.bf16 %v340
        %v965 = vunpack.c.h.bf16 %v340
        %v966 = vunpack.c.l.bf16 %v341
        %v967 = vunpack.c.h.bf16 %v341
        %v968 = vunpack.c.l.bf16 %v342
        %v969 = vunpack.c.h.bf16 %v342
        %v970 = vunpack.c.l.bf16 %v343
        %v971 = vunpack.c.h.bf16 %v343
        %v972 = vunpack.c.l.bf16 %v344
        %v973 = vunpack.c.h.bf16 %v344
        %v974 = vunpack.c.l.bf16 %v345
        %v975 = vunpack.c.h.bf16 %v345
        %v976 = vunpack.c.l.bf16 %v346
        %v977 = vunpack.c.h.bf16 %v346
        %v978 = vunpack.c.l.bf16 %v347
        %v979 = vunpack.c.h.bf16 %v347
        %v980 = vunpack.c.l.bf16 %v348
        %v981 = vunpack.c.h.bf16 %v348
        %v982 = vunpack.c.l.bf16 %v349
        %v983 = vunpack.c.h.bf16 %v349
        %v984 = vunpack.c.l.bf16 %v350
        %v985 = vunpack.c.h.bf16 %v350
        %v986 = vunpack.c.l.bf16 %v351
        %v987 = vunpack.c.h.bf16 %v351
        %v988 = vunpack.c.l.bf16 %v352
        %v989 = vunpack.c.h.bf16 %v352
        %v990 = vunpack.c.l.bf16 %v353
        %v991 = vunpack.c.h.bf16 %v353
        %v992 = vunpack.c.l.bf16 %v354
        %v993 = vunpack.c.h.bf16 %v354
        %v994 = vunpack.c.l.bf16 %v355
        %v995 = vunpack.c.h.bf16 %v355
        %v996 = vunpack.c.l.bf16 %v356
        %v997 = vunpack.c.h.bf16 %v356
        %v998 = vunpack.c.l.bf16 %v357
        %v999 = vunpack.c.h.bf16 %v357
        %v1000 = vunpack.c.l.bf16 %v358
        %v1001 = vunpack.c.h.bf16 %v358
        %v1002 = vunpack.c.l.bf16 %v359
        %v1003 = vunpack.c.h.bf16 %v359
        %v1004 = vunpack.c.l.bf16 %v360
        %v1005 = vunpack.c.h.bf16 %v360
        %v1006 = vunpack.c.l.bf16 %v361
        %v1007 = vunpack.c.h.bf16 %v361
        %v1008 = vunpack.c.l.bf16 %v362
        %v1009 = vunpack.c.h.bf16 %v362
        %v1010 = vunpack.c.l.bf16 %v363
        %v1011 = vunpack.c.h.bf16 %v363
        %v1012 = vunpack.c.l.bf16 %v364
        %v1013 = vunpack.c.h.bf16 %v364
        %v1014 = vunpack.c.l.bf16 %v365
        %v1015 = vunpack.c.h.bf16 %v365
        %v1016 = vunpack.c.l.bf16 %v366
        %v1017 = vunpack.c.h.bf16 %v366
        %v1018 = vunpack.c.l.bf16 %v367
        %v1019 = vunpack.c.h.bf16 %v367
        %v1020 = vunpack.c.l.bf16 %v368
        %v1021 = vunpack.c.h.bf16 %v368
        %v1022 = vunpack.c.l.bf16 %v369
        %v1023 = vunpack.c.h.bf16 %v369
        %v1024 = vunpack.c.l.bf16 %v370
        %v1025 = vunpack.c.h.bf16 %v370
        %v1026 = vunpack.c.l.bf16 %v371
        %v1027 = vunpack.c.h.bf16 %v371
        %v1028 = vunpack.c.l.bf16 %v372
        %v1029 = vunpack.c.h.bf16 %v372
        %v1030 = vunpack.c.l.bf16 %v373
        %v1031 = vunpack.c.h.bf16 %v373
        %v1032 = vunpack.c.l.bf16 %v374
        %v1033 = vunpack.c.h.bf16 %v374
        %v1034 = vunpack.c.l.bf16 %v375
        %v1035 = vunpack.c.h.bf16 %v375
        %v1036 = vunpack.c.l.bf16 %v376
        %v1037 = vunpack.c.h.bf16 %v376
        %v1038 = vunpack.c.l.bf16 %v377
        %v1039 = vunpack.c.h.bf16 %v377
        %v1040 = vunpack.c.l.bf16 %v378
        %v1041 = vunpack.c.h.bf16 %v378
        %v1042 = vunpack.c.l.bf16 %v379
        %v1043 = vunpack.c.h.bf16 %v379
        %v1044 = vunpack.c.l.bf16 %v380
        %v1045 = vunpack.c.h.bf16 %v380
        %v1046 = vunpack.c.l.bf16 %v381
        %v1047 = vunpack.c.h.bf16 %v381
        %v1048 = vunpack.c.l.bf16 %v382
        %v1049 = vunpack.c.h.bf16 %v382
        %v1050 = vunpack.c.l.bf16 %v383
        %v1051 = vunpack.c.h.bf16 %v383
        %v1052 = vunpack.c.l.bf16 %v384
        %v1053 = vunpack.c.h.bf16 %v384
        %v1054 = vunpack.c.l.bf16 %v385
        %v1055 = vunpack.c.h.bf16 %v385
        %v1056 = vunpack.c.l.bf16 %v386
        %v1057 = vunpack.c.h.bf16 %v386
        %v1058 = vunpack.c.l.bf16 %v387
        %v1059 = vunpack.c.h.bf16 %v387
        %v1060 = vunpack.c.l.bf16 %v388
        %v1061 = vunpack.c.h.bf16 %v388
        %v1062 = vunpack.c.l.bf16 %v389
        %v1063 = vunpack.c.h.bf16 %v389
        %v1064 = vunpack.c.l.bf16 %v390
        %v1065 = vunpack.c.h.bf16 %v390
        %v1066 = vunpack.c.l.bf16 %v391
        %v1067 = vunpack.c.h.bf16 %v391
        %v1068 = vunpack.c.l.bf16 %v392
        %v1069 = vunpack.c.h.bf16 %v392
        %v1070 = vunpack.c.l.bf16 %v393
        %v1071 = vunpack.c.h.bf16 %v393
        %v1072 = vunpack.c.l.bf16 %v394
        %v1073 = vunpack.c.h.bf16 %v394
        %v1074 = vunpack.c.l.bf16 %v395
        %v1075 = vunpack.c.h.bf16 %v395
        %v1076 = vunpack.c.l.bf16 %v396
        %v1077 = vunpack.c.h.bf16 %v396
        %v1078 = vunpack.c.l.bf16 %v397
        %v1079 = vunpack.c.h.bf16 %v397
        %v1080 = vunpack.c.l.bf16 %v398
        %v1081 = vunpack.c.h.bf16 %v398
        %v1082 = vunpack.c.l.bf16 %v399
        %v1083 = vunpack.c.h.bf16 %v399
        %v1084 = vunpack.c.l.bf16 %v400
        %v1085 = vunpack.c.h.bf16 %v400
        %v1086 = vunpack.c.l.bf16 %v401
        %v1087 = vunpack.c.h.bf16 %v401
        %v1088 = vunpack.c.l.bf16 %v402
        %v1089 = vunpack.c.h.bf16 %v402
        %v1090 = vunpack.c.l.bf16 %v403
        %v1091 = vunpack.c.h.bf16 %v403
        %v1092 = vunpack.c.l.bf16 %v404
        %v1093 = vunpack.c.h.bf16 %v404
        %v1094 = vunpack.c.l.bf16 %v405
        %v1095 = vunpack.c.h.bf16 %v405
        %v1096 = vunpack.c.l.bf16 %v406
        %v1097 = vunpack.c.h.bf16 %v406
        %v1098 = vunpack.c.l.bf16 %v407
        %v1099 = vunpack.c.h.bf16 %v407
        %v1100 = vunpack.c.l.bf16 %v408
        %v1101 = vunpack.c.h.bf16 %v408
        %v1102 = vunpack.c.l.bf16 %v409
        %v1103 = vunpack.c.h.bf16 %v409
        %v1104 = vunpack.c.l.bf16 %v410
        %v1105 = vunpack.c.h.bf16 %v410
        %v1106 = vunpack.c.l.bf16 %v411
        %v1107 = vunpack.c.h.bf16 %v411
        %v1108 = vunpack.c.l.bf16 %v412
        %v1109 = vunpack.c.h.bf16 %v412
        %v1110 = vunpack.c.l.bf16 %v413
        %v1111 = vunpack.c.h.bf16 %v413
        %v1112 = vunpack.c.l.bf16 %v414
        %v1113 = vunpack.c.h.bf16 %v414
        %v1114 = vunpack.c.l.bf16 %v415
        %v1115 = vunpack.c.h.bf16 %v415
        %v1116 = vunpack.c.l.bf16 %v416
        %v1117 = vunpack.c.h.bf16 %v416
        %v1118 = vunpack.c.l.bf16 %v417
        %v1119 = vunpack.c.h.bf16 %v417
        %v1120 = vunpack.c.l.bf16 %v418
        %v1121 = vunpack.c.h.bf16 %v418
        %v1122 = vunpack.c.l.bf16 %v419
        %v1123 = vunpack.c.h.bf16 %v419
        %v1124 = vunpack.c.l.bf16 %v420
        %v1125 = vunpack.c.h.bf16 %v420
        %v1126 = vunpack.c.l.bf16 %v421
        %v1127 = vunpack.c.h.bf16 %v421
        %v1128 = vunpack.c.l.bf16 %v422
        %v1129 = vunpack.c.h.bf16 %v422
        %v1130 = vunpack.c.l.bf16 %v423
        %v1131 = vunpack.c.h.bf16 %v423
        %v1132 = vunpack.c.l.bf16 %v424
        %v1133 = vunpack.c.h.bf16 %v424
        %v1134 = vunpack.c.l.bf16 %v425
        %v1135 = vunpack.c.h.bf16 %v425
        %v1136 = vunpack.c.l.bf16 %v426
        %v1137 = vunpack.c.h.bf16 %v426
        %v1138 = vunpack.c.l.bf16 %v427
        %v1139 = vunpack.c.h.bf16 %v427
        %v1140 = vunpack.c.l.bf16 %v428
        %v1141 = vunpack.c.h.bf16 %v428
        %v1142 = vunpack.c.l.bf16 %v429
        %v1143 = vunpack.c.h.bf16 %v429
        %v1144 = vunpack.c.l.bf16 %v430
        %v1145 = vunpack.c.h.bf16 %v430
        %v1146 = vunpack.c.l.bf16 %v431
        %v1147 = vunpack.c.h.bf16 %v431
        %v1148 = vunpack.c.l.bf16 %v432
        %v1149 = vunpack.c.h.bf16 %v432
        %v1150 = vunpack.c.l.bf16 %v433
        %v1151 = vunpack.c.h.bf16 %v433
        %v1152 = vunpack.c.l.bf16 %v434
        %v1153 = vunpack.c.h.bf16 %v434
        %v1154 = vunpack.c.l.bf16 %v435
        %v1155 = vunpack.c.h.bf16 %v435
        %v1156 = vunpack.c.l.bf16 %v436
        %v1157 = vunpack.c.h.bf16 %v436
        %v1158 = vunpack.c.l.bf16 %v437
        %v1159 = vunpack.c.h.bf16 %v437
        %v1160 = vunpack.c.l.bf16 %v438
        %v1161 = vunpack.c.h.bf16 %v438
        %v1162 = vunpack.c.l.bf16 %v439
        %v1163 = vunpack.c.h.bf16 %v439
        %v1164 = vunpack.c.l.bf16 %v440
        %v1165 = vunpack.c.h.bf16 %v440
        %v1166 = vunpack.c.l.bf16 %v441
        %v1167 = vunpack.c.h.bf16 %v441
        %v1168 = vunpack.c.l.bf16 %v442
        %v1169 = vunpack.c.h.bf16 %v442
        %v1170 = vunpack.c.l.bf16 %v443
        %v1171 = vunpack.c.h.bf16 %v443
        %v1172 = vunpack.c.l.bf16 %v444
        %v1173 = vunpack.c.h.bf16 %v444
        %v1174 = vunpack.c.l.bf16 %v445
        %v1175 = vunpack.c.h.bf16 %v445
        %v1176 = vunpack.c.l.bf16 %v446
        %v1177 = vunpack.c.h.bf16 %v446
        %v1178 = vunpack.c.l.bf16 %v447
        %v1179 = vunpack.c.h.bf16 %v447
        %v1180 = vunpack.c.l.bf16 %v448
        %v1181 = vunpack.c.h.bf16 %v448
        %v1182 = vunpack.c.l.bf16 %v449
        %v1183 = vunpack.c.h.bf16 %v449
        %v1184 = vunpack.c.l.bf16 %v450
        %v1185 = vunpack.c.h.bf16 %v450
        %v1186 = vunpack.c.l.bf16 %v451
        %v1187 = vunpack.c.h.bf16 %v451
        %v1188 = vunpack.c.l.bf16 %v452
        %v1189 = vunpack.c.h.bf16 %v452
        %v1190 = vunpack.c.l.bf16 %v453
        %v1191 = vunpack.c.h.bf16 %v453
        %v1192 = vunpack.c.l.bf16 %v454
        %v1193 = vunpack.c.h.bf16 %v454
        %v1194 = vunpack.c.l.bf16 %v455
        %v1195 = vunpack.c.h.bf16 %v455
        %v1196 = vunpack.c.l.bf16 %v456
        %v1197 = vunpack.c.h.bf16 %v456
        %v1198 = vunpack.c.l.bf16 %v457
        %v1199 = vunpack.c.h.bf16 %v457
        %v1200 = vunpack.c.l.bf16 %v458
        %v1201 = vunpack.c.h.bf16 %v458
        %v1202 = vunpack.c.l.bf16 %v459
        %v1203 = vunpack.c.h.bf16 %v459
        %v1204 = vunpack.c.l.bf16 %v460
        %v1205 = vunpack.c.h.bf16 %v460
        %v1206 = vunpack.c.l.bf16 %v461
        %v1207 = vunpack.c.h.bf16 %v461
        %v1208 = vunpack.c.l.bf16 %v462
        %v1209 = vunpack.c.h.bf16 %v462
        %v1210 = vunpack.c.l.bf16 %v463
        %v1211 = vunpack.c.h.bf16 %v463
        %v1212 = vunpack.c.l.bf16 %v464
        %v1213 = vunpack.c.h.bf16 %v464
        %v1214 = vunpack.c.l.bf16 %v465
        %v1215 = vunpack.c.h.bf16 %v465
        %v1216 = vunpack.c.l.bf16 %v466
        %v1217 = vunpack.c.h.bf16 %v466
        %v1218 = vunpack.c.l.bf16 %v467
        %v1219 = vunpack.c.h.bf16 %v467
        %v1220 = vunpack.c.l.bf16 %v468
        %v1221 = vunpack.c.h.bf16 %v468
        %v1222 = vunpack.c.l.bf16 %v469
        %v1223 = vunpack.c.h.bf16 %v469
        %v1224 = vunpack.c.l.bf16 %v470
        %v1225 = vunpack.c.h.bf16 %v470
        %v1226 = vunpack.c.l.bf16 %v471
        %v1227 = vunpack.c.h.bf16 %v471
        %v1228 = vunpack.c.l.bf16 %v472
        %v1229 = vunpack.c.h.bf16 %v472
        %v1230 = vunpack.c.l.bf16 %v473
        %v1231 = vunpack.c.h.bf16 %v473
        %v1232 = vunpack.c.l.bf16 %v474
        %v1233 = vunpack.c.h.bf16 %v474
        %v1234 = vunpack.c.l.bf16 %v475
        %v1235 = vunpack.c.h.bf16 %v475
        %v1236 = vunpack.c.l.bf16 %v476
        %v1237 = vunpack.c.h.bf16 %v476
        %v1238 = vunpack.c.l.bf16 %v477
        %v1239 = vunpack.c.h.bf16 %v477
        %v1240 = vunpack.c.l.bf16 %v478
        %v1241 = vunpack.c.h.bf16 %v478
        %v1242 = vunpack.c.l.bf16 %v479
        %v1243 = vunpack.c.h.bf16 %v479
        %v1244 = vunpack.c.l.bf16 %v480
        %v1245 = vunpack.c.h.bf16 %v480
        %v1246 = vunpack.c.l.bf16 %v481
        %v1247 = vunpack.c.h.bf16 %v481
        %v1248 = vunpack.c.l.bf16 %v482
        %v1249 = vunpack.c.h.bf16 %v482
        %v1250 = vunpack.c.l.bf16 %v483
        %v1251 = vunpack.c.h.bf16 %v483
        %v1252 = vunpack.c.l.bf16 %v484
        %v1253 = vunpack.c.h.bf16 %v484
        %v1254 = vunpack.c.l.bf16 %v485
        %v1255 = vunpack.c.h.bf16 %v485
        %v1256 = vunpack.c.l.bf16 %v486
        %v1257 = vunpack.c.h.bf16 %v486
        %v1258 = vunpack.c.l.bf16 %v487
        %v1259 = vunpack.c.h.bf16 %v487
        %v1260 = vunpack.c.l.bf16 %v488
        %v1261 = vunpack.c.h.bf16 %v488
        %v1262 = vunpack.c.l.bf16 %v489
        %v1263 = vunpack.c.h.bf16 %v489
        %v1264 = vunpack.c.l.bf16 %v490
        %v1265 = vunpack.c.h.bf16 %v490
        %v1266 = vunpack.c.l.bf16 %v491
        %v1267 = vunpack.c.h.bf16 %v491
        %v1268 = vunpack.c.l.bf16 %v492
        %v1269 = vunpack.c.h.bf16 %v492
        %v1270 = vunpack.c.l.bf16 %v493
        %v1271 = vunpack.c.h.bf16 %v493
        %v1272 = vunpack.c.l.bf16 %v494
        %v1273 = vunpack.c.h.bf16 %v494
        %v1274 = vunpack.c.l.bf16 %v495
        %v1275 = vunpack.c.h.bf16 %v495
        %v1276 = vunpack.c.l.bf16 %v496
        %v1277 = vunpack.c.h.bf16 %v496
        %v1278 = vunpack.c.l.bf16 %v497
        %v1279 = vunpack.c.h.bf16 %v497
        %v1280 = vunpack.c.l.bf16 %v498
        %v1281 = vunpack.c.h.bf16 %v498
        %v1282 = vunpack.c.l.bf16 %v499
        %v1283 = vunpack.c.h.bf16 %v499
        %v1284 = vunpack.c.l.bf16 %v500
        %v1285 = vunpack.c.h.bf16 %v500
        %v1286 = vunpack.c.l.bf16 %v501
        %v1287 = vunpack.c.h.bf16 %v501
        %v1288 = vunpack.c.l.bf16 %v502
        %v1289 = vunpack.c.h.bf16 %v502
        %v1290 = vunpack.c.l.bf16 %v503
        %v1291 = vunpack.c.h.bf16 %v503
        %v1292 = vunpack.c.l.bf16 %v504
        %v1293 = vunpack.c.h.bf16 %v504
        %v1294 = vunpack.c.l.bf16 %v505
        %v1295 = vunpack.c.h.bf16 %v505
        %v1296 = vunpack.c.l.bf16 %v506
        %v1297 = vunpack.c.h.bf16 %v506
        %v1298 = vunpack.c.l.bf16 %v507
        %v1299 = vunpack.c.h.bf16 %v507
        %v1300 = vunpack.c.l.bf16 %v508
        %v1301 = vunpack.c.h.bf16 %v508
        %v1302 = vunpack.c.l.bf16 %v509
        %v1303 = vunpack.c.h.bf16 %v509
        %v1304 = vunpack.c.l.bf16 %v510
        %v1305 = vunpack.c.h.bf16 %v510
        %v1306 = vunpack.c.l.bf16 %v511
        %v1307 = vunpack.c.h.bf16 %v511
        %v1308 = vunpack.c.l.bf16 %v512
        %v1309 = vunpack.c.h.bf16 %v512
        %v1310 = vunpack.c.l.bf16 %v513
        %v1311 = vunpack.c.h.bf16 %v513
        %v1312 = vunpack.c.l.bf16 %v514
        %v1313 = vunpack.c.h.bf16 %v514
        %v1314 = vunpack.c.l.bf16 %v515
        %v1315 = vunpack.c.h.bf16 %v515
        %v1316 = vunpack.c.l.bf16 %v516
        %v1317 = vunpack.c.h.bf16 %v516
        %v1318 = vunpack.c.l.bf16 %v517
        %v1319 = vunpack.c.h.bf16 %v517
        %v1320 = vunpack.c.l.bf16 %v518
        %v1321 = vunpack.c.h.bf16 %v518
        %v1322 = vunpack.c.l.bf16 %v519
        %v1323 = vunpack.c.h.bf16 %v519
        %v1324 = vunpack.c.l.bf16 %v520
        %v1325 = vunpack.c.h.bf16 %v520
        %v1326 = vunpack.c.l.bf16 %v521
        %v1327 = vunpack.c.h.bf16 %v521
        %v1328 = vunpack.c.l.bf16 %v522
        %v1329 = vunpack.c.h.bf16 %v522
        %v1330 = vunpack.c.l.bf16 %v523
        %v1331 = vunpack.c.h.bf16 %v523
        %v1332 = vunpack.c.l.bf16 %v524
        %v1333 = vunpack.c.h.bf16 %v524
        %v1334 = vunpack.c.l.bf16 %v525
        %v1335 = vunpack.c.h.bf16 %v525
        %v1336 = vunpack.c.l.bf16 %v526
        %v1337 = vunpack.c.h.bf16 %v526
        %v1338 = vunpack.c.l.bf16 %v527
        %v1339 = vunpack.c.h.bf16 %v527
        %v1340 = vunpack.c.l.bf16 %v528
        %v1341 = vunpack.c.h.bf16 %v528
        %v1342 = vunpack.c.l.bf16 %v529
        %v1343 = vunpack.c.h.bf16 %v529
        %v1344 = vunpack.c.l.bf16 %v530
        %v1345 = vunpack.c.h.bf16 %v530
        %v1346 = vunpack.c.l.bf16 %v531
        %v1347 = vunpack.c.h.bf16 %v531
        %v1348 = vunpack.c.l.bf16 %v532
        %v1349 = vunpack.c.h.bf16 %v532
        %v1350 = vunpack.c.l.bf16 %v533
        %v1351 = vunpack.c.h.bf16 %v533
        %v1352 = vunpack.c.l.bf16 %v534
        %v1353 = vunpack.c.h.bf16 %v534
        %v1354 = vunpack.c.l.bf16 %v535
        %v1355 = vunpack.c.h.bf16 %v535
        %v1356 = vunpack.c.l.bf16 %v536
        %v1357 = vunpack.c.h.bf16 %v536
        %v1358 = vunpack.c.l.bf16 %v537
        %v1359 = vunpack.c.h.bf16 %v537
        %v1360 = vunpack.c.l.bf16 %v538
        %v1361 = vunpack.c.h.bf16 %v538
        %v1362 = vunpack.c.l.bf16 %v539
        %v1363 = vunpack.c.h.bf16 %v539
        %v1364 = vunpack.c.l.bf16 %v540
        %v1365 = vunpack.c.h.bf16 %v540
        %v1366 = vunpack.c.l.bf16 %v541
        %v1367 = vunpack.c.h.bf16 %v541
        %v1368 = vunpack.c.l.bf16 %v542
        %v1369 = vunpack.c.h.bf16 %v542
        %v1370 = vunpack.c.l.bf16 %v543
        %v1371 = vunpack.c.h.bf16 %v543
        %v1372 = vunpack.c.l.bf16 %v544
        %v1373 = vunpack.c.h.bf16 %v544
        %v1374 = vunpack.c.l.bf16 %v545
        %v1375 = vunpack.c.h.bf16 %v545
        %v1376 = vunpack.c.l.bf16 %v546
        %v1377 = vunpack.c.h.bf16 %v546
        %v1378 = vunpack.c.l.bf16 %v547
        %v1379 = vunpack.c.h.bf16 %v547
        %v1380 = vunpack.c.l.bf16 %v548
        %v1381 = vunpack.c.h.bf16 %v548
        %v1382 = vunpack.c.l.bf16 %v549
        %v1383 = vunpack.c.h.bf16 %v549
        %v1384 = vunpack.c.l.bf16 %v550
        %v1385 = vunpack.c.h.bf16 %v550
        %v1386 = vunpack.c.l.bf16 %v551
        %v1387 = vunpack.c.h.bf16 %v551
        %v1388 = vunpack.c.l.bf16 %v552
        %v1389 = vunpack.c.h.bf16 %v552
        %v1390 = vunpack.c.l.bf16 %v553
        %v1391 = vunpack.c.h.bf16 %v553
        %v1392 = vunpack.c.l.bf16 %v554
        %v1393 = vunpack.c.h.bf16 %v554
        %v1394 = vunpack.c.l.bf16 %v555
        %v1395 = vunpack.c.h.bf16 %v555
        %v1396 = vunpack.c.l.bf16 %v556
        %v1397 = vunpack.c.h.bf16 %v556
        %v1398 = vunpack.c.l.bf16 %v557
        %v1399 = vunpack.c.h.bf16 %v557
        %v1400 = vunpack.c.l.bf16 %v558
        %v1401 = vunpack.c.h.bf16 %v558
        %v1402 = vunpack.c.l.bf16 %v559
        %v1403 = vunpack.c.h.bf16 %v559
        %v1404 = vunpack.c.l.bf16 %v560
        %v1405 = vunpack.c.h.bf16 %v560
        %v1406 = vunpack.c.l.bf16 %v561
        %v1407 = vunpack.c.h.bf16 %v561
        %v1408 = vunpack.c.l.bf16 %v562
        %v1409 = vunpack.c.h.bf16 %v562
        %v1410 = vunpack.c.l.bf16 %v563
        %v1411 = vunpack.c.h.bf16 %v563
        %v1412 = vunpack.c.l.bf16 %v564
        %v1413 = vunpack.c.h.bf16 %v564
        %v1414 = vunpack.c.l.bf16 %v565
        %v1415 = vunpack.c.h.bf16 %v565
        %v1416 = vunpack.c.l.bf16 %v566
        %v1417 = vunpack.c.h.bf16 %v566
        %v1418 = vunpack.c.l.bf16 %v567
        %v1419 = vunpack.c.h.bf16 %v567
        %v1420 = vunpack.c.l.bf16 %v568
        %v1421 = vunpack.c.h.bf16 %v568
        %v1422 = vunpack.c.l.bf16 %v569
        %v1423 = vunpack.c.h.bf16 %v569
        %v1424 = vunpack.c.l.bf16 %v570
        %v1425 = vunpack.c.h.bf16 %v570
        %v1426 = vunpack.c.l.bf16 %v571
        %v1427 = vunpack.c.h.bf16 %v571
        %v1428 = vunpack.c.l.bf16 %v572
        %v1429 = vunpack.c.h.bf16 %v572
        %v1430 = vunpack.c.l.bf16 %v573
        %v1431 = vunpack.c.h.bf16 %v573
        %v1432 = vunpack.c.l.bf16 %v574
        %v1433 = vunpack.c.h.bf16 %v574
        %v1434 = vunpack.c.l.bf16 %v575
        %v1435 = vunpack.c.h.bf16 %v575
        %v1436 = vunpack.c.l.bf16 %v576
        %v1437 = vunpack.c.h.bf16 %v576
        %v1438 = vunpack.c.l.bf16 %v577
        %v1439 = vunpack.c.h.bf16 %v577
        %v1440 = vunpack.c.l.bf16 %v578
        %v1441 = vunpack.c.h.bf16 %v578
        %v1442 = vunpack.c.l.bf16 %v579
        %v1443 = vunpack.c.h.bf16 %v579
        %v1444 = vunpack.c.l.bf16 %v580
        %v1445 = vunpack.c.h.bf16 %v580
        %v1446 = vunpack.c.l.bf16 %v581
        %v1447 = vunpack.c.h.bf16 %v581
        %v1448 = vunpack.c.l.bf16 %v582
        %v1449 = vunpack.c.h.bf16 %v582
        %v1450 = vunpack.c.l.bf16 %v583
        %v1451 = vunpack.c.h.bf16 %v583
        %v1452 = vunpack.c.l.bf16 %v584
        %v1453 = vunpack.c.h.bf16 %v584
        %v1454 = vunpack.c.l.bf16 %v585
        %v1455 = vunpack.c.h.bf16 %v585
        %v1456 = vunpack.c.l.bf16 %v586
        %v1457 = vunpack.c.h.bf16 %v586
        %v1458 = vunpack.c.l.bf16 %v587
        %v1459 = vunpack.c.h.bf16 %v587
        %v1460 = vunpack.c.l.bf16 %v588
        %v1461 = vunpack.c.h.bf16 %v588
        %v1462 = vunpack.c.l.bf16 %v589
        %v1463 = vunpack.c.h.bf16 %v589
        %v1464 = vunpack.c.l.bf16 %v590
        %v1465 = vunpack.c.h.bf16 %v590
        %v1466 = vunpack.c.l.bf16 %v591
        %v1467 = vunpack.c.h.bf16 %v591
        %v1468 = vunpack.c.l.bf16 %v592
        %v1469 = vunpack.c.h.bf16 %v592
        %v1470 = vunpack.c.l.bf16 %v593
        %v1471 = vunpack.c.h.bf16 %v593
        %v1472 = vunpack.c.l.bf16 %v594
        %v1473 = vunpack.c.h.bf16 %v594
        %v1474 = vunpack.c.l.bf16 %v595
        %v1475 = vunpack.c.h.bf16 %v595
        %v1476 = vunpack.c.l.bf16 %v596
        %v1477 = vunpack.c.h.bf16 %v596
        %v1478 = vunpack.c.l.bf16 %v597
        %v1479 = vunpack.c.h.bf16 %v597
        %v1480 = vunpack.c.l.bf16 %v598
        %v1481 = vunpack.c.h.bf16 %v598
        %v1482 = vunpack.c.l.bf16 %v599
        %v1483 = vunpack.c.h.bf16 %v599
        %v1484 = vunpack.c.l.bf16 %v600
        %v1485 = vunpack.c.h.bf16 %v600
        %v1486 = vunpack.c.l.bf16 %v601
        %v1487 = vunpack.c.h.bf16 %v601
        %v1488 = vunpack.c.l.bf16 %v602
        %v1489 = vunpack.c.h.bf16 %v602
        %v1490 = vunpack.c.l.bf16 %v603
        %v1491 = vunpack.c.h.bf16 %v603
        %v1492 = vunpack.c.l.bf16 %v604
        %v1493 = vunpack.c.h.bf16 %v604
        %v1494 = vunpack.c.l.bf16 %v605
        %v1495 = vunpack.c.h.bf16 %v605
        %v1496 = vunpack.c.l.bf16 %v606
        %v1497 = vunpack.c.h.bf16 %v606
        %v1498 = vunpack.c.l.bf16 %v607
        %v1499 = vunpack.c.h.bf16 %v607
        %v1500 = vunpack.c.l.bf16 %v608
        %v1501 = vunpack.c.h.bf16 %v608
        %v1502 = vunpack.c.l.bf16 %v609
        %v1503 = vunpack.c.h.bf16 %v609
        %v1504 = vunpack.c.l.bf16 %v610
        %v1505 = vunpack.c.h.bf16 %v610
        %v1506 = vunpack.c.l.bf16 %v611
        %v1507 = vunpack.c.h.bf16 %v611
        %v1508 = vunpack.c.l.bf16 %v612
        %v1509 = vunpack.c.h.bf16 %v612
        %v1510 = vunpack.c.l.bf16 %v613
        %v1511 = vunpack.c.h.bf16 %v613
        %v1512 = vunpack.c.l.bf16 %v614
        %v1513 = vunpack.c.h.bf16 %v614
        %v1514 = vunpack.c.l.bf16 %v615
        %v1515 = vunpack.c.h.bf16 %v615
        %v1516 = vld [vmem:[%s0] sm:$0xff]
        %v1517 = vld [vmem:[%s0 + $0x8] sm:$0xff]
        %v1518 = vld [vmem:[%s0 + $0x10] sm:$0xff]
        %v1519 = vld [vmem:[%s0 + $0x18] sm:$0xff]
        %v1520 = vld [vmem:[%s0 + $0x20] sm:$0xff]
        %v1521 = vld [vmem:[%s0 + $0x28] sm:$0xff]
        %v1522 = vld [vmem:[%s0 + $0x30] sm:$0xff]
        %v1523 = vld [vmem:[%s0 + $0x38] sm:$0xff]
        %v1524 = vld [vmem:[%s0 + $0x40] sm:$0xff]
        %v1525 = vld [vmem:[%s0 + $0x48] sm:$0xff]
        %v1526 = vld [vmem:[%s0 + $0x50] sm:$0xff]
        %v1527 = vld [vmem:[%s0 + $0x58] sm:$0xff]
        %v1528 = vld [vmem:[%s0 + $0x60] sm:$0xff]
        %v1529 = vld [vmem:[%s0 + $0x68] sm:$0xff]
        %v1530 = vld [vmem:[%s0 + $0x70] sm:$0xff]
        %v1531 = vld [vmem:[%s0 + $0x78] sm:$0xff]
        %v1532 = vld [vmem:[%s0 + $0x80] sm:$0xff]
        %v1533 = vld [vmem:[%s0 + $0x88] sm:$0xff]
        %v1534 = vld [vmem:[%s0 + $0x90] sm:$0xff]
        %v1535 = vld [vmem:[%s0 + $0x98] sm:$0xff]
        %v1536 = vld [vmem:[%s0 + $0xa0] sm:$0xff]
        %v1537 = vld [vmem:[%s0 + $0xa8] sm:$0xff]
        %v1538 = vld [vmem:[%s0 + $0xb0] sm:$0xff]
        %v1539 = vld [vmem:[%s0 + $0xb8] sm:$0xff]
        %v1540 = vld [vmem:[%s0 + $0xc0] sm:$0xff]
        %v1541 = vld [vmem:[%s0 + $0xc8] sm:$0xff]
        %v1542 = vld [vmem:[%s0 + $0xd0] sm:$0xff]
        %v1543 = vld [vmem:[%s0 + $0xd8] sm:$0xff]
        %v1544 = vld [vmem:[%s0 + $0xe0] sm:$0xff]
        %vm1545 = vcmask 130048
        %v1547 = vsel %vm1545, %v1544, 0
        %1549 = vmatprep.subr.mxu0 %v647
        %1550 = vmatpush1.msra.mxu0 %v646
        %1551 = vmatprep.subr.mxu0 %v645
        %1552 = vmatpush1.msra.mxu0 %v644
        %1553 = vmatprep.subr.mxu0 %v643
        %1554 = vmatpush1.msra.mxu0 %v642
        %1555 = vmatprep.subr.mxu0 %v641
        %1556 = vmatpush1.msra.mxu0 %v640
        %1557 = vmatprep.subr.mxu0 %v639
        %1558 = vmatpush1.msra.mxu0 %v638
        %1559 = vmatprep.subr.mxu0 %v637
        %1560 = vmatpush1.msra.mxu0 %v636
        %1561 = vmatprep.subr.mxu0 %v635
        %1562 = vmatpush1.msra.mxu0 %v634
        %1563 = vmatprep.subr.mxu0 %v633
        %1564 = vmatpush1.msra.mxu0 %v632
        %1565 = vmatprep.subr.mxu0 %v631
        %1566 = vmatpush1.msra.mxu0 %v630
        %1567 = vmatprep.subr.mxu0 %v629
        %1568 = vmatpush1.msra.mxu0 %v628
        %1569 = vmatprep.subr.mxu0 %v627
        %1570 = vmatpush1.msra.mxu0 %v626
        %1571 = vmatprep.subr.mxu0 %v625
        %1572 = vmatpush1.msra.mxu0 %v624
        %1573 = vmatprep.subr.mxu0 %v623
        %1574 = vmatpush1.msra.mxu0 %v622
        %1575 = vmatprep.subr.mxu0 %v621
        %1576 = vmatpush1.msra.mxu0 %v620
        %1577 = vmatprep.subr.mxu0 %v619
        %1578 = vmatpush1.msra.mxu0 %v618
        %1579 = vmatprep.subr.mxu0 %v617
        %1580 = vmatpush1.msra.mxu0 %v616
        %1581 = vmatprep.subr.mxu0 %v679
        %1582 = vmatpush2.msra.mxu0 %v678
        %1583 = vmatprep.subr.mxu0 %v677
        %1584 = vmatpush2.msra.mxu0 %v676
        %1585 = vmatprep.subr.mxu0 %v675
        %1586 = vmatpush2.msra.mxu0 %v674
        %1587 = vmatprep.subr.mxu0 %v673
        %1588 = vmatpush2.msra.mxu0 %v672
        %1589 = vmatprep.subr.mxu0 %v671
        %1590 = vmatpush2.msra.mxu0 %v670
        %1591 = vmatprep.subr.mxu0 %v669
        %1592 = vmatpush2.msra.mxu0 %v668
        %1593 = vmatprep.subr.mxu0 %v667
        %1594 = vmatpush2.msra.mxu0 %v666
        %1595 = vmatprep.subr.mxu0 %v665
        %1596 = vmatpush2.msra.mxu0 %v664
        %1597 = vmatprep.subr.mxu0 %v663
        %1598 = vmatpush2.msra.mxu0 %v662
        %1599 = vmatprep.subr.mxu0 %v661
        %1600 = vmatpush2.msra.mxu0 %v660
        %1601 = vmatprep.subr.mxu0 %v659
        %1602 = vmatpush2.msra.mxu0 %v658
        %1603 = vmatprep.subr.mxu0 %v657
        %1604 = vmatpush2.msra.mxu0 %v656
        %1605 = vmatprep.subr.mxu0 %v655
        %1606 = vmatpush2.msra.mxu0 %v654
        %1607 = vmatprep.subr.mxu0 %v653
        %1608 = vmatpush2.msra.mxu0 %v652
        %1609 = vmatprep.subr.mxu0 %v651
        %1610 = vmatpush2.msra.mxu0 %v650
        %1611 = vmatprep.subr.mxu0 %v649
        %1612 = vmatpush2.msra.mxu0 %v648
        %1613 = vmatprep.mubr.f32.mxu0 %v1517
        %1614 = vmatmul.mubr.f32.gmra.mxu0 %v1516
        %v1615 = vpop.f32.mrf.mxu0
        %v1616 = vadd.f32 0.0, %v1615
        %v1617 = vpop.f32.mrf.mxu0
        %v1618 = vadd.f32 0.0, %v1617
        %1619 = vdwg.mxu0
        %1620 = vmatprep.subr.mxu0 %v711
        %1621 = vmatpush1.msra.mxu0 %v710
        %1622 = vmatprep.subr.mxu0 %v709
        %1623 = vmatpush1.msra.mxu0 %v708
        %1624 = vmatprep.subr.mxu0 %v707
        %1625 = vmatpush1.msra.mxu0 %v706
        %1626 = vmatprep.subr.mxu0 %v705
        %1627 = vmatpush1.msra.mxu0 %v704
        %1628 = vmatprep.subr.mxu0 %v703
        %1629 = vmatpush1.msra.mxu0 %v702
        %1630 = vmatprep.subr.mxu0 %v701
        %1631 = vmatpush1.msra.mxu0 %v700
        %1632 = vmatprep.subr.mxu0 %v699
        %1633 = vmatpush1.msra.mxu0 %v698
        %1634 = vmatprep.subr.mxu0 %v697
        %1635 = vmatpush1.msra.mxu0 %v696
        %1636 = vmatprep.subr.mxu0 %v695
        %1637 = vmatpush1.msra.mxu0 %v694
        %1638 = vmatprep.subr.mxu0 %v693
        %1639 = vmatpush1.msra.mxu0 %v692
        %1640 = vmatprep.subr.mxu0 %v691
        %1641 = vmatpush1.msra.mxu0 %v690
        %1642 = vmatprep.subr.mxu0 %v689
        %1643 = vmatpush1.msra.mxu0 %v688
        %1644 = vmatprep.subr.mxu0 %v687
        %1645 = vmatpush1.msra.mxu0 %v686
        %1646 = vmatprep.subr.mxu0 %v685
        %1647 = vmatpush1.msra.mxu0 %v684
        %1648 = vmatprep.subr.mxu0 %v683
        %1649 = vmatpush1.msra.mxu0 %v682
        %1650 = vmatprep.subr.mxu0 %v681
        %1651 = vmatpush1.msra.mxu0 %v680
        %1652 = vmatprep.subr.mxu0 %v743
        %1653 = vmatpush2.msra.mxu0 %v742
        %1654 = vmatprep.subr.mxu0 %v741
        %1655 = vmatpush2.msra.mxu0 %v740
        %1656 = vmatprep.subr.mxu0 %v739
        %1657 = vmatpush2.msra.mxu0 %v738
        %1658 = vmatprep.subr.mxu0 %v737
        %1659 = vmatpush2.msra.mxu0 %v736
        %1660 = vmatprep.subr.mxu0 %v735
        %1661 = vmatpush2.msra.mxu0 %v734
        %1662 = vmatprep.subr.mxu0 %v733
        %1663 = vmatpush2.msra.mxu0 %v732
        %1664 = vmatprep.subr.mxu0 %v731
        %1665 = vmatpush2.msra.mxu0 %v730
        %1666 = vmatprep.subr.mxu0 %v729
        %1667 = vmatpush2.msra.mxu0 %v728
        %1668 = vmatprep.subr.mxu0 %v727
        %1669 = vmatpush2.msra.mxu0 %v726
        %1670 = vmatprep.subr.mxu0 %v725
        %1671 = vmatpush2.msra.mxu0 %v724
        %1672 = vmatprep.subr.mxu0 %v723
        %1673 = vmatpush2.msra.mxu0 %v722
        %1674 = vmatprep.subr.mxu0 %v721
        %1675 = vmatpush2.msra.mxu0 %v720
        %1676 = vmatprep.subr.mxu0 %v719
        %1677 = vmatpush2.msra.mxu0 %v718
        %1678 = vmatprep.subr.mxu0 %v717
        %1679 = vmatpush2.msra.mxu0 %v716
        %1680 = vmatprep.subr.mxu0 %v715
        %1681 = vmatpush2.msra.mxu0 %v714
        %1682 = vmatprep.subr.mxu0 %v713
        %1683 = vmatpush2.msra.mxu0 %v712
        %1684 = vmatprep.mubr.f32.mxu0 %v1519
        %1685 = vmatmul.mubr.f32.gmra.mxu0 %v1518
        %v1686 = vpop.f32.mrf.mxu0
        %v1687 = vadd.f32 %v1616, %v1686
        %v1688 = vpop.f32.mrf.mxu0
        %v1689 = vadd.f32 %v1618, %v1688
        %1690 = vdwg.mxu0
        %1691 = vmatprep.subr.mxu0 %v775
        %1692 = vmatpush1.msra.mxu0 %v774
        %1693 = vmatprep.subr.mxu0 %v773
        %1694 = vmatpush1.msra.mxu0 %v772
        %1695 = vmatprep.subr.mxu0 %v771
        %1696 = vmatpush1.msra.mxu0 %v770
        %1697 = vmatprep.subr.mxu0 %v769
        %1698 = vmatpush1.msra.mxu0 %v768
        %1699 = vmatprep.subr.mxu0 %v767
        %1700 = vmatpush1.msra.mxu0 %v766
        %1701 = vmatprep.subr.mxu0 %v765
        %1702 = vmatpush1.msra.mxu0 %v764
        %1703 = vmatprep.subr.mxu0 %v763
        %1704 = vmatpush1.msra.mxu0 %v762
        %1705 = vmatprep.subr.mxu0 %v761
        %1706 = vmatpush1.msra.mxu0 %v760
        %1707 = vmatprep.subr.mxu0 %v759
        %1708 = vmatpush1.msra.mxu0 %v758
        %1709 = vmatprep.subr.mxu0 %v757
        %1710 = vmatpush1.msra.mxu0 %v756
        %1711 = vmatprep.subr.mxu0 %v755
        %1712 = vmatpush1.msra.mxu0 %v754
        %1713 = vmatprep.subr.mxu0 %v753
        %1714 = vmatpush1.msra.mxu0 %v752
        %1715 = vmatprep.subr.mxu0 %v751
        %1716 = vmatpush1.msra.mxu0 %v750
        %1717 = vmatprep.subr.mxu0 %v749
        %1718 = vmatpush1.msra.mxu0 %v748
        %1719 = vmatprep.subr.mxu0 %v747
        %1720 = vmatpush1.msra.mxu0 %v746
        %1721 = vmatprep.subr.mxu0 %v745
        %1722 = vmatpush1.msra.mxu0 %v744
        %1723 = vmatprep.subr.mxu0 %v807
        %1724 = vmatpush2.msra.mxu0 %v806
        %1725 = vmatprep.subr.mxu0 %v805
        %1726 = vmatpush2.msra.mxu0 %v804
        %1727 = vmatprep.subr.mxu0 %v803
        %1728 = vmatpush2.msra.mxu0 %v802
        %1729 = vmatprep.subr.mxu0 %v801
        %1730 = vmatpush2.msra.mxu0 %v800
        %1731 = vmatprep.subr.mxu0 %v799
        %1732 = vmatpush2.msra.mxu0 %v798
        %1733 = vmatprep.subr.mxu0 %v797
        %1734 = vmatpush2.msra.mxu0 %v796
        %1735 = vmatprep.subr.mxu0 %v795
        %1736 = vmatpush2.msra.mxu0 %v794
        %1737 = vmatprep.subr.mxu0 %v793
        %1738 = vmatpush2.msra.mxu0 %v792
        %1739 = vmatprep.subr.mxu0 %v791
        %1740 = vmatpush2.msra.mxu0 %v790
        %1741 = vmatprep.subr.mxu0 %v789
        %1742 = vmatpush2.msra.mxu0 %v788
        %1743 = vmatprep.subr.mxu0 %v787
        %1744 = vmatpush2.msra.mxu0 %v786
        %1745 = vmatprep.subr.mxu0 %v785
        %1746 = vmatpush2.msra.mxu0 %v784
        %1747 = vmatprep.subr.mxu0 %v783
        %1748 = vmatpush2.msra.mxu0 %v782
        %1749 = vmatprep.subr.mxu0 %v781
        %1750 = vmatpush2.msra.mxu0 %v780
        %1751 = vmatprep.subr.mxu0 %v779
        %1752 = vmatpush2.msra.mxu0 %v778
        %1753 = vmatprep.subr.mxu0 %v777
        %1754 = vmatpush2.msra.mxu0 %v776
        %1755 = vmatprep.mubr.f32.mxu0 %v1521
        %1756 = vmatmul.mubr.f32.gmra.mxu0 %v1520
        %v1757 = vpop.f32.mrf.mxu0
        %v1758 = vadd.f32 %v1687, %v1757
        %v1759 = vpop.f32.mrf.mxu0
        %v1760 = vadd.f32 %v1689, %v1759
        %1761 = vdwg.mxu0
        %1762 = vmatprep.subr.mxu0 %v839
        %1763 = vmatpush1.msra.mxu0 %v838
        %1764 = vmatprep.subr.mxu0 %v837
        %1765 = vmatpush1.msra.mxu0 %v836
        %1766 = vmatprep.subr.mxu0 %v835
        %1767 = vmatpush1.msra.mxu0 %v834
        %1768 = vmatprep.subr.mxu0 %v833
        %1769 = vmatpush1.msra.mxu0 %v832
        %1770 = vmatprep.subr.mxu0 %v831
        %1771 = vmatpush1.msra.mxu0 %v830
        %1772 = vmatprep.subr.mxu0 %v829
        %1773 = vmatpush1.msra.mxu0 %v828
        %1774 = vmatprep.subr.mxu0 %v827
        %1775 = vmatpush1.msra.mxu0 %v826
        %1776 = vmatprep.subr.mxu0 %v825
        %1777 = vmatpush1.msra.mxu0 %v824
        %1778 = vmatprep.subr.mxu0 %v823
        %1779 = vmatpush1.msra.mxu0 %v822
        %1780 = vmatprep.subr.mxu0 %v821
        %1781 = vmatpush1.msra.mxu0 %v820
        %1782 = vmatprep.subr.mxu0 %v819
        %1783 = vmatpush1.msra.mxu0 %v818
        %1784 = vmatprep.subr.mxu0 %v817
        %1785 = vmatpush1.msra.mxu0 %v816
        %1786 = vmatprep.subr.mxu0 %v815
        %1787 = vmatpush1.msra.mxu0 %v814
        %1788 = vmatprep.subr.mxu0 %v813
        %1789 = vmatpush1.msra.mxu0 %v812
        %1790 = vmatprep.subr.mxu0 %v811
        %1791 = vmatpush1.msra.mxu0 %v810
        %1792 = vmatprep.subr.mxu0 %v809
        %1793 = vmatpush1.msra.mxu0 %v808
        %1794 = vmatprep.subr.mxu0 %v871
        %1795 = vmatpush2.msra.mxu0 %v870
        %1796 = vmatprep.subr.mxu0 %v869
        %1797 = vmatpush2.msra.mxu0 %v868
        %1798 = vmatprep.subr.mxu0 %v867
        %1799 = vmatpush2.msra.mxu0 %v866
        %1800 = vmatprep.subr.mxu0 %v865
        %1801 = vmatpush2.msra.mxu0 %v864
        %1802 = vmatprep.subr.mxu0 %v863
        %1803 = vmatpush2.msra.mxu0 %v862
        %1804 = vmatprep.subr.mxu0 %v861
        %1805 = vmatpush2.msra.mxu0 %v860
        %1806 = vmatprep.subr.mxu0 %v859
        %1807 = vmatpush2.msra.mxu0 %v858
        %1808 = vmatprep.subr.mxu0 %v857
        %1809 = vmatpush2.msra.mxu0 %v856
        %1810 = vmatprep.subr.mxu0 %v855
        %1811 = vmatpush2.msra.mxu0 %v854
        %1812 = vmatprep.subr.mxu0 %v853
        %1813 = vmatpush2.msra.mxu0 %v852
        %1814 = vmatprep.subr.mxu0 %v851
        %1815 = vmatpush2.msra.mxu0 %v850
        %1816 = vmatprep.subr.mxu0 %v849
        %1817 = vmatpush2.msra.mxu0 %v848
        %1818 = vmatprep.subr.mxu0 %v847
        %1819 = vmatpush2.msra.mxu0 %v846
        %1820 = vmatprep.subr.mxu0 %v845
        %1821 = vmatpush2.msra.mxu0 %v844
        %1822 = vmatprep.subr.mxu0 %v843
        %1823 = vmatpush2.msra.mxu0 %v842
        %1824 = vmatprep.subr.mxu0 %v841
        %1825 = vmatpush2.msra.mxu0 %v840
        %1826 = vmatprep.mubr.f32.mxu0 %v1523
        %1827 = vmatmul.mubr.f32.gmra.mxu0 %v1522
        %v1828 = vpop.f32.mrf.mxu0
        %v1829 = vadd.f32 %v1758, %v1828
        %v1830 = vpop.f32.mrf.mxu0
        %v1831 = vadd.f32 %v1760, %v1830
        %1832 = vdwg.mxu0
        %1833 = vmatprep.subr.mxu0 %v903
        %1834 = vmatpush1.msra.mxu0 %v902
        %1835 = vmatprep.subr.mxu0 %v901
        %1836 = vmatpush1.msra.mxu0 %v900
        %1837 = vmatprep.subr.mxu0 %v899
        %1838 = vmatpush1.msra.mxu0 %v898
        %1839 = vmatprep.subr.mxu0 %v897
        %1840 = vmatpush1.msra.mxu0 %v896
        %1841 = vmatprep.subr.mxu0 %v895
        %1842 = vmatpush1.msra.mxu0 %v894
        %1843 = vmatprep.subr.mxu0 %v893
        %1844 = vmatpush1.msra.mxu0 %v892
        %1845 = vmatprep.subr.mxu0 %v891
        %1846 = vmatpush1.msra.mxu0 %v890
        %1847 = vmatprep.subr.mxu0 %v889
        %1848 = vmatpush1.msra.mxu0 %v888
        %1849 = vmatprep.subr.mxu0 %v887
        %1850 = vmatpush1.msra.mxu0 %v886
        %1851 = vmatprep.subr.mxu0 %v885
        %1852 = vmatpush1.msra.mxu0 %v884
        %1853 = vmatprep.subr.mxu0 %v883
        %1854 = vmatpush1.msra.mxu0 %v882
        %1855 = vmatprep.subr.mxu0 %v881
        %1856 = vmatpush1.msra.mxu0 %v880
        %1857 = vmatprep.subr.mxu0 %v879
        %1858 = vmatpush1.msra.mxu0 %v878
        %1859 = vmatprep.subr.mxu0 %v877
        %1860 = vmatpush1.msra.mxu0 %v876
        %1861 = vmatprep.subr.mxu0 %v875
        %1862 = vmatpush1.msra.mxu0 %v874
        %1863 = vmatprep.subr.mxu0 %v873
        %1864 = vmatpush1.msra.mxu0 %v872
        %1865 = vmatprep.subr.mxu0 %v935
        %1866 = vmatpush2.msra.mxu0 %v934
        %1867 = vmatprep.subr.mxu0 %v933
        %1868 = vmatpush2.msra.mxu0 %v932
        %1869 = vmatprep.subr.mxu0 %v931
        %1870 = vmatpush2.msra.mxu0 %v930
        %1871 = vmatprep.subr.mxu0 %v929
        %1872 = vmatpush2.msra.mxu0 %v928
        %1873 = vmatprep.subr.mxu0 %v927
        %1874 = vmatpush2.msra.mxu0 %v926
        %1875 = vmatprep.subr.mxu0 %v925
        %1876 = vmatpush2.msra.mxu0 %v924
        %1877 = vmatprep.subr.mxu0 %v923
        %1878 = vmatpush2.msra.mxu0 %v922
        %1879 = vmatprep.subr.mxu0 %v921
        %1880 = vmatpush2.msra.mxu0 %v920
        %1881 = vmatprep.subr.mxu0 %v919
        %1882 = vmatpush2.msra.mxu0 %v918
        %1883 = vmatprep.subr.mxu0 %v917
        %1884 = vmatpush2.msra.mxu0 %v916
        %1885 = vmatprep.subr.mxu0 %v915
        %1886 = vmatpush2.msra.mxu0 %v914
        %1887 = vmatprep.subr.mxu0 %v913
        %1888 = vmatpush2.msra.mxu0 %v912
        %1889 = vmatprep.subr.mxu0 %v911
        %1890 = vmatpush2.msra.mxu0 %v910
        %1891 = vmatprep.subr.mxu0 %v909
        %1892 = vmatpush2.msra.mxu0 %v908
        %1893 = vmatprep.subr.mxu0 %v907
        %1894 = vmatpush2.msra.mxu0 %v906
        %1895 = vmatprep.subr.mxu0 %v905
        %1896 = vmatpush2.msra.mxu0 %v904
        %1897 = vmatprep.mubr.f32.mxu0 %v1525
        %1898 = vmatmul.mubr.f32.gmra.mxu0 %v1524
        %v1899 = vpop.f32.mrf.mxu0
        %v1900 = vadd.f32 %v1829, %v1899
        %v1901 = vpop.f32.mrf.mxu0
        %v1902 = vadd.f32 %v1831, %v1901
        %1903 = vdwg.mxu0
        %1904 = vmatprep.subr.mxu0 %v967
        %1905 = vmatpush1.msra.mxu0 %v966
        %1906 = vmatprep.subr.mxu0 %v965
        %1907 = vmatpush1.msra.mxu0 %v964
        %1908 = vmatprep.subr.mxu0 %v963
        %1909 = vmatpush1.msra.mxu0 %v962
        %1910 = vmatprep.subr.mxu0 %v961
        %1911 = vmatpush1.msra.mxu0 %v960
        %1912 = vmatprep.subr.mxu0 %v959
        %1913 = vmatpush1.msra.mxu0 %v958
        %1914 = vmatprep.subr.mxu0 %v957
        %1915 = vmatpush1.msra.mxu0 %v956
        %1916 = vmatprep.subr.mxu0 %v955
        %1917 = vmatpush1.msra.mxu0 %v954
        %1918 = vmatprep.subr.mxu0 %v953
        %1919 = vmatpush1.msra.mxu0 %v952
        %1920 = vmatprep.subr.mxu0 %v951
        %1921 = vmatpush1.msra.mxu0 %v950
        %1922 = vmatprep.subr.mxu0 %v949
        %1923 = vmatpush1.msra.mxu0 %v948
        %1924 = vmatprep.subr.mxu0 %v947
        %1925 = vmatpush1.msra.mxu0 %v946
        %1926 = vmatprep.subr.mxu0 %v945
        %1927 = vmatpush1.msra.mxu0 %v944
        %1928 = vmatprep.subr.mxu0 %v943
        %1929 = vmatpush1.msra.mxu0 %v942
        %1930 = vmatprep.subr.mxu0 %v941
        %1931 = vmatpush1.msra.mxu0 %v940
        %1932 = vmatprep.subr.mxu0 %v939
        %1933 = vmatpush1.msra.mxu0 %v938
        %1934 = vmatprep.subr.mxu0 %v937
        %1935 = vmatpush1.msra.mxu0 %v936
        %1936 = vmatprep.subr.mxu0 %v999
        %1937 = vmatpush2.msra.mxu0 %v998
        %1938 = vmatprep.subr.mxu0 %v997
        %1939 = vmatpush2.msra.mxu0 %v996
        %1940 = vmatprep.subr.mxu0 %v995
        %1941 = vmatpush2.msra.mxu0 %v994
        %1942 = vmatprep.subr.mxu0 %v993
        %1943 = vmatpush2.msra.mxu0 %v992
        %1944 = vmatprep.subr.mxu0 %v991
        %1945 = vmatpush2.msra.mxu0 %v990
        %1946 = vmatprep.subr.mxu0 %v989
        %1947 = vmatpush2.msra.mxu0 %v988
        %1948 = vmatprep.subr.mxu0 %v987
        %1949 = vmatpush2.msra.mxu0 %v986
        %1950 = vmatprep.subr.mxu0 %v985
        %1951 = vmatpush2.msra.mxu0 %v984
        %1952 = vmatprep.subr.mxu0 %v983
        %1953 = vmatpush2.msra.mxu0 %v982
        %1954 = vmatprep.subr.mxu0 %v981
        %1955 = vmatpush2.msra.mxu0 %v980
        %1956 = vmatprep.subr.mxu0 %v979
        %1957 = vmatpush2.msra.mxu0 %v978
        %1958 = vmatprep.subr.mxu0 %v977
        %1959 = vmatpush2.msra.mxu0 %v976
        %1960 = vmatprep.subr.mxu0 %v975
        %1961 = vmatpush2.msra.mxu0 %v974
        %1962 = vmatprep.subr.mxu0 %v973
        %1963 = vmatpush2.msra.mxu0 %v972
        %1964 = vmatprep.subr.mxu0 %v971
        %1965 = vmatpush2.msra.mxu0 %v970
        %1966 = vmatprep.subr.mxu0 %v969
        %1967 = vmatpush2.msra.mxu0 %v968
        %1968 = vmatprep.mubr.f32.mxu0 %v1527
        %1969 = vmatmul.mubr.f32.gmra.mxu0 %v1526
        %v1970 = vpop.f32.mrf.mxu0
        %v1971 = vadd.f32 %v1900, %v1970
        %v1972 = vpop.f32.mrf.mxu0
        %v1973 = vadd.f32 %v1902, %v1972
        %1974 = vdwg.mxu0
        %1975 = vmatprep.subr.mxu0 %v1031
        %1976 = vmatpush1.msra.mxu0 %v1030
        %1977 = vmatprep.subr.mxu0 %v1029
        %1978 = vmatpush1.msra.mxu0 %v1028
        %1979 = vmatprep.subr.mxu0 %v1027
        %1980 = vmatpush1.msra.mxu0 %v1026
        %1981 = vmatprep.subr.mxu0 %v1025
        %1982 = vmatpush1.msra.mxu0 %v1024
        %1983 = vmatprep.subr.mxu0 %v1023
        %1984 = vmatpush1.msra.mxu0 %v1022
        %1985 = vmatprep.subr.mxu0 %v1021
        %1986 = vmatpush1.msra.mxu0 %v1020
        %1987 = vmatprep.subr.mxu0 %v1019
        %1988 = vmatpush1.msra.mxu0 %v1018
        %1989 = vmatprep.subr.mxu0 %v1017
        %1990 = vmatpush1.msra.mxu0 %v1016
        %1991 = vmatprep.subr.mxu0 %v1015
        %1992 = vmatpush1.msra.mxu0 %v1014
        %1993 = vmatprep.subr.mxu0 %v1013
        %1994 = vmatpush1.msra.mxu0 %v1012
        %1995 = vmatprep.subr.mxu0 %v1011
        %1996 = vmatpush1.msra.mxu0 %v1010
        %1997 = vmatprep.subr.mxu0 %v1009
        %1998 = vmatpush1.msra.mxu0 %v1008
        %1999 = vmatprep.subr.mxu0 %v1007
        %2000 = vmatpush1.msra.mxu0 %v1006
        %2001 = vmatprep.subr.mxu0 %v1005
        %2002 = vmatpush1.msra.mxu0 %v1004
        %2003 = vmatprep.subr.mxu0 %v1003
        %2004 = vmatpush1.msra.mxu0 %v1002
        %2005 = vmatprep.subr.mxu0 %v1001
        %2006 = vmatpush1.msra.mxu0 %v1000
        %2007 = vmatprep.subr.mxu0 %v1063
        %2008 = vmatpush2.msra.mxu0 %v1062
        %2009 = vmatprep.subr.mxu0 %v1061
        %2010 = vmatpush2.msra.mxu0 %v1060
        %2011 = vmatprep.subr.mxu0 %v1059
        %2012 = vmatpush2.msra.mxu0 %v1058
        %2013 = vmatprep.subr.mxu0 %v1057
        %2014 = vmatpush2.msra.mxu0 %v1056
        %2015 = vmatprep.subr.mxu0 %v1055
        %2016 = vmatpush2.msra.mxu0 %v1054
        %2017 = vmatprep.subr.mxu0 %v1053
        %2018 = vmatpush2.msra.mxu0 %v1052
        %2019 = vmatprep.subr.mxu0 %v1051
        %2020 = vmatpush2.msra.mxu0 %v1050
        %2021 = vmatprep.subr.mxu0 %v1049
        %2022 = vmatpush2.msra.mxu0 %v1048
        %2023 = vmatprep.subr.mxu0 %v1047
        %2024 = vmatpush2.msra.mxu0 %v1046
        %2025 = vmatprep.subr.mxu0 %v1045
        %2026 = vmatpush2.msra.mxu0 %v1044
        %2027 = vmatprep.subr.mxu0 %v1043
        %2028 = vmatpush2.msra.mxu0 %v1042
        %2029 = vmatprep.subr.mxu0 %v1041
        %2030 = vmatpush2.msra.mxu0 %v1040
        %2031 = vmatprep.subr.mxu0 %v1039
        %2032 = vmatpush2.msra.mxu0 %v1038
        %2033 = vmatprep.subr.mxu0 %v1037
        %2034 = vmatpush2.msra.mxu0 %v1036
        %2035 = vmatprep.subr.mxu0 %v1035
        %2036 = vmatpush2.msra.mxu0 %v1034
        %2037 = vmatprep.subr.mxu0 %v1033
        %2038 = vmatpush2.msra.mxu0 %v1032
        %2039 = vmatprep.mubr.f32.mxu0 %v1529
        %2040 = vmatmul.mubr.f32.gmra.mxu0 %v1528
        %v2041 = vpop.f32.mrf.mxu0
        %v2042 = vadd.f32 %v1971, %v2041
        %v2043 = vpop.f32.mrf.mxu0
        %v2044 = vadd.f32 %v1973, %v2043
        %2045 = vdwg.mxu0
        %2046 = vmatprep.subr.mxu0 %v1095
        %2047 = vmatpush1.msra.mxu0 %v1094
        %2048 = vmatprep.subr.mxu0 %v1093
        %2049 = vmatpush1.msra.mxu0 %v1092
        %2050 = vmatprep.subr.mxu0 %v1091
        %2051 = vmatpush1.msra.mxu0 %v1090
        %2052 = vmatprep.subr.mxu0 %v1089
        %2053 = vmatpush1.msra.mxu0 %v1088
        %2054 = vmatprep.subr.mxu0 %v1087
        %2055 = vmatpush1.msra.mxu0 %v1086
        %2056 = vmatprep.subr.mxu0 %v1085
        %2057 = vmatpush1.msra.mxu0 %v1084
        %2058 = vmatprep.subr.mxu0 %v1083
        %2059 = vmatpush1.msra.mxu0 %v1082
        %2060 = vmatprep.subr.mxu0 %v1081
        %2061 = vmatpush1.msra.mxu0 %v1080
        %2062 = vmatprep.subr.mxu0 %v1079
        %2063 = vmatpush1.msra.mxu0 %v1078
        %2064 = vmatprep.subr.mxu0 %v1077
        %2065 = vmatpush1.msra.mxu0 %v1076
        %2066 = vmatprep.subr.mxu0 %v1075
        %2067 = vmatpush1.msra.mxu0 %v1074
        %2068 = vmatprep.subr.mxu0 %v1073
        %2069 = vmatpush1.msra.mxu0 %v1072
        %2070 = vmatprep.subr.mxu0 %v1071
        %2071 = vmatpush1.msra.mxu0 %v1070
        %2072 = vmatprep.subr.mxu0 %v1069
        %2073 = vmatpush1.msra.mxu0 %v1068
        %2074 = vmatprep.subr.mxu0 %v1067
        %2075 = vmatpush1.msra.mxu0 %v1066
        %2076 = vmatprep.subr.mxu0 %v1065
        %2077 = vmatpush1.msra.mxu0 %v1064
        %2078 = vmatprep.subr.mxu0 %v1127
        %2079 = vmatpush2.msra.mxu0 %v1126
        %2080 = vmatprep.subr.mxu0 %v1125
        %2081 = vmatpush2.msra.mxu0 %v1124
        %2082 = vmatprep.subr.mxu0 %v1123
        %2083 = vmatpush2.msra.mxu0 %v1122
        %2084 = vmatprep.subr.mxu0 %v1121
        %2085 = vmatpush2.msra.mxu0 %v1120
        %2086 = vmatprep.subr.mxu0 %v1119
        %2087 = vmatpush2.msra.mxu0 %v1118
        %2088 = vmatprep.subr.mxu0 %v1117
        %2089 = vmatpush2.msra.mxu0 %v1116
        %2090 = vmatprep.subr.mxu0 %v1115
        %2091 = vmatpush2.msra.mxu0 %v1114
        %2092 = vmatprep.subr.mxu0 %v1113
        %2093 = vmatpush2.msra.mxu0 %v1112
        %2094 = vmatprep.subr.mxu0 %v1111
        %2095 = vmatpush2.msra.mxu0 %v1110
        %2096 = vmatprep.subr.mxu0 %v1109
        %2097 = vmatpush2.msra.mxu0 %v1108
        %2098 = vmatprep.subr.mxu0 %v1107
        %2099 = vmatpush2.msra.mxu0 %v1106
        %2100 = vmatprep.subr.mxu0 %v1105
        %2101 = vmatpush2.msra.mxu0 %v1104
        %2102 = vmatprep.subr.mxu0 %v1103
        %2103 = vmatpush2.msra.mxu0 %v1102
        %2104 = vmatprep.subr.mxu0 %v1101
        %2105 = vmatpush2.msra.mxu0 %v1100
        %2106 = vmatprep.subr.mxu0 %v1099
        %2107 = vmatpush2.msra.mxu0 %v1098
        %2108 = vmatprep.subr.mxu0 %v1097
        %2109 = vmatpush2.msra.mxu0 %v1096
        %2110 = vmatprep.mubr.f32.mxu0 %v1531
        %2111 = vmatmul.mubr.f32.gmra.mxu0 %v1530
        %v2112 = vpop.f32.mrf.mxu0
        %v2113 = vadd.f32 %v2042, %v2112
        %v2114 = vpop.f32.mrf.mxu0
        %v2115 = vadd.f32 %v2044, %v2114
        %2116 = vdwg.mxu0
        %2117 = vmatprep.subr.mxu0 %v1159
        %2118 = vmatpush1.msra.mxu0 %v1158
        %2119 = vmatprep.subr.mxu0 %v1157
        %2120 = vmatpush1.msra.mxu0 %v1156
        %2121 = vmatprep.subr.mxu0 %v1155
        %2122 = vmatpush1.msra.mxu0 %v1154
        %2123 = vmatprep.subr.mxu0 %v1153
        %2124 = vmatpush1.msra.mxu0 %v1152
        %2125 = vmatprep.subr.mxu0 %v1151
        %2126 = vmatpush1.msra.mxu0 %v1150
        %2127 = vmatprep.subr.mxu0 %v1149
        %2128 = vmatpush1.msra.mxu0 %v1148
        %2129 = vmatprep.subr.mxu0 %v1147
        %2130 = vmatpush1.msra.mxu0 %v1146
        %2131 = vmatprep.subr.mxu0 %v1145
        %2132 = vmatpush1.msra.mxu0 %v1144
        %2133 = vmatprep.subr.mxu0 %v1143
        %2134 = vmatpush1.msra.mxu0 %v1142
        %2135 = vmatprep.subr.mxu0 %v1141
        %2136 = vmatpush1.msra.mxu0 %v1140
        %2137 = vmatprep.subr.mxu0 %v1139
        %2138 = vmatpush1.msra.mxu0 %v1138
        %2139 = vmatprep.subr.mxu0 %v1137
        %2140 = vmatpush1.msra.mxu0 %v1136
        %2141 = vmatprep.subr.mxu0 %v1135
        %2142 = vmatpush1.msra.mxu0 %v1134
        %2143 = vmatprep.subr.mxu0 %v1133
        %2144 = vmatpush1.msra.mxu0 %v1132
        %2145 = vmatprep.subr.mxu0 %v1131
        %2146 = vmatpush1.msra.mxu0 %v1130
        %2147 = vmatprep.subr.mxu0 %v1129
        %2148 = vmatpush1.msra.mxu0 %v1128
        %2149 = vmatprep.subr.mxu0 %v1191
        %2150 = vmatpush2.msra.mxu0 %v1190
        %2151 = vmatprep.subr.mxu0 %v1189
        %2152 = vmatpush2.msra.mxu0 %v1188
        %2153 = vmatprep.subr.mxu0 %v1187
        %2154 = vmatpush2.msra.mxu0 %v1186
        %2155 = vmatprep.subr.mxu0 %v1185
        %2156 = vmatpush2.msra.mxu0 %v1184
        %2157 = vmatprep.subr.mxu0 %v1183
        %2158 = vmatpush2.msra.mxu0 %v1182
        %2159 = vmatprep.subr.mxu0 %v1181
        %2160 = vmatpush2.msra.mxu0 %v1180
        %2161 = vmatprep.subr.mxu0 %v1179
        %2162 = vmatpush2.msra.mxu0 %v1178
        %2163 = vmatprep.subr.mxu0 %v1177
        %2164 = vmatpush2.msra.mxu0 %v1176
        %2165 = vmatprep.subr.mxu0 %v1175
        %2166 = vmatpush2.msra.mxu0 %v1174
        %2167 = vmatprep.subr.mxu0 %v1173
        %2168 = vmatpush2.msra.mxu0 %v1172
        %2169 = vmatprep.subr.mxu0 %v1171
        %2170 = vmatpush2.msra.mxu0 %v1170
        %2171 = vmatprep.subr.mxu0 %v1169
        %2172 = vmatpush2.msra.mxu0 %v1168
        %2173 = vmatprep.subr.mxu0 %v1167
        %2174 = vmatpush2.msra.mxu0 %v1166
        %2175 = vmatprep.subr.mxu0 %v1165
        %2176 = vmatpush2.msra.mxu0 %v1164
        %2177 = vmatprep.subr.mxu0 %v1163
        %2178 = vmatpush2.msra.mxu0 %v1162
        %2179 = vmatprep.subr.mxu0 %v1161
        %2180 = vmatpush2.msra.mxu0 %v1160
        %2181 = vmatprep.mubr.f32.mxu0 %v1533
        %2182 = vmatmul.mubr.f32.gmra.mxu0 %v1532
        %v2183 = vpop.f32.mrf.mxu0
        %v2184 = vadd.f32 %v2113, %v2183
        %v2185 = vpop.f32.mrf.mxu0
        %v2186 = vadd.f32 %v2115, %v2185
        %2187 = vdwg.mxu0
        %2188 = vmatprep.subr.mxu0 %v1223
        %2189 = vmatpush1.msra.mxu0 %v1222
        %2190 = vmatprep.subr.mxu0 %v1221
        %2191 = vmatpush1.msra.mxu0 %v1220
        %2192 = vmatprep.subr.mxu0 %v1219
        %2193 = vmatpush1.msra.mxu0 %v1218
        %2194 = vmatprep.subr.mxu0 %v1217
        %2195 = vmatpush1.msra.mxu0 %v1216
        %2196 = vmatprep.subr.mxu0 %v1215
        %2197 = vmatpush1.msra.mxu0 %v1214
        %2198 = vmatprep.subr.mxu0 %v1213
        %2199 = vmatpush1.msra.mxu0 %v1212
        %2200 = vmatprep.subr.mxu0 %v1211
        %2201 = vmatpush1.msra.mxu0 %v1210
        %2202 = vmatprep.subr.mxu0 %v1209
        %2203 = vmatpush1.msra.mxu0 %v1208
        %2204 = vmatprep.subr.mxu0 %v1207
        %2205 = vmatpush1.msra.mxu0 %v1206
        %2206 = vmatprep.subr.mxu0 %v1205
        %2207 = vmatpush1.msra.mxu0 %v1204
        %2208 = vmatprep.subr.mxu0 %v1203
        %2209 = vmatpush1.msra.mxu0 %v1202
        %2210 = vmatprep.subr.mxu0 %v1201
        %2211 = vmatpush1.msra.mxu0 %v1200
        %2212 = vmatprep.subr.mxu0 %v1199
        %2213 = vmatpush1.msra.mxu0 %v1198
        %2214 = vmatprep.subr.mxu0 %v1197
        %2215 = vmatpush1.msra.mxu0 %v1196
        %2216 = vmatprep.subr.mxu0 %v1195
        %2217 = vmatpush1.msra.mxu0 %v1194
        %2218 = vmatprep.subr.mxu0 %v1193
        %2219 = vmatpush1.msra.mxu0 %v1192
        %2220 = vmatprep.subr.mxu0 %v1255
        %2221 = vmatpush2.msra.mxu0 %v1254
        %2222 = vmatprep.subr.mxu0 %v1253
        %2223 = vmatpush2.msra.mxu0 %v1252
        %2224 = vmatprep.subr.mxu0 %v1251
        %2225 = vmatpush2.msra.mxu0 %v1250
        %2226 = vmatprep.subr.mxu0 %v1249
        %2227 = vmatpush2.msra.mxu0 %v1248
        %2228 = vmatprep.subr.mxu0 %v1247
        %2229 = vmatpush2.msra.mxu0 %v1246
        %2230 = vmatprep.subr.mxu0 %v1245
        %2231 = vmatpush2.msra.mxu0 %v1244
        %2232 = vmatprep.subr.mxu0 %v1243
        %2233 = vmatpush2.msra.mxu0 %v1242
        %2234 = vmatprep.subr.mxu0 %v1241
        %2235 = vmatpush2.msra.mxu0 %v1240
        %2236 = vmatprep.subr.mxu0 %v1239
        %2237 = vmatpush2.msra.mxu0 %v1238
        %2238 = vmatprep.subr.mxu0 %v1237
        %2239 = vmatpush2.msra.mxu0 %v1236
        %2240 = vmatprep.subr.mxu0 %v1235
        %2241 = vmatpush2.msra.mxu0 %v1234
        %2242 = vmatprep.subr.mxu0 %v1233
        %2243 = vmatpush2.msra.mxu0 %v1232
        %2244 = vmatprep.subr.mxu0 %v1231
        %2245 = vmatpush2.msra.mxu0 %v1230
        %2246 = vmatprep.subr.mxu0 %v1229
        %2247 = vmatpush2.msra.mxu0 %v1228
        %2248 = vmatprep.subr.mxu0 %v1227
        %2249 = vmatpush2.msra.mxu0 %v1226
        %2250 = vmatprep.subr.mxu0 %v1225
        %2251 = vmatpush2.msra.mxu0 %v1224
        %2252 = vmatprep.mubr.f32.mxu0 %v1535
        %2253 = vmatmul.mubr.f32.gmra.mxu0 %v1534
        %v2254 = vpop.f32.mrf.mxu0
        %v2255 = vadd.f32 %v2184, %v2254
        %v2256 = vpop.f32.mrf.mxu0
        %v2257 = vadd.f32 %v2186, %v2256
        %2258 = vdwg.mxu0
        %2259 = vmatprep.subr.mxu0 %v1287
        %2260 = vmatpush1.msra.mxu0 %v1286
        %2261 = vmatprep.subr.mxu0 %v1285
        %2262 = vmatpush1.msra.mxu0 %v1284
        %2263 = vmatprep.subr.mxu0 %v1283
        %2264 = vmatpush1.msra.mxu0 %v1282
        %2265 = vmatprep.subr.mxu0 %v1281
        %2266 = vmatpush1.msra.mxu0 %v1280
        %2267 = vmatprep.subr.mxu0 %v1279
        %2268 = vmatpush1.msra.mxu0 %v1278
        %2269 = vmatprep.subr.mxu0 %v1277
        %2270 = vmatpush1.msra.mxu0 %v1276
        %2271 = vmatprep.subr.mxu0 %v1275
        %2272 = vmatpush1.msra.mxu0 %v1274
        %2273 = vmatprep.subr.mxu0 %v1273
        %2274 = vmatpush1.msra.mxu0 %v1272
        %2275 = vmatprep.subr.mxu0 %v1271
        %2276 = vmatpush1.msra.mxu0 %v1270
        %2277 = vmatprep.subr.mxu0 %v1269
        %2278 = vmatpush1.msra.mxu0 %v1268
        %2279 = vmatprep.subr.mxu0 %v1267
        %2280 = vmatpush1.msra.mxu0 %v1266
        %2281 = vmatprep.subr.mxu0 %v1265
        %2282 = vmatpush1.msra.mxu0 %v1264
        %2283 = vmatprep.subr.mxu0 %v1263
        %2284 = vmatpush1.msra.mxu0 %v1262
        %2285 = vmatprep.subr.mxu0 %v1261
        %2286 = vmatpush1.msra.mxu0 %v1260
        %2287 = vmatprep.subr.mxu0 %v1259
        %2288 = vmatpush1.msra.mxu0 %v1258
        %2289 = vmatprep.subr.mxu0 %v1257
        %2290 = vmatpush1.msra.mxu0 %v1256
        %2291 = vmatprep.subr.mxu0 %v1319
        %2292 = vmatpush2.msra.mxu0 %v1318
        %2293 = vmatprep.subr.mxu0 %v1317
        %2294 = vmatpush2.msra.mxu0 %v1316
        %2295 = vmatprep.subr.mxu0 %v1315
        %2296 = vmatpush2.msra.mxu0 %v1314
        %2297 = vmatprep.subr.mxu0 %v1313
        %2298 = vmatpush2.msra.mxu0 %v1312
        %2299 = vmatprep.subr.mxu0 %v1311
        %2300 = vmatpush2.msra.mxu0 %v1310
        %2301 = vmatprep.subr.mxu0 %v1309
        %2302 = vmatpush2.msra.mxu0 %v1308
        %2303 = vmatprep.subr.mxu0 %v1307
        %2304 = vmatpush2.msra.mxu0 %v1306
        %2305 = vmatprep.subr.mxu0 %v1305
        %2306 = vmatpush2.msra.mxu0 %v1304
        %2307 = vmatprep.subr.mxu0 %v1303
        %2308 = vmatpush2.msra.mxu0 %v1302
        %2309 = vmatprep.subr.mxu0 %v1301
        %2310 = vmatpush2.msra.mxu0 %v1300
        %2311 = vmatprep.subr.mxu0 %v1299
        %2312 = vmatpush2.msra.mxu0 %v1298
        %2313 = vmatprep.subr.mxu0 %v1297
        %2314 = vmatpush2.msra.mxu0 %v1296
        %2315 = vmatprep.subr.mxu0 %v1295
        %2316 = vmatpush2.msra.mxu0 %v1294
        %2317 = vmatprep.subr.mxu0 %v1293
        %2318 = vmatpush2.msra.mxu0 %v1292
        %2319 = vmatprep.subr.mxu0 %v1291
        %2320 = vmatpush2.msra.mxu0 %v1290
        %2321 = vmatprep.subr.mxu0 %v1289
        %2322 = vmatpush2.msra.mxu0 %v1288
        %2323 = vmatprep.mubr.f32.mxu0 %v1537
        %2324 = vmatmul.mubr.f32.gmra.mxu0 %v1536
        %v2325 = vpop.f32.mrf.mxu0
        %v2326 = vadd.f32 %v2255, %v2325
        %v2327 = vpop.f32.mrf.mxu0
        %v2328 = vadd.f32 %v2257, %v2327
        %2329 = vdwg.mxu0
        %2330 = vmatprep.subr.mxu0 %v1351
        %2331 = vmatpush1.msra.mxu0 %v1350
        %2332 = vmatprep.subr.mxu0 %v1349
        %2333 = vmatpush1.msra.mxu0 %v1348
        %2334 = vmatprep.subr.mxu0 %v1347
        %2335 = vmatpush1.msra.mxu0 %v1346
        %2336 = vmatprep.subr.mxu0 %v1345
        %2337 = vmatpush1.msra.mxu0 %v1344
        %2338 = vmatprep.subr.mxu0 %v1343
        %2339 = vmatpush1.msra.mxu0 %v1342
        %2340 = vmatprep.subr.mxu0 %v1341
        %2341 = vmatpush1.msra.mxu0 %v1340
        %2342 = vmatprep.subr.mxu0 %v1339
        %2343 = vmatpush1.msra.mxu0 %v1338
        %2344 = vmatprep.subr.mxu0 %v1337
        %2345 = vmatpush1.msra.mxu0 %v1336
        %2346 = vmatprep.subr.mxu0 %v1335
        %2347 = vmatpush1.msra.mxu0 %v1334
        %2348 = vmatprep.subr.mxu0 %v1333
        %2349 = vmatpush1.msra.mxu0 %v1332
        %2350 = vmatprep.subr.mxu0 %v1331
        %2351 = vmatpush1.msra.mxu0 %v1330
        %2352 = vmatprep.subr.mxu0 %v1329
        %2353 = vmatpush1.msra.mxu0 %v1328
        %2354 = vmatprep.subr.mxu0 %v1327
        %2355 = vmatpush1.msra.mxu0 %v1326
        %2356 = vmatprep.subr.mxu0 %v1325
        %2357 = vmatpush1.msra.mxu0 %v1324
        %2358 = vmatprep.subr.mxu0 %v1323
        %2359 = vmatpush1.msra.mxu0 %v1322
        %2360 = vmatprep.subr.mxu0 %v1321
        %2361 = vmatpush1.msra.mxu0 %v1320
        %2362 = vmatprep.subr.mxu0 %v1383
        %2363 = vmatpush2.msra.mxu0 %v1382
        %2364 = vmatprep.subr.mxu0 %v1381
        %2365 = vmatpush2.msra.mxu0 %v1380
        %2366 = vmatprep.subr.mxu0 %v1379
        %2367 = vmatpush2.msra.mxu0 %v1378
        %2368 = vmatprep.subr.mxu0 %v1377
        %2369 = vmatpush2.msra.mxu0 %v1376
        %2370 = vmatprep.subr.mxu0 %v1375
        %2371 = vmatpush2.msra.mxu0 %v1374
        %2372 = vmatprep.subr.mxu0 %v1373
        %2373 = vmatpush2.msra.mxu0 %v1372
        %2374 = vmatprep.subr.mxu0 %v1371
        %2375 = vmatpush2.msra.mxu0 %v1370
        %2376 = vmatprep.subr.mxu0 %v1369
        %2377 = vmatpush2.msra.mxu0 %v1368
        %2378 = vmatprep.subr.mxu0 %v1367
        %2379 = vmatpush2.msra.mxu0 %v1366
        %2380 = vmatprep.subr.mxu0 %v1365
        %2381 = vmatpush2.msra.mxu0 %v1364
        %2382 = vmatprep.subr.mxu0 %v1363
        %2383 = vmatpush2.msra.mxu0 %v1362
        %2384 = vmatprep.subr.mxu0 %v1361
        %2385 = vmatpush2.msra.mxu0 %v1360
        %2386 = vmatprep.subr.mxu0 %v1359
        %2387 = vmatpush2.msra.mxu0 %v1358
        %2388 = vmatprep.subr.mxu0 %v1357
        %2389 = vmatpush2.msra.mxu0 %v1356
        %2390 = vmatprep.subr.mxu0 %v1355
        %2391 = vmatpush2.msra.mxu0 %v1354
        %2392 = vmatprep.subr.mxu0 %v1353
        %2393 = vmatpush2.msra.mxu0 %v1352
        %2394 = vmatprep.mubr.f32.mxu0 %v1539
        %2395 = vmatmul.mubr.f32.gmra.mxu0 %v1538
        %v2396 = vpop.f32.mrf.mxu0
        %v2397 = vadd.f32 %v2326, %v2396
        %v2398 = vpop.f32.mrf.mxu0
        %v2399 = vadd.f32 %v2328, %v2398
        %2400 = vdwg.mxu0
        %2401 = vmatprep.subr.mxu0 %v1415
        %2402 = vmatpush1.msra.mxu0 %v1414
        %2403 = vmatprep.subr.mxu0 %v1413
        %2404 = vmatpush1.msra.mxu0 %v1412
        %2405 = vmatprep.subr.mxu0 %v1411
        %2406 = vmatpush1.msra.mxu0 %v1410
        %2407 = vmatprep.subr.mxu0 %v1409
        %2408 = vmatpush1.msra.mxu0 %v1408
        %2409 = vmatprep.subr.mxu0 %v1407
        %2410 = vmatpush1.msra.mxu0 %v1406
        %2411 = vmatprep.subr.mxu0 %v1405
        %2412 = vmatpush1.msra.mxu0 %v1404
        %2413 = vmatprep.subr.mxu0 %v1403
        %2414 = vmatpush1.msra.mxu0 %v1402
        %2415 = vmatprep.subr.mxu0 %v1401
        %2416 = vmatpush1.msra.mxu0 %v1400
        %2417 = vmatprep.subr.mxu0 %v1399
        %2418 = vmatpush1.msra.mxu0 %v1398
        %2419 = vmatprep.subr.mxu0 %v1397
        %2420 = vmatpush1.msra.mxu0 %v1396
        %2421 = vmatprep.subr.mxu0 %v1395
        %2422 = vmatpush1.msra.mxu0 %v1394
        %2423 = vmatprep.subr.mxu0 %v1393
        %2424 = vmatpush1.msra.mxu0 %v1392
        %2425 = vmatprep.subr.mxu0 %v1391
        %2426 = vmatpush1.msra.mxu0 %v1390
        %2427 = vmatprep.subr.mxu0 %v1389
        %2428 = vmatpush1.msra.mxu0 %v1388
        %2429 = vmatprep.subr.mxu0 %v1387
        %2430 = vmatpush1.msra.mxu0 %v1386
        %2431 = vmatprep.subr.mxu0 %v1385
        %2432 = vmatpush1.msra.mxu0 %v1384
        %2433 = vmatprep.subr.mxu0 %v1447
        %2434 = vmatpush2.msra.mxu0 %v1446
        %2435 = vmatprep.subr.mxu0 %v1445
        %2436 = vmatpush2.msra.mxu0 %v1444
        %2437 = vmatprep.subr.mxu0 %v1443
        %2438 = vmatpush2.msra.mxu0 %v1442
        %2439 = vmatprep.subr.mxu0 %v1441
        %2440 = vmatpush2.msra.mxu0 %v1440
        %2441 = vmatprep.subr.mxu0 %v1439
        %2442 = vmatpush2.msra.mxu0 %v1438
        %2443 = vmatprep.subr.mxu0 %v1437
        %2444 = vmatpush2.msra.mxu0 %v1436
        %2445 = vmatprep.subr.mxu0 %v1435
        %2446 = vmatpush2.msra.mxu0 %v1434
        %2447 = vmatprep.subr.mxu0 %v1433
        %2448 = vmatpush2.msra.mxu0 %v1432
        %2449 = vmatprep.subr.mxu0 %v1431
        %2450 = vmatpush2.msra.mxu0 %v1430
        %2451 = vmatprep.subr.mxu0 %v1429
        %2452 = vmatpush2.msra.mxu0 %v1428
        %2453 = vmatprep.subr.mxu0 %v1427
        %2454 = vmatpush2.msra.mxu0 %v1426
        %2455 = vmatprep.subr.mxu0 %v1425
        %2456 = vmatpush2.msra.mxu0 %v1424
        %2457 = vmatprep.subr.mxu0 %v1423
        %2458 = vmatpush2.msra.mxu0 %v1422
        %2459 = vmatprep.subr.mxu0 %v1421
        %2460 = vmatpush2.msra.mxu0 %v1420
        %2461 = vmatprep.subr.mxu0 %v1419
        %2462 = vmatpush2.msra.mxu0 %v1418
        %2463 = vmatprep.subr.mxu0 %v1417
        %2464 = vmatpush2.msra.mxu0 %v1416
        %2465 = vmatprep.mubr.f32.mxu0 %v1541
        %2466 = vmatmul.mubr.f32.gmra.mxu0 %v1540
        %v2467 = vpop.f32.mrf.mxu0
        %v2468 = vadd.f32 %v2397, %v2467
        %v2469 = vpop.f32.mrf.mxu0
        %v2470 = vadd.f32 %v2399, %v2469
        %2471 = vdwg.mxu0
        %2472 = vmatprep.subr.mxu0 %v1479
        %2473 = vmatpush1.msra.mxu0 %v1478
        %2474 = vmatprep.subr.mxu0 %v1477
        %2475 = vmatpush1.msra.mxu0 %v1476
        %2476 = vmatprep.subr.mxu0 %v1475
        %2477 = vmatpush1.msra.mxu0 %v1474
        %2478 = vmatprep.subr.mxu0 %v1473
        %2479 = vmatpush1.msra.mxu0 %v1472
        %2480 = vmatprep.subr.mxu0 %v1471
        %2481 = vmatpush1.msra.mxu0 %v1470
        %2482 = vmatprep.subr.mxu0 %v1469
        %2483 = vmatpush1.msra.mxu0 %v1468
        %2484 = vmatprep.subr.mxu0 %v1467
        %2485 = vmatpush1.msra.mxu0 %v1466
        %2486 = vmatprep.subr.mxu0 %v1465
        %2487 = vmatpush1.msra.mxu0 %v1464
        %2488 = vmatprep.subr.mxu0 %v1463
        %2489 = vmatpush1.msra.mxu0 %v1462
        %2490 = vmatprep.subr.mxu0 %v1461
        %2491 = vmatpush1.msra.mxu0 %v1460
        %2492 = vmatprep.subr.mxu0 %v1459
        %2493 = vmatpush1.msra.mxu0 %v1458
        %2494 = vmatprep.subr.mxu0 %v1457
        %2495 = vmatpush1.msra.mxu0 %v1456
        %2496 = vmatprep.subr.mxu0 %v1455
        %2497 = vmatpush1.msra.mxu0 %v1454
        %2498 = vmatprep.subr.mxu0 %v1453
        %2499 = vmatpush1.msra.mxu0 %v1452
        %2500 = vmatprep.subr.mxu0 %v1451
        %2501 = vmatpush1.msra.mxu0 %v1450
        %2502 = vmatprep.subr.mxu0 %v1449
        %2503 = vmatpush1.msra.mxu0 %v1448
        %2504 = vmatprep.subr.mxu0 %v1511
        %2505 = vmatpush2.msra.mxu0 %v1510
        %2506 = vmatprep.subr.mxu0 %v1509
        %2507 = vmatpush2.msra.mxu0 %v1508
        %2508 = vmatprep.subr.mxu0 %v1507
        %2509 = vmatpush2.msra.mxu0 %v1506
        %2510 = vmatprep.subr.mxu0 %v1505
        %2511 = vmatpush2.msra.mxu0 %v1504
        %2512 = vmatprep.subr.mxu0 %v1503
        %2513 = vmatpush2.msra.mxu0 %v1502
        %2514 = vmatprep.subr.mxu0 %v1501
        %2515 = vmatpush2.msra.mxu0 %v1500
        %2516 = vmatprep.subr.mxu0 %v1499
        %2517 = vmatpush2.msra.mxu0 %v1498
        %2518 = vmatprep.subr.mxu0 %v1497
        %2519 = vmatpush2.msra.mxu0 %v1496
        %2520 = vmatprep.subr.mxu0 %v1495
        %2521 = vmatpush2.msra.mxu0 %v1494
        %2522 = vmatprep.subr.mxu0 %v1493
        %2523 = vmatpush2.msra.mxu0 %v1492
        %2524 = vmatprep.subr.mxu0 %v1491
        %2525 = vmatpush2.msra.mxu0 %v1490
        %2526 = vmatprep.subr.mxu0 %v1489
        %2527 = vmatpush2.msra.mxu0 %v1488
        %2528 = vmatprep.subr.mxu0 %v1487
        %2529 = vmatpush2.msra.mxu0 %v1486
        %2530 = vmatprep.subr.mxu0 %v1485
        %2531 = vmatpush2.msra.mxu0 %v1484
        %2532 = vmatprep.subr.mxu0 %v1483
        %2533 = vmatpush2.msra.mxu0 %v1482
        %2534 = vmatprep.subr.mxu0 %v1481
        %2535 = vmatpush2.msra.mxu0 %v1480
        %2536 = vmatprep.mubr.f32.mxu0 %v1543
        %2537 = vmatmul.mubr.f32.gmra.mxu0 %v1542
        %v2538 = vpop.f32.mrf.mxu0
        %v2539 = vadd.f32 %v2468, %v2538
        %v2540 = vpop.f32.mrf.mxu0
        %v2541 = vadd.f32 %v2470, %v2540
        %2542 = vdwg.mxu0
        %2543 = vmatprep.subr.mxu0 0.0
        %2544 = vmatpush1.msra.mxu0 0.0
        %2545 = vmatprep.subr.mxu0 0.0
        %2546 = vmatpush1.msra.mxu0 0.0
        %2547 = vmatprep.subr.mxu0 0.0
        %2548 = vmatpush1.msra.mxu0 0.0
        %2549 = vmatprep.subr.mxu0 0.0
        %2550 = vmatpush1.msra.mxu0 0.0
        %2551 = vmatprep.subr.mxu0 0.0
        %2552 = vmatpush1.msra.mxu0 0.0
        %2553 = vmatprep.subr.mxu0 0.0
        %2554 = vmatpush1.msra.mxu0 0.0
        %2555 = vmatprep.subr.mxu0 0.0
        %2556 = vmatpush1.msra.mxu0 0.0
        %2557 = vmatprep.subr.mxu0 0.0
        %2558 = vmatpush1.msra.mxu0 0.0
        %2559 = vmatprep.subr.mxu0 0.0
        %2560 = vmatpush1.msra.mxu0 0.0
        %2561 = vmatprep.subr.mxu0 0.0
        %2562 = vmatpush1.msra.mxu0 0.0
        %2563 = vmatprep.subr.mxu0 0.0
        %2564 = vmatpush1.msra.mxu0 0.0
        %2565 = vmatprep.subr.mxu0 0.0
        %2566 = vmatpush1.msra.mxu0 0.0
        %2567 = vmatprep.subr.mxu0 0.0
        %2568 = vmatpush1.msra.mxu0 0.0
        %2569 = vmatprep.subr.mxu0 0.0
        %2570 = vmatpush1.msra.mxu0 0.0
        %2571 = vmatprep.subr.mxu0 %v1515
        %2572 = vmatpush1.msra.mxu0 %v1514
        %2573 = vmatprep.subr.mxu0 %v1513
        %2574 = vmatpush1.msra.mxu0 %v1512
        %2575 = vmatprep.subr.mxu0 0.0
        %2576 = vmatpush2.msra.mxu0 0.0
        %2577 = vmatprep.subr.mxu0 0.0
        %2578 = vmatpush2.msra.mxu0 0.0
        %2579 = vmatprep.subr.mxu0 0.0
        %2580 = vmatpush2.msra.mxu0 0.0
        %2581 = vmatprep.subr.mxu0 0.0
        %2582 = vmatpush2.msra.mxu0 0.0
        %2583 = vmatprep.subr.mxu0 0.0
        %2584 = vmatpush2.msra.mxu0 0.0
        %2585 = vmatprep.subr.mxu0 0.0
        %2586 = vmatpush2.msra.mxu0 0.0
        %2587 = vmatprep.subr.mxu0 0.0
        %2588 = vmatpush2.msra.mxu0 0.0
        %2589 = vmatprep.subr.mxu0 0.0
        %2590 = vmatpush2.msra.mxu0 0.0
        %2591 = vmatprep.subr.mxu0 0.0
        %2592 = vmatpush2.msra.mxu0 0.0
        %2593 = vmatprep.subr.mxu0 0.0
        %2594 = vmatpush2.msra.mxu0 0.0
        %2595 = vmatprep.subr.mxu0 0.0
        %2596 = vmatpush2.msra.mxu0 0.0
        %2597 = vmatprep.subr.mxu0 0.0
        %2598 = vmatpush2.msra.mxu0 0.0
        %2599 = vmatprep.subr.mxu0 0.0
        %2600 = vmatpush2.msra.mxu0 0.0
        %2601 = vmatprep.subr.mxu0 0.0
        %2602 = vmatpush2.msra.mxu0 0.0
        %2603 = vmatprep.subr.mxu0 0.0
        %2604 = vmatpush2.msra.mxu0 0.0
        %2605 = vmatprep.subr.mxu0 0.0
        %2606 = vmatpush2.msra.mxu0 0.0
        %2607 = vmatprep.mubr.f32.mxu0 0.0
        %2608 = vmatmul.mubr.f32.gmra.mxu0 %v1547
        %v2609 = vpop.f32.mrf.mxu0
        %v2610 = vadd.f32 %v2539, %v2609
        %v2611 = vpop.f32.mrf.mxu0
        %v2612 = vadd.f32 %v2541, %v2611
        %2613 = vdwg.mxu0
        %2614 = vst [vmem:[%s164] sm:$0xff] %v2610
        %2615 = vst [vmem:[%s164 + $0x8] sm:$0xff] %v2612
        %s2616 = smul.u32 2, %s16
        %p2617 = scmp.lt.s32.totalorder %s2616, 3
        %s2618 = scalar_select %p2617, %s2616, 3
        %s2619 = smul.addr %s2618, 8
        %s2620 = scalar_lea.vmem %s2, %s2619
        // Predicated region
        $region33: #{model_forward.3} parent=27 // pred_check
          %p2621 = pneg %p81
        $region34: #{model_forward.3} parent=27 // pred_check_branch
          %2623 = sbr.rel (%p2621) target = $region36
        $region35: #{model_forward.3} parent=27 // pred_region
          %s2624 = smul.u32 2, %s16
        $region36: #{model_forward.3} parent=27 // pred_fallthru
          _
      $region28: #{model_forward.3} parent=5 // pred_fallthru
        _
      %p2625 = scmp.le.s32.totalorder 2, %s11
      // Predicated region
      $region37: #{model_forward.3} parent=5 // pred_check
        %p2626 = pneg %p2625
      $region38: #{model_forward.3} parent=5 // pred_check_branch
        %2628 = sbr.rel (%p2626) target = $region40
      $region39: #{model_forward.3} parent=5 // pred_region
        %s2629 = ssub.s32 %s11, 2
        // Predicated region
        $region41: #{model_forward.3} parent=39 // pred_check
          %p2630 = pneg %p87
        $region42: #{model_forward.3} parent=39 // pred_check_branch
          %2632 = sbr.rel (%p2630) target = $region44
        $region43: #{model_forward.3} parent=39 // pred_region
          %s2633 = smul.u32 2, %s17
          %p2634 = scmp.lt.s32.totalorder %s2633, 3
          %s2635 = scalar_select %p2634, %s2633, 3
          %s2636 = smul.addr %s2635, 8
          %s2637 = scalar_lea.vmem %s2, %s2636
        $region44: #{model_forward.3} parent=39 // pred_fallthru
          _
      $region40: #{model_forward.3} parent=5 // pred_fallthru
        _
    $region6: #{model_forward.3} parent=1 // loop_footer
      %s15 = sadd.s32 1, %s11
    $region7: #{model_forward.3} parent=1 // loop_footer_branch
      %10 = sbr.rel target = $region3
    $region8: #{model_forward.3} parent=1 // loop_exit
      _
    %2638 = vsyncpa [#allocation3], 1
    %s2639 = scalar_lea.sflag [#allocation3], 1
    %2640 = vsyncpa %s2639, 1

</llo_original>
